<compile_context>
chip_gen: v7x
topology: tpu7x:2x2x1
jax: 0.10.0
libtpu: 0.0.40
codegen_flags: <defaults>
</compile_context>

<pallas_src>
import functools

import jax
import jax.numpy as jnp
from jax import lax
from jax.experimental import pallas as pl
from jax.experimental.pallas import tpu as pltpu

# Small, module-consistent configuration (Conv1d k=1 stack + global MLP).
IN_CHANNELS = 3
CONV_CHANNELS = [32, 32, 64, 64, 128]
MLP_DIMS = [128, 64, 64]
OUTPUT_DIM = MLP_DIMS[-1] + CONV_CHANNELS[-1]

_VMEM_LIMIT = 32 * 1024 * 1024  # explicit budget; well under v7x's 64 MiB physical VMEM


def _pick_tile_n(n):
    """Largest lane-aligned point tile <= 2048 (double-buffered blocks << VMEM)."""
    if n <= 2048:
        return n          # full extent is always a legal block dim
    return 2048           # multiple of 128; a partial tail tile is masked/clipped


def _conv_stack(h, wb_refs, compute_dtype):
    """Shared conv tower: h is (C_in, TILE_N) f32 -> (C_last, TILE_N) f32."""
    n_conv = len(wb_refs) // 2
    for i in range(n_conv):
        w = wb_refs[2 * i][...].astype(compute_dtype)      # (C_out, C_in)
        b = wb_refs[2 * i + 1][...]                        # (C_out, 1) f32
        h = jnp.dot(w, h.astype(compute_dtype),
                    preferred_element_type=jnp.float32) + b
        h = jnp.maximum(h, 0.0)                            # ReLU in f32 (VPU)
    return h


# ---------------------------------------------------------------------------
# Pass 1: conv stack + per-batch global max over points (tiny [B, C_last, 1] out)
# ---------------------------------------------------------------------------
def _make_gmax_kernel(n_points, tile_n, compute_dtype):
    def kernel(x_ref, *rest):
        wb_refs, gmax_ref = rest[:-1], rest[-1]
        n = pl.program_id(1)

        @pl.when(n == 0)
        def _():  # init the resident accumulator block (revisited across N tiles)
            gmax_ref[...] = jnp.full(gmax_ref.shape, -jnp.inf, gmax_ref.dtype)

        h = _conv_stack(x_ref[0].astype(jnp.float32), wb_refs, compute_dtype)

        if n_points % tile_n != 0:  # mask padded point lanes of the last tile
            lane = lax.broadcasted_iota(jnp.int32, h.shape, 1)
            h = jnp.where(n * tile_n + lane < n_points, h, -jnp.inf)

        gmax_ref[0] = jnp.maximum(gmax_ref[0], jnp.max(h, axis=1, keepdims=True))

    return kernel


# ---------------------------------------------------------------------------
# Pass 2: recompute conv stack per tile and write fused concat output directly:
#   out[b, :, tile] = concat([broadcast(global_mlp[b]), point_features], axis=0)
# ---------------------------------------------------------------------------
def _make_concat_kernel(tile_n, compute_dtype):
    def kernel(x_ref, g_ref, *rest):
        wb_refs, out_ref = rest[:-1], rest[-1]
        h = _conv_stack(x_ref[0].astype(jnp.float32), wb_refs, compute_dtype)
        g = jnp.broadcast_to(g_ref[0], (g_ref.shape[1], tile_n))   # (MLP_out, TILE_N)
        out_ref[0] = jnp.concatenate([g, h], axis=0).astype(out_ref.dtype)

    return kernel


# ---------------------------------------------------------------------------
# Wrapper
# ---------------------------------------------------------------------------
@functools.partial(jax.jit, static_argnames=("tile_n", "compute_dtype", "out_dtype"))
def pointnet_feat(x_bcn, params, *, tile_n=None, compute_dtype=jnp.float32,
                  out_dtype=None):
    """PointNetfeat forward. x_bcn: [B, C_in, N] -> [B, mlp[-1] + conv[-1], N]."""
    B, C_in, N = x_bcn.shape
    conv_wb, mlp_wb = params["conv"], params["mlp"]
    c_last = conv_wb[-1][0].shape[0]
    mlp_out = mlp_wb[-1][0].shape[1]
    out_dim = mlp_out + c_last
    if tile_n is None:
        tile_n = _pick_tile_n(N)
    n_tiles = pl.cdiv(N, tile_n)
    out_dtype = x_bcn.dtype if out_dtype is None else out_dtype

    conv_args, w_specs = [], []
    for (w, b) in conv_wb:
        conv_args += [w, b]
        w_specs.append(pl.BlockSpec(w.shape, lambda bi, ni: (0, 0)))
        w_specs.append(pl.BlockSpec(b.shape, lambda bi, ni: (0, 0)))
    weight_bytes = sum(a.size * a.dtype.itemsize for a in conv_args)
    conv_flops = 2 * B * N * sum(w.shape[0] * w.shape[1] for (w, _) in conv_wb)
    x_bytes = x_bcn.size * x_bcn.dtype.itemsize
    x_spec = pl.BlockSpec((1, C_in, tile_n), lambda bi, ni: (bi, 0, ni))

    # ---- pass 1: global max features ------------------------------------
    gmax = pl.pallas_call(
        _make_gmax_kernel(N, tile_n, compute_dtype),
        grid=(B, n_tiles),
        in_specs=[x_spec] + w_specs,
        out_specs=pl.BlockSpec((1, c_last, 1), lambda bi, ni: (bi, 0, 0)),
        out_shape=jax.ShapeDtypeStruct((B, c_last, 1), jnp.float32),
        compiler_params=pltpu.CompilerParams(
            dimension_semantics=("parallel", "arbitrary"),
            vmem_limit_bytes=_VMEM_LIMIT),
        cost_estimate=pl.CostEstimate(
            flops=conv_flops, transcendentals=0,
            bytes_accessed=x_bytes + weight_bytes + B * c_last * 4),
    )(x_bcn, *conv_args)
    # TODO(synk): for B == 1 on v7x, emit per-tile partial maxes with the N axis
    # marked "parallel" (so both TensorCores split the tiles) and reduce them here.

    # ---- tiny global MLP in plain jnp (not worth a pallas_call) ----------
    g = gmax[:, :, 0]                                       # [B, C_last] f32
    for (w, b) in mlp_wb:                                   # w: (d_in, d_out)
        g = jax.nn.relu(jnp.dot(g, w, preferred_element_type=jnp.float32) + b)
    g = g[:, :, None]                                       # [B, mlp_out, 1]

    # ---- pass 2: fused concat output in PyTorch [B, n_features, N] layout
    out = pl.pallas_call(
        _make_concat_kernel(tile_n, compute_dtype),
        grid=(B, n_tiles),
        in_specs=[x_spec,
                  pl.BlockSpec((1, mlp_out, 1), lambda bi, ni: (bi, 0, 0))]
                 + w_specs,
        out_specs=pl.BlockSpec((1, out_dim, tile_n), lambda bi, ni: (bi, 0, ni)),
        out_shape=jax.ShapeDtypeStruct((B, out_dim, N), out_dtype),
        compiler_params=pltpu.CompilerParams(
            dimension_semantics=("parallel", "parallel"),
            vmem_limit_bytes=_VMEM_LIMIT),
        cost_estimate=pl.CostEstimate(
            flops=conv_flops, transcendentals=0,
            bytes_accessed=x_bytes + weight_bytes
                           + B * out_dim * N * jnp.dtype(out_dtype).itemsize),
    )(x_bcn, g, *conv_args)
    return out


# ---------------------------------------------------------------------------
# Parameters: Conv1d(k=1) weight stored as (C_out, C_in) == torch weight[:, :, 0],
# bias as (C_out, 1). Linear weight stored transposed as (d_in, d_out).
# ---------------------------------------------------------------------------
def init_params(key, in_channels=IN_CHANNELS, conv_channels=CONV_CHANNELS,
                mlp_dims=MLP_DIMS):
    params = {"conv": [], "mlp": []}
    c_in = in_channels
    for c_out in conv_channels:
        key, kw, kb = jax.random.split(key, 3)
        bound = 1.0 / float(c_in) ** 0.5
        w = jax.random.uniform(kw, (c_out, c_in), jnp.float32, -bound, bound)
        b = jax.random.uniform(kb, (c_out, 1), jnp.float32, -bound, bound)
        params["conv"].append((w, b))
        c_in = c_out
    d_in = conv_channels[-1]
    for d_out in mlp_dims:
        key, kw, kb = jax.random.split(key, 3)
        bound = 1.0 / float(d_in) ** 0.5
        w = jax.random.uniform(kw, (d_in, d_out), jnp.float32, -bound, bound)
        b = jax.random.uniform(kb, (1, d_out), jnp.float32, -bound, bound)
        params["mlp"].append((w, b))
        d_in = d_out
    return params


def reference(x_bcn, params, compute_dtype=jnp.float32):
    h = jnp.transpose(x_bcn, (0, 2, 1)).astype(jnp.float32)         # [B, N, C]
    for (w, b) in params["conv"]:                                   # w: (Cout, Cin)
        y = jnp.dot(h.astype(compute_dtype), w.T.astype(compute_dtype),
                    preferred_element_type=jnp.float32)
        h = jax.nn.relu(y + b[:, 0])
    g = jnp.max(h, axis=1)                                          # [B, C_last]
    for (w, b) in params["mlp"]:
        g = jax.nn.relu(jnp.dot(g, w, preferred_element_type=jnp.float32) + b)
    B, N, _ = h.shape
    glob = jnp.broadcast_to(g[:, :, None], (B, g.shape[1], N))
    return jnp.concatenate([glob, jnp.transpose(h, (0, 2, 1))], axis=1)


if __name__ == "__main__":
    key = jax.random.PRNGKey(0)
    kx, kp = jax.random.split(key)
    B, N = 2, 1024
    x = jax.random.normal(kx, (B, IN_CHANNELS, N), jnp.float32)
    params = init_params(kp)

    # f32 MXU path (faithful to the PyTorch module) -- tight tolerance.
    out = jax.block_until_ready(
        pointnet_feat(x, params, tile_n=256, compute_dtype=jnp.float32))
    assert out.shape == (B, OUTPUT_DIM, N), out.shape
    ref = reference(x, params, jnp.float32)
    assert jnp.allclose(out, ref, atol=1e-4, rtol=1e-4), "f32 mismatch vs reference"

    # bf16 MXU-input path (v6e/v7x perf option) -- compare vs a bf16-consistent
    # jnp reference (same casts, f32 accumulation).
    out_bf16 = jax.block_until_ready(
        pointnet_feat(x, params, tile_n=256, compute_dtype=jnp.bfloat16))
    ref_bf16 = reference(x, params, jnp.bfloat16)
    assert jnp.allclose(out_bf16, ref_bf16, atol=5e-2, rtol=5e-2), \
        "bf16 mismatch vs bf16 reference"

    print("KERNEL_OK")
</pallas_src>

<mosaic_0001>
module attributes {stable_mosaic.version = 11 : i64} {
  func.func @kernel(%arg0: i32, %arg1: i32, %arg2: memref<1x3x256xf32, #tpu.memory_space<vmem>>, %arg3: memref<1x64x1xf32, #tpu.memory_space<vmem>>, %arg4: memref<32x3xf32, #tpu.memory_space<vmem>>, %arg5: memref<32x1xf32, #tpu.memory_space<vmem>>, %arg6: memref<32x32xf32, #tpu.memory_space<vmem>>, %arg7: memref<32x1xf32, #tpu.memory_space<vmem>>, %arg8: memref<64x32xf32, #tpu.memory_space<vmem>>, %arg9: memref<64x1xf32, #tpu.memory_space<vmem>>, %arg10: memref<64x64xf32, #tpu.memory_space<vmem>>, %arg11: memref<64x1xf32, #tpu.memory_space<vmem>>, %arg12: memref<128x64xf32, #tpu.memory_space<vmem>>, %arg13: memref<128x1xf32, #tpu.memory_space<vmem>>, %arg14: memref<1x192x256xf32, #tpu.memory_space<vmem>>) attributes {dimension_semantics = [#tpu.dimension_semantics<parallel>, #tpu.dimension_semantics<parallel>], iteration_bounds = array<i64: 2, 4>, scalar_prefetch = 0 : i64, scratch_operands = 0 : i64, tpu.core_type = #tpu.core_type<tc>, window_params = [{transform_indices = @transform_0, window_bounds = array<i64: 1, 3, 256>}, {transform_indices = @transform_1, window_bounds = array<i64: 1, 64, 1>}, {pipeline_mode = #tpu.pipeline_mode<synchronous>, transform_indices = @transform_2, window_bounds = array<i64: 32, 3>}, {pipeline_mode = #tpu.pipeline_mode<synchronous>, transform_indices = @transform_3, window_bounds = array<i64: 32, 1>}, {pipeline_mode = #tpu.pipeline_mode<synchronous>, transform_indices = @transform_4, window_bounds = array<i64: 32, 32>}, {pipeline_mode = #tpu.pipeline_mode<synchronous>, transform_indices = @transform_5, window_bounds = array<i64: 32, 1>}, {pipeline_mode = #tpu.pipeline_mode<synchronous>, transform_indices = @transform_6, window_bounds = array<i64: 64, 32>}, {pipeline_mode = #tpu.pipeline_mode<synchronous>, transform_indices = @transform_7, window_bounds = array<i64: 64, 1>}, {pipeline_mode = #tpu.pipeline_mode<synchronous>, transform_indices = @transform_8, window_bounds = array<i64: 64, 64>}, {pipeline_mode = #tpu.pipeline_mode<synchronous>, transform_indices = @transform_9, window_bounds = array<i64: 64, 1>}, {pipeline_mode = #tpu.pipeline_mode<synchronous>, transform_indices = @transform_10, window_bounds = array<i64: 128, 64>}, {pipeline_mode = #tpu.pipeline_mode<synchronous>, transform_indices = @transform_11, window_bounds = array<i64: 128, 1>}, {transform_indices = @transform_12, window_bounds = array<i64: 1, 192, 256>}]} {
    %c0 = arith.constant 0 : index
    %c0_0 = arith.constant 0 : index
    %c0_1 = arith.constant 0 : index
    %0 = vector.load %arg2[%c0, %c0_0, %c0_1] : memref<1x3x256xf32, #tpu.memory_space<vmem>>, vector<1x3x256xf32>
    %1 = vector.shape_cast %0 : vector<1x3x256xf32> to vector<3x256xf32>
    %c0_2 = arith.constant 0 : index
    %c0_3 = arith.constant 0 : index
    %2 = vector.load %arg4[%c0_2, %c0_3] : memref<32x3xf32, #tpu.memory_space<vmem>>, vector<32x3xf32>
    %c0_4 = arith.constant 0 : index
    %c0_5 = arith.constant 0 : index
    %3 = vector.load %arg5[%c0_4, %c0_5] : memref<32x1xf32, #tpu.memory_space<vmem>>, vector<32x1xf32>
    %cst = arith.constant dense<0.000000e+00> : vector<32x256xf32>
    %4 = tpu.matmul %2, %1, %cst {dimension_numbers = #tpu.dot_dimension_numbers<[1], [0], [0], [1], [0, 0, 1, 1], [], []>} : vector<32x3xf32>, vector<3x256xf32>, vector<32x256xf32> -> vector<32x256xf32>
    %5 = vector.broadcast %3 : vector<32x1xf32> to vector<32x256xf32>
    %6 = arith.addf %4, %5 : vector<32x256xf32>
    %cst_6 = arith.constant 0.000000e+00 : f32
    %7 = vector.broadcast %cst_6 : f32 to vector<32x256xf32>
    %8 = arith.maximumf %6, %7 : vector<32x256xf32>
    %c0_7 = arith.constant 0 : index
    %c0_8 = arith.constant 0 : index
    %9 = vector.load %arg6[%c0_7, %c0_8] : memref<32x32xf32, #tpu.memory_space<vmem>>, vector<32x32xf32>
    %c0_9 = arith.constant 0 : index
    %c0_10 = arith.constant 0 : index
    %10 = vector.load %arg7[%c0_9, %c0_10] : memref<32x1xf32, #tpu.memory_space<vmem>>, vector<32x1xf32>
    %cst_11 = arith.constant dense<0.000000e+00> : vector<32x256xf32>
    %11 = tpu.matmul %9, %8, %cst_11 {dimension_numbers = #tpu.dot_dimension_numbers<[1], [0], [0], [1], [0, 0, 1, 1], [], []>} : vector<32x32xf32>, vector<32x256xf32>, vector<32x256xf32> -> vector<32x256xf32>
    %12 = vector.broadcast %10 : vector<32x1xf32> to vector<32x256xf32>
    %13 = arith.addf %11, %12 : vector<32x256xf32>
    %cst_12 = arith.constant 0.000000e+00 : f32
    %14 = vector.broadcast %cst_12 : f32 to vector<32x256xf32>
    %15 = arith.maximumf %13, %14 : vector<32x256xf32>
    %c0_13 = arith.constant 0 : index
    %c0_14 = arith.constant 0 : index
    %16 = vector.load %arg8[%c0_13, %c0_14] : memref<64x32xf32, #tpu.memory_space<vmem>>, vector<64x32xf32>
    %c0_15 = arith.constant 0 : index
    %c0_16 = arith.constant 0 : index
    %17 = vector.load %arg9[%c0_15, %c0_16] : memref<64x1xf32, #tpu.memory_space<vmem>>, vector<64x1xf32>
    %cst_17 = arith.constant dense<0.000000e+00> : vector<64x256xf32>
    %18 = tpu.matmul %16, %15, %cst_17 {dimension_numbers = #tpu.dot_dimension_numbers<[1], [0], [0], [1], [0, 0, 1, 1], [], []>} : vector<64x32xf32>, vector<32x256xf32>, vector<64x256xf32> -> vector<64x256xf32>
    %19 = vector.broadcast %17 : vector<64x1xf32> to vector<64x256xf32>
    %20 = arith.addf %18, %19 : vector<64x256xf32>
    %cst_18 = arith.constant 0.000000e+00 : f32
    %21 = vector.broadcast %cst_18 : f32 to vector<64x256xf32>
    %22 = arith.maximumf %20, %21 : vector<64x256xf32>
    %c0_19 = arith.constant 0 : index
    %c0_20 = arith.constant 0 : index
    %23 = vector.load %arg10[%c0_19, %c0_20] : memref<64x64xf32, #tpu.memory_space<vmem>>, vector<64x64xf32>
    %c0_21 = arith.constant 0 : index
    %c0_22 = arith.constant 0 : index
    %24 = vector.load %arg11[%c0_21, %c0_22] : memref<64x1xf32, #tpu.memory_space<vmem>>, vector<64x1xf32>
    %cst_23 = arith.constant dense<0.000000e+00> : vector<64x256xf32>
    %25 = tpu.matmul %23, %22, %cst_23 {dimension_numbers = #tpu.dot_dimension_numbers<[1], [0], [0], [1], [0, 0, 1, 1], [], []>} : vector<64x64xf32>, vector<64x256xf32>, vector<64x256xf32> -> vector<64x256xf32>
    %26 = vector.broadcast %24 : vector<64x1xf32> to vector<64x256xf32>
    %27 = arith.addf %25, %26 : vector<64x256xf32>
    %cst_24 = arith.constant 0.000000e+00 : f32
    %28 = vector.broadcast %cst_24 : f32 to vector<64x256xf32>
    %29 = arith.maximumf %27, %28 : vector<64x256xf32>
    %c0_25 = arith.constant 0 : index
    %c0_26 = arith.constant 0 : index
    %30 = vector.load %arg12[%c0_25, %c0_26] : memref<128x64xf32, #tpu.memory_space<vmem>>, vector<128x64xf32>
    %c0_27 = arith.constant 0 : index
    %c0_28 = arith.constant 0 : index
    %31 = vector.load %arg13[%c0_27, %c0_28] : memref<128x1xf32, #tpu.memory_space<vmem>>, vector<128x1xf32>
    %cst_29 = arith.constant dense<0.000000e+00> : vector<128x256xf32>
    %32 = tpu.matmul %30, %29, %cst_29 {dimension_numbers = #tpu.dot_dimension_numbers<[1], [0], [0], [1], [0, 0, 1, 1], [], []>} : vector<128x64xf32>, vector<64x256xf32>, vector<128x256xf32> -> vector<128x256xf32>
    %33 = vector.broadcast %31 : vector<128x1xf32> to vector<128x256xf32>
    %34 = arith.addf %32, %33 : vector<128x256xf32>
    %cst_30 = arith.constant 0.000000e+00 : f32
    %35 = vector.broadcast %cst_30 : f32 to vector<128x256xf32>
    %36 = arith.maximumf %34, %35 : vector<128x256xf32>
    %c0_31 = arith.constant 0 : index
    %c0_32 = arith.constant 0 : index
    %c0_33 = arith.constant 0 : index
    %37 = vector.load %arg3[%c0_31, %c0_32, %c0_33] : memref<1x64x1xf32, #tpu.memory_space<vmem>>, vector<1x64x1xf32>
    %38 = vector.shape_cast %37 : vector<1x64x1xf32> to vector<64x1xf32>
    %39 = vector.shape_cast %38 : vector<64x1xf32> to vector<64x1xf32>
    %40 = vector.broadcast %39 : vector<64x1xf32> to vector<64x256xf32>
    %41 = tpu.concatenate %40, %36 in 0 : vector<64x256xf32>, vector<128x256xf32> -> vector<192x256xf32>
    %c0_34 = arith.constant 0 : index
    %c0_35 = arith.constant 0 : index
    %c0_36 = arith.constant 0 : index
    %42 = vector.load %arg14[%c0_34, %c0_35, %c0_36] : memref<1x192x256xf32, #tpu.memory_space<vmem>>, vector<1x192x256xf32>
    %43 = vector.shape_cast %42 : vector<1x192x256xf32> to vector<192x256xf32>
    %44 = vector.shape_cast %41 : vector<192x256xf32> to vector<1x192x256xf32>
    tpu.vector_store %arg14[%c0_34, %c0_35, %c0_36], %44 {strides = array<i32>} : memref<1x192x256xf32, #tpu.memory_space<vmem>>, vector<1x192x256xf32>,
    return
  }
  func.func @transform_0(%arg0: i32, %arg1: i32) -> (i32, i32, i32) {
    %c0_i32 = arith.constant 0 : i32
    %c0_i32_0 = arith.constant 0 : i32
    return %arg0, %c0_i32, %arg1 : i32, i32, i32
  }
  func.func @transform_1(%arg0: i32, %arg1: i32) -> (i32, i32, i32) {
    %c0_i32 = arith.constant 0 : i32
    %c0_i32_0 = arith.constant 0 : i32
    %c0_i32_1 = arith.constant 0 : i32
    return %arg0, %c0_i32, %c0_i32_0 : i32, i32, i32
  }
  func.func @transform_2(%arg0: i32, %arg1: i32) -> (i32, i32) {
    %c0_i32 = arith.constant 0 : i32
    %c0_i32_0 = arith.constant 0 : i32
    %c0_i32_1 = arith.constant 0 : i32
    return %c0_i32, %c0_i32_0 : i32, i32
  }
  func.func @transform_3(%arg0: i32, %arg1: i32) -> (i32, i32) {
    %c0_i32 = arith.constant 0 : i32
    %c0_i32_0 = arith.constant 0 : i32
    %c0_i32_1 = arith.constant 0 : i32
    return %c0_i32, %c0_i32_0 : i32, i32
  }
  func.func @transform_4(%arg0: i32, %arg1: i32) -> (i32, i32) {
    %c0_i32 = arith.constant 0 : i32
    %c0_i32_0 = arith.constant 0 : i32
    %c0_i32_1 = arith.constant 0 : i32
    return %c0_i32, %c0_i32_0 : i32, i32
  }
  func.func @transform_5(%arg0: i32, %arg1: i32) -> (i32, i32) {
    %c0_i32 = arith.constant 0 : i32
    %c0_i32_0 = arith.constant 0 : i32
    %c0_i32_1 = arith.constant 0 : i32
    return %c0_i32, %c0_i32_0 : i32, i32
  }
  func.func @transform_6(%arg0: i32, %arg1: i32) -> (i32, i32) {
    %c0_i32 = arith.constant 0 : i32
    %c0_i32_0 = arith.constant 0 : i32
    %c0_i32_1 = arith.constant 0 : i32
    return %c0_i32, %c0_i32_0 : i32, i32
  }
  func.func @transform_7(%arg0: i32, %arg1: i32) -> (i32, i32) {
    %c0_i32 = arith.constant 0 : i32
    %c0_i32_0 = arith.constant 0 : i32
    %c0_i32_1 = arith.constant 0 : i32
    return %c0_i32, %c0_i32_0 : i32, i32
  }
  func.func @transform_8(%arg0: i32, %arg1: i32) -> (i32, i32) {
    %c0_i32 = arith.constant 0 : i32
    %c0_i32_0 = arith.constant 0 : i32
    %c0_i32_1 = arith.constant 0 : i32
    return %c0_i32, %c0_i32_0 : i32, i32
  }
  func.func @transform_9(%arg0: i32, %arg1: i32) -> (i32, i32) {
    %c0_i32 = arith.constant 0 : i32
    %c0_i32_0 = arith.constant 0 : i32
    %c0_i32_1 = arith.constant 0 : i32
    return %c0_i32, %c0_i32_0 : i32, i32
  }
  func.func @transform_10(%arg0: i32, %arg1: i32) -> (i32, i32) {
    %c0_i32 = arith.constant 0 : i32
    %c0_i32_0 = arith.constant 0 : i32
    %c0_i32_1 = arith.constant 0 : i32
    return %c0_i32, %c0_i32_0 : i32, i32
  }
  func.func @transform_11(%arg0: i32, %arg1: i32) -> (i32, i32) {
    %c0_i32 = arith.constant 0 : i32
    %c0_i32_0 = arith.constant 0 : i32
    %c0_i32_1 = arith.constant 0 : i32
    return %c0_i32, %c0_i32_0 : i32, i32
  }
  func.func @transform_12(%arg0: i32, %arg1: i32) -> (i32, i32, i32) {
    %c0_i32 = arith.constant 0 : i32
    %c0_i32_0 = arith.constant 0 : i32
    return %arg0, %c0_i32, %arg1 : i32, i32, i32
  }
}

module attributes {stable_mosaic.version = 11 : i64} {
  func.func @kernel(%arg0: i32, %arg1: i32, %arg2: memref<1x3x256xf32, #tpu.memory_space<vmem>>, %arg3: memref<32x3xf32, #tpu.memory_space<vmem>>, %arg4: memref<32x1xf32, #tpu.memory_space<vmem>>, %arg5: memref<32x32xf32, #tpu.memory_space<vmem>>, %arg6: memref<32x1xf32, #tpu.memory_space<vmem>>, %arg7: memref<64x32xf32, #tpu.memory_space<vmem>>, %arg8: memref<64x1xf32, #tpu.memory_space<vmem>>, %arg9: memref<64x64xf32, #tpu.memory_space<vmem>>, %arg10: memref<64x1xf32, #tpu.memory_space<vmem>>, %arg11: memref<128x64xf32, #tpu.memory_space<vmem>>, %arg12: memref<128x1xf32, #tpu.memory_space<vmem>>, %arg13: memref<1x128x1xf32, #tpu.memory_space<vmem>>) attributes {dimension_semantics = [#tpu.dimension_semantics<parallel>, #tpu.dimension_semantics<arbitrary>], iteration_bounds = array<i64: 2, 4>, scalar_prefetch = 0 : i64, scratch_operands = 0 : i64, tpu.core_type = #tpu.core_type<tc>, window_params = [{transform_indices = @transform_0, window_bounds = array<i64: 1, 3, 256>}, {pipeline_mode = #tpu.pipeline_mode<synchronous>, transform_indices = @transform_1, window_bounds = array<i64: 32, 3>}, {pipeline_mode = #tpu.pipeline_mode<synchronous>, transform_indices = @transform_2, window_bounds = array<i64: 32, 1>}, {pipeline_mode = #tpu.pipeline_mode<synchronous>, transform_indices = @transform_3, window_bounds = array<i64: 32, 32>}, {pipeline_mode = #tpu.pipeline_mode<synchronous>, transform_indices = @transform_4, window_bounds = array<i64: 32, 1>}, {pipeline_mode = #tpu.pipeline_mode<synchronous>, transform_indices = @transform_5, window_bounds = array<i64: 64, 32>}, {pipeline_mode = #tpu.pipeline_mode<synchronous>, transform_indices = @transform_6, window_bounds = array<i64: 64, 1>}, {pipeline_mode = #tpu.pipeline_mode<synchronous>, transform_indices = @transform_7, window_bounds = array<i64: 64, 64>}, {pipeline_mode = #tpu.pipeline_mode<synchronous>, transform_indices = @transform_8, window_bounds = array<i64: 64, 1>}, {pipeline_mode = #tpu.pipeline_mode<synchronous>, transform_indices = @transform_9, window_bounds = array<i64: 128, 64>}, {pipeline_mode = #tpu.pipeline_mode<synchronous>, transform_indices = @transform_10, window_bounds = array<i64: 128, 1>}, {transform_indices = @transform_11, window_bounds = array<i64: 1, 128, 1>}]} {
    %c0_i32 = arith.constant 0 : i32
    %0 = arith.cmpi eq, %arg1, %c0_i32 : i32
    %1 = arith.extui %0 : i1 to i32
    %c0_i32_0 = arith.constant 0 : i32
    %2 = arith.cmpi ne, %1, %c0_i32_0 : i32
    scf.if %2 {
      %cst_39 = arith.constant 0xFF800000 : f32
      %48 = vector.broadcast %cst_39 : f32 to vector<1x128x1xf32>
      %c0_40 = arith.constant 0 : index
      %c0_41 = arith.constant 0 : index
      %c0_42 = arith.constant 0 : index
      %49 = vector.load %arg13[%c0_40, %c0_41, %c0_42] : memref<1x128x1xf32, #tpu.memory_space<vmem>>, vector<1x128x1xf32>
      tpu.vector_store %arg13[%c0_40, %c0_41, %c0_42], %48 {strides = array<i32>} : memref<1x128x1xf32, #tpu.memory_space<vmem>>, vector<1x128x1xf32>,
    } else {
    }
    %c0 = arith.constant 0 : index
    %c0_1 = arith.constant 0 : index
    %c0_2 = arith.constant 0 : index
    %3 = vector.load %arg2[%c0, %c0_1, %c0_2] : memref<1x3x256xf32, #tpu.memory_space<vmem>>, vector<1x3x256xf32>
    %4 = vector.shape_cast %3 : vector<1x3x256xf32> to vector<3x256xf32>
    %c0_3 = arith.constant 0 : index
    %c0_4 = arith.constant 0 : index
    %5 = vector.load %arg3[%c0_3, %c0_4] : memref<32x3xf32, #tpu.memory_space<vmem>>, vector<32x3xf32>
    %c0_5 = arith.constant 0 : index
    %c0_6 = arith.constant 0 : index
    %6 = vector.load %arg4[%c0_5, %c0_6] : memref<32x1xf32, #tpu.memory_space<vmem>>, vector<32x1xf32>
    %cst = arith.constant dense<0.000000e+00> : vector<32x256xf32>
    %7 = tpu.matmul %5, %4, %cst {dimension_numbers = #tpu.dot_dimension_numbers<[1], [0], [0], [1], [0, 0, 1, 1], [], []>} : vector<32x3xf32>, vector<3x256xf32>, vector<32x256xf32> -> vector<32x256xf32>
    %8 = vector.broadcast %6 : vector<32x1xf32> to vector<32x256xf32>
    %9 = arith.addf %7, %8 : vector<32x256xf32>
    %cst_7 = arith.constant 0.000000e+00 : f32
    %10 = vector.broadcast %cst_7 : f32 to vector<32x256xf32>
    %11 = arith.maximumf %9, %10 : vector<32x256xf32>
    %c0_8 = arith.constant 0 : index
    %c0_9 = arith.constant 0 : index
    %12 = vector.load %arg5[%c0_8, %c0_9] : memref<32x32xf32, #tpu.memory_space<vmem>>, vector<32x32xf32>
    %c0_10 = arith.constant 0 : index
    %c0_11 = arith.constant 0 : index
    %13 = vector.load %arg6[%c0_10, %c0_11] : memref<32x1xf32, #tpu.memory_space<vmem>>, vector<32x1xf32>
    %cst_12 = arith.constant dense<0.000000e+00> : vector<32x256xf32>
    %14 = tpu.matmul %12, %11, %cst_12 {dimension_numbers = #tpu.dot_dimension_numbers<[1], [0], [0], [1], [0, 0, 1, 1], [], []>} : vector<32x32xf32>, vector<32x256xf32>, vector<32x256xf32> -> vector<32x256xf32>
    %15 = vector.broadcast %13 : vector<32x1xf32> to vector<32x256xf32>
    %16 = arith.addf %14, %15 : vector<32x256xf32>
    %cst_13 = arith.constant 0.000000e+00 : f32
    %17 = vector.broadcast %cst_13 : f32 to vector<32x256xf32>
    %18 = arith.maximumf %16, %17 : vector<32x256xf32>
    %c0_14 = arith.constant 0 : index
    %c0_15 = arith.constant 0 : index
    %19 = vector.load %arg7[%c0_14, %c0_15] : memref<64x32xf32, #tpu.memory_space<vmem>>, vector<64x32xf32>
    %c0_16 = arith.constant 0 : index
    %c0_17 = arith.constant 0 : index
    %20 = vector.load %arg8[%c0_16, %c0_17] : memref<64x1xf32, #tpu.memory_space<vmem>>, vector<64x1xf32>
    %cst_18 = arith.constant dense<0.000000e+00> : vector<64x256xf32>
    %21 = tpu.matmul %19, %18, %cst_18 {dimension_numbers = #tpu.dot_dimension_numbers<[1], [0], [0], [1], [0, 0, 1, 1], [], []>} : vector<64x32xf32>, vector<32x256xf32>, vector<64x256xf32> -> vector<64x256xf32>
    %22 = vector.broadcast %20 : vector<64x1xf32> to vector<64x256xf32>
    %23 = arith.addf %21, %22 : vector<64x256xf32>
    %cst_19 = arith.constant 0.000000e+00 : f32
    %24 = vector.broadcast %cst_19 : f32 to vector<64x256xf32>
    %25 = arith.maximumf %23, %24 : vector<64x256xf32>
    %c0_20 = arith.constant 0 : index
    %c0_21 = arith.constant 0 : index
    %26 = vector.load %arg9[%c0_20, %c0_21] : memref<64x64xf32, #tpu.memory_space<vmem>>, vector<64x64xf32>
    %c0_22 = arith.constant 0 : index
    %c0_23 = arith.constant 0 : index
    %27 = vector.load %arg10[%c0_22, %c0_23] : memref<64x1xf32, #tpu.memory_space<vmem>>, vector<64x1xf32>
    %cst_24 = arith.constant dense<0.000000e+00> : vector<64x256xf32>
    %28 = tpu.matmul %26, %25, %cst_24 {dimension_numbers = #tpu.dot_dimension_numbers<[1], [0], [0], [1], [0, 0, 1, 1], [], []>} : vector<64x64xf32>, vector<64x256xf32>, vector<64x256xf32> -> vector<64x256xf32>
    %29 = vector.broadcast %27 : vector<64x1xf32> to vector<64x256xf32>
    %30 = arith.addf %28, %29 : vector<64x256xf32>
    %cst_25 = arith.constant 0.000000e+00 : f32
    %31 = vector.broadcast %cst_25 : f32 to vector<64x256xf32>
    %32 = arith.maximumf %30, %31 : vector<64x256xf32>
    %c0_26 = arith.constant 0 : index
    %c0_27 = arith.constant 0 : index
    %33 = vector.load %arg11[%c0_26, %c0_27] : memref<128x64xf32, #tpu.memory_space<vmem>>, vector<128x64xf32>
    %c0_28 = arith.constant 0 : index
    %c0_29 = arith.constant 0 : index
    %34 = vector.load %arg12[%c0_28, %c0_29] : memref<128x1xf32, #tpu.memory_space<vmem>>, vector<128x1xf32>
    %cst_30 = arith.constant dense<0.000000e+00> : vector<128x256xf32>
    %35 = tpu.matmul %33, %32, %cst_30 {dimension_numbers = #tpu.dot_dimension_numbers<[1], [0], [0], [1], [0, 0, 1, 1], [], []>} : vector<128x64xf32>, vector<64x256xf32>, vector<128x256xf32> -> vector<128x256xf32>
    %36 = vector.broadcast %34 : vector<128x1xf32> to vector<128x256xf32>
    %37 = arith.addf %35, %36 : vector<128x256xf32>
    %cst_31 = arith.constant 0.000000e+00 : f32
    %38 = vector.broadcast %cst_31 : f32 to vector<128x256xf32>
    %39 = arith.maximumf %37, %38 : vector<128x256xf32>
    %c0_32 = arith.constant 0 : index
    %c0_33 = arith.constant 0 : index
    %c0_34 = arith.constant 0 : index
    %40 = vector.load %arg13[%c0_32, %c0_33, %c0_34] : memref<1x128x1xf32, #tpu.memory_space<vmem>>, vector<1x128x1xf32>
    %41 = vector.shape_cast %40 : vector<1x128x1xf32> to vector<128x1xf32>
    %cst_35 = arith.constant dense<0xFF800000> : vector<128xf32>
    %42 = vector.multi_reduction <maximumf>, %39, %cst_35 [1] : vector<128x256xf32> to vector<128xf32>
    %43 = vector.shape_cast %42 : vector<128xf32> to vector<128x1xf32>
    %44 = arith.maximumf %41, %43 : vector<128x1xf32>
    %c0_36 = arith.constant 0 : index
    %c0_37 = arith.constant 0 : index
    %c0_38 = arith.constant 0 : index
    %45 = vector.load %arg13[%c0_36, %c0_37, %c0_38] : memref<1x128x1xf32, #tpu.memory_space<vmem>>, vector<1x128x1xf32>
    %46 = vector.shape_cast %45 : vector<1x128x1xf32> to vector<128x1xf32>
    %47 = vector.shape_cast %44 : vector<128x1xf32> to vector<1x128x1xf32>
    tpu.vector_store %arg13[%c0_36, %c0_37, %c0_38], %47 {strides = array<i32>} : memref<1x128x1xf32, #tpu.memory_space<vmem>>, vector<1x128x1xf32>,
    return
  }
  func.func @transform_0(%arg0: i32, %arg1: i32) -> (i32, i32, i32) {
    %c0_i32 = arith.constant 0 : i32
    %c0_i32_0 = arith.constant 0 : i32
    return %arg0, %c0_i32, %arg1 : i32, i32, i32
  }
  func.func @transform_1(%arg0: i32, %arg1: i32) -> (i32, i32) {
    %c0_i32 = arith.constant 0 : i32
    %c0_i32_0 = arith.constant 0 : i32
    %c0_i32_1 = arith.constant 0 : i32
    return %c0_i32, %c0_i32_0 : i32, i32
  }
  func.func @transform_2(%arg0: i32, %arg1: i32) -> (i32, i32) {
    %c0_i32 = arith.constant 0 : i32
    %c0_i32_0 = arith.constant 0 : i32
    %c0_i32_1 = arith.constant 0 : i32
    return %c0_i32, %c0_i32_0 : i32, i32
  }
  func.func @transform_3(%arg0: i32, %arg1: i32) -> (i32, i32) {
    %c0_i32 = arith.constant 0 : i32
    %c0_i32_0 = arith.constant 0 : i32
    %c0_i32_1 = arith.constant 0 : i32
    return %c0_i32, %c0_i32_0 : i32, i32
  }
  func.func @transform_4(%arg0: i32, %arg1: i32) -> (i32, i32) {
    %c0_i32 = arith.constant 0 : i32
    %c0_i32_0 = arith.constant 0 : i32
    %c0_i32_1 = arith.constant 0 : i32
    return %c0_i32, %c0_i32_0 : i32, i32
  }
  func.func @transform_5(%arg0: i32, %arg1: i32) -> (i32, i32) {
    %c0_i32 = arith.constant 0 : i32
    %c0_i32_0 = arith.constant 0 : i32
    %c0_i32_1 = arith.constant 0 : i32
    return %c0_i32, %c0_i32_0 : i32, i32
  }
  func.func @transform_6(%arg0: i32, %arg1: i32) -> (i32, i32) {
    %c0_i32 = arith.constant 0 : i32
    %c0_i32_0 = arith.constant 0 : i32
    %c0_i32_1 = arith.constant 0 : i32
    return %c0_i32, %c0_i32_0 : i32, i32
  }
  func.func @transform_7(%arg0: i32, %arg1: i32) -> (i32, i32) {
    %c0_i32 = arith.constant 0 : i32
    %c0_i32_0 = arith.constant 0 : i32
    %c0_i32_1 = arith.constant 0 : i32
    return %c0_i32, %c0_i32_0 : i32, i32
  }
  func.func @transform_8(%arg0: i32, %arg1: i32) -> (i32, i32) {
    %c0_i32 = arith.constant 0 : i32
    %c0_i32_0 = arith.constant 0 : i32
    %c0_i32_1 = arith.constant 0 : i32
    return %c0_i32, %c0_i32_0 : i32, i32
  }
  func.func @transform_9(%arg0: i32, %arg1: i32) -> (i32, i32) {
    %c0_i32 = arith.constant 0 : i32
    %c0_i32_0 = arith.constant 0 : i32
    %c0_i32_1 = arith.constant 0 : i32
    return %c0_i32, %c0_i32_0 : i32, i32
  }
  func.func @transform_10(%arg0: i32, %arg1: i32) -> (i32, i32) {
    %c0_i32 = arith.constant 0 : i32
    %c0_i32_0 = arith.constant 0 : i32
    %c0_i32_1 = arith.constant 0 : i32
    return %c0_i32, %c0_i32_0 : i32, i32
  }
  func.func @transform_11(%arg0: i32, %arg1: i32) -> (i32, i32, i32) {
    %c0_i32 = arith.constant 0 : i32
    %c0_i32_0 = arith.constant 0 : i32
    %c0_i32_1 = arith.constant 0 : i32
    return %arg0, %c0_i32, %c0_i32_0 : i32, i32, i32
  }
}

</mosaic_0001>

<llo_original>
// kernel: pointnet_feat.2
$region0: #{pointnet_feat.2}
  #allocation0 [shape = 'u32[]', space=smem, size = 0x4, offset = 0x4, fixed_abs, tag = 'smem constant byte address 0x4 - core index']
  #allocation1 [shape = 'u32[144,128]{1,0:T(1,128)}', space=vmem, size = 0x12000, scoped, tag = 'internal scratch']
  %s0 = inlined_call_operand.vmem [shape: f32[2,3,1024], index: 0, kind: input, shape index: {}]
  %s1 = inlined_call_operand.vmem [shape: f32[32,3], index: 1, kind: input, shape index: {}]
  %s2 = inlined_call_operand.vmem [shape: f32[32,1], index: 2, kind: input, shape index: {}]
  %s3 = inlined_call_operand.hbm [shape: f32[32,32], index: 3, kind: input, shape index: {}]
  %s4 = inlined_call_operand.vmem [shape: f32[32,1], index: 4, kind: input, shape index: {}]
  %s5 = inlined_call_operand.vmem [shape: f32[64,32], index: 5, kind: input, shape index: {}]
  %s6 = inlined_call_operand.vmem [shape: f32[64,1], index: 6, kind: input, shape index: {}]
  %s7 = inlined_call_operand.hbm [shape: f32[64,64], index: 7, kind: input, shape index: {}]
  %s8 = inlined_call_operand.vmem [shape: f32[64,1], index: 8, kind: input, shape index: {}]
  %s9 = inlined_call_operand.vmem [shape: f32[128,64], index: 9, kind: input, shape index: {}]
  %s10 = inlined_call_operand.vmem [shape: f32[128,1], index: 10, kind: input, shape index: {}]
  %s11 = inlined_call_operand.vmem [shape: f32[2,128,1], index: 11, kind: output, shape index: {}]
  %s12 = sld [smem:[#allocation0]]
  $region89: #{pointnet_feat.2} parent=0
    _
  %s14 = ssub.s32 1, %s12
  %s15 = scalar_select 0, %s14, %s12
  $region1: #{pointnet_feat.2} parent=0
    #allocation2 [shape = 'u8[16384]{0}', space=vmem, size = 0x4000, scoped, tag = 'input window, operand 3, single buffered']
    #allocation3 [shape = 's32[2]{0}', space=sflag, size = 0x8, scoped, tag = 'scoped memory for pointnet_feat.2']
    #allocation4 [shape = 'u8[32768]{0}', space=vmem, size = 0x8000, scoped, tag = 'input window, operand 7, single buffered']
    #allocation5 [shape = 's32[1]{0}', space=sflag, size = 0x4, scoped, tag = 'scoped memory for pointnet_feat.2']
    %16 = vsyncpa [#allocation3], 0
    %17 = vsyncpa [#allocation5], 0
    loop: start=0, step=1, limit=10
    $region2: #{pointnet_feat.2} parent=1 // loop_pre_header
      _
    $region3: #{pointnet_feat.2} parent=1 // loop_header
      %s19 = sphi 0, %s23
      %p20 = scmp.ge.s32.totalorder %s19, 10
      %s26 = sphi 0, %s38
      %s27 = sphi 0, %s34
      %s28 = sphi 0, %s26
      %s29 = sphi 0, %s27
      %s30 = sphi 0, %s28
      %s31 = sphi 0, %s29
      %s43 = sphi 0, %s45
      %s46 = sphi 0, %s43
      %s47 = sphi 0, %s46
      %s63 = sphi 0, %s47
      %s67 = sphi 0, %s67
      %s69 = sphi 0, %s67
      %s70 = sphi 0, %s69
      %s84 = sphi 0, %s70
      %s88 = sphi 0, %s88
      %s90 = sphi 0, %s88
      %s91 = sphi 0, %s90
      %s105 = sphi 0, %s91
      %s109 = sphi 0, %s109
      %s111 = sphi 0, %s109
      %s112 = sphi 0, %s111
      %s126 = sphi 0, %s112
      %s130 = sphi 0, %s130
      %s132 = sphi 0, %s130
      %s133 = sphi 0, %s132
      %s147 = sphi 0, %s133
      %s151 = sphi 0, %s151
      %s153 = sphi 0, %s151
      %s154 = sphi 0, %s153
      %s168 = sphi 0, %s154
      %s172 = sphi 0, %s172
      %s174 = sphi 0, %s172
      %s175 = sphi 0, %s174
      %s189 = sphi 0, %s175
      %s193 = sphi 0, %s193
      %s195 = sphi 0, %s193
      %s196 = sphi 0, %s195
      %s210 = sphi 0, %s196
      %s214 = sphi 0, %s214
      %s216 = sphi 0, %s214
      %s217 = sphi 0, %s216
      %s231 = sphi 0, %s217
      %s235 = sphi 0, %s235
      %s237 = sphi 0, %s235
      %s238 = sphi 0, %s237
      %s252 = sphi 0, %s238
      %s256 = sphi 0, %s256
      %s258 = sphi 0, %s256
      %s259 = sphi 0, %s258
      %s273 = sphi 0, %s259
      %s279 = sphi 0, %s281
      %s282 = sphi 0, %s279
      %s283 = sphi 0, %s282
      %s299 = sphi 0, %s283
    $region4: #{pointnet_feat.2} parent=1 // loop_header_branch
      %22 = sbr.rel (%p20) target = $region8
    $region5: #{pointnet_feat.2} parent=1 // loop_body
      %s24 = ssub.s32 %s19, 1
      %s25 = ssub.s32 %s19, 2
      %s32 = sadd.s32 1, %s27
      %p33 = scmp.ge.s32.totalorder %s32, 4
      %s34 = scalar_select %p33, 0, %s32
      %s35 = sadd.s32 1, %s26
      %s36 = scalar_select %p33, %s35, %s26
      %p37 = scmp.ge.s32.totalorder %s36, 2
      %s38 = scalar_select %p37, 0, %s36
      %s39 = ssub.s32 %s26, %s38
      %s40 = ssub.s32 %s27, %s34
      %s41 = sor.u32 %s39, %s40
      %p42 = scmp.eq.s32.totalorder %s41, 0
      %s44 = sadd.s32 %s43, 1
      %s45 = scalar_select %p42, %s43, %s44
      %p48 = pneg %p42
      %p49 = scmp.eq.s32.totalorder %s19, 7
      %p50 = por %p48, %p49
      %p51 = scmp.ne.s32.totalorder %s43, %s46
      %p52 = scmp.eq.s32.totalorder %s19, 0
      %p53 = por %p51, %p52
      %p54 = scmp.ne.s32.totalorder %s43, %s46
      %p55 = scmp.eq.s32.totalorder %s24, 7
      %p56 = por %p54, %p55
      %p57 = scmp.ne.s32.totalorder %s46, %s47
      %p58 = scmp.eq.s32.totalorder %s24, 0
      %p59 = por %p57, %p58
      %p60 = scmp.ne.s32.totalorder %s46, %s47
      %p61 = scmp.eq.s32.totalorder %s25, 7
      %p62 = por %p60, %p61
      %p64 = scmp.ne.s32.totalorder %s47, %s63
      %p65 = scmp.eq.s32.totalorder %s25, 0
      %p66 = por %p64, %p65
      %s68 = sadd.s32 %s67, 1
      %p71 = scmp.eq.s32.totalorder %s19, 7
      %p72 = scmp.ne.s32.totalorder %s67, %s69
      %p73 = scmp.eq.s32.totalorder %s19, 0
      %p74 = por %p72, %p73
      %p75 = scmp.ne.s32.totalorder %s67, %s69
      %p76 = scmp.eq.s32.totalorder %s24, 7
      %p77 = por %p75, %p76
      %p78 = scmp.ne.s32.totalorder %s69, %s70
      %p79 = scmp.eq.s32.totalorder %s24, 0
      %p80 = por %p78, %p79
      %p81 = scmp.ne.s32.totalorder %s69, %s70
      %p82 = scmp.eq.s32.totalorder %s25, 7
      %p83 = por %p81, %p82
      %p85 = scmp.ne.s32.totalorder %s70, %s84
      %p86 = scmp.eq.s32.totalorder %s25, 0
      %p87 = por %p85, %p86
      %s89 = sadd.s32 %s88, 1
      %p92 = scmp.eq.s32.totalorder %s19, 7
      %p93 = scmp.ne.s32.totalorder %s88, %s90
      %p94 = scmp.eq.s32.totalorder %s19, 0
      %p95 = por %p93, %p94
      %p96 = scmp.ne.s32.totalorder %s88, %s90
      %p97 = scmp.eq.s32.totalorder %s24, 7
      %p98 = por %p96, %p97
      %p99 = scmp.ne.s32.totalorder %s90, %s91
      %p100 = scmp.eq.s32.totalorder %s24, 0
      %p101 = por %p99, %p100
      %p102 = scmp.ne.s32.totalorder %s90, %s91
      %p103 = scmp.eq.s32.totalorder %s25, 7
      %p104 = por %p102, %p103
      %p106 = scmp.ne.s32.totalorder %s91, %s105
      %p107 = scmp.eq.s32.totalorder %s25, 0
      %p108 = por %p106, %p107
      %s110 = sadd.s32 %s109, 1
      %p113 = scmp.eq.s32.totalorder %s19, 7
      %p114 = scmp.ne.s32.totalorder %s109, %s111
      %p115 = scmp.eq.s32.totalorder %s19, 0
      %p116 = por %p114, %p115
      %p117 = scmp.ne.s32.totalorder %s109, %s111
      %p118 = scmp.eq.s32.totalorder %s24, 7
      %p119 = por %p117, %p118
      %p120 = scmp.ne.s32.totalorder %s111, %s112
      %p121 = scmp.eq.s32.totalorder %s24, 0
      %p122 = por %p120, %p121
      %p123 = scmp.ne.s32.totalorder %s111, %s112
      %p124 = scmp.eq.s32.totalorder %s25, 7
      %p125 = por %p123, %p124
      %p127 = scmp.ne.s32.totalorder %s112, %s126
      %p128 = scmp.eq.s32.totalorder %s25, 0
      %p129 = por %p127, %p128
      %s131 = sadd.s32 %s130, 1
      %p134 = scmp.eq.s32.totalorder %s19, 7
      %p135 = scmp.ne.s32.totalorder %s130, %s132
      %p136 = scmp.eq.s32.totalorder %s19, 0
      %p137 = por %p135, %p136
      %p138 = scmp.ne.s32.totalorder %s130, %s132
      %p139 = scmp.eq.s32.totalorder %s24, 7
      %p140 = por %p138, %p139
      %p141 = scmp.ne.s32.totalorder %s132, %s133
      %p142 = scmp.eq.s32.totalorder %s24, 0
      %p143 = por %p141, %p142
      %p144 = scmp.ne.s32.totalorder %s132, %s133
      %p145 = scmp.eq.s32.totalorder %s25, 7
      %p146 = por %p144, %p145
      %p148 = scmp.ne.s32.totalorder %s133, %s147
      %p149 = scmp.eq.s32.totalorder %s25, 0
      %p150 = por %p148, %p149
      %s152 = sadd.s32 %s151, 1
      %p155 = scmp.eq.s32.totalorder %s19, 7
      %p156 = scmp.ne.s32.totalorder %s151, %s153
      %p157 = scmp.eq.s32.totalorder %s19, 0
      %p158 = por %p156, %p157
      %p159 = scmp.ne.s32.totalorder %s151, %s153
      %p160 = scmp.eq.s32.totalorder %s24, 7
      %p161 = por %p159, %p160
      %p162 = scmp.ne.s32.totalorder %s153, %s154
      %p163 = scmp.eq.s32.totalorder %s24, 0
      %p164 = por %p162, %p163
      %p165 = scmp.ne.s32.totalorder %s153, %s154
      %p166 = scmp.eq.s32.totalorder %s25, 7
      %p167 = por %p165, %p166
      %p169 = scmp.ne.s32.totalorder %s154, %s168
      %p170 = scmp.eq.s32.totalorder %s25, 0
      %p171 = por %p169, %p170
      %s173 = sadd.s32 %s172, 1
      %p176 = scmp.eq.s32.totalorder %s19, 7
      %p177 = scmp.ne.s32.totalorder %s172, %s174
      %p178 = scmp.eq.s32.totalorder %s19, 0
      %p179 = por %p177, %p178
      %p180 = scmp.ne.s32.totalorder %s172, %s174
      %p181 = scmp.eq.s32.totalorder %s24, 7
      %p182 = por %p180, %p181
      %p183 = scmp.ne.s32.totalorder %s174, %s175
      %p184 = scmp.eq.s32.totalorder %s24, 0
      %p185 = por %p183, %p184
      %p186 = scmp.ne.s32.totalorder %s174, %s175
      %p187 = scmp.eq.s32.totalorder %s25, 7
      %p188 = por %p186, %p187
      %p190 = scmp.ne.s32.totalorder %s175, %s189
      %p191 = scmp.eq.s32.totalorder %s25, 0
      %p192 = por %p190, %p191
      %s194 = sadd.s32 %s193, 1
      %p197 = scmp.eq.s32.totalorder %s19, 7
      %p198 = scmp.ne.s32.totalorder %s193, %s195
      %p199 = scmp.eq.s32.totalorder %s19, 0
      %p200 = por %p198, %p199
      %p201 = scmp.ne.s32.totalorder %s193, %s195
      %p202 = scmp.eq.s32.totalorder %s24, 7
      %p203 = por %p201, %p202
      %p204 = scmp.ne.s32.totalorder %s195, %s196
      %p205 = scmp.eq.s32.totalorder %s24, 0
      %p206 = por %p204, %p205
      %p207 = scmp.ne.s32.totalorder %s195, %s196
      %p208 = scmp.eq.s32.totalorder %s25, 7
      %p209 = por %p207, %p208
      %p211 = scmp.ne.s32.totalorder %s196, %s210
      %p212 = scmp.eq.s32.totalorder %s25, 0
      %p213 = por %p211, %p212
      %s215 = sadd.s32 %s214, 1
      %p218 = scmp.eq.s32.totalorder %s19, 7
      %p219 = scmp.ne.s32.totalorder %s214, %s216
      %p220 = scmp.eq.s32.totalorder %s19, 0
      %p221 = por %p219, %p220
      %p222 = scmp.ne.s32.totalorder %s214, %s216
      %p223 = scmp.eq.s32.totalorder %s24, 7
      %p224 = por %p222, %p223
      %p225 = scmp.ne.s32.totalorder %s216, %s217
      %p226 = scmp.eq.s32.totalorder %s24, 0
      %p227 = por %p225, %p226
      %p228 = scmp.ne.s32.totalorder %s216, %s217
      %p229 = scmp.eq.s32.totalorder %s25, 7
      %p230 = por %p228, %p229
      %p232 = scmp.ne.s32.totalorder %s217, %s231
      %p233 = scmp.eq.s32.totalorder %s25, 0
      %p234 = por %p232, %p233
      %s236 = sadd.s32 %s235, 1
      %p239 = scmp.eq.s32.totalorder %s19, 7
      %p240 = scmp.ne.s32.totalorder %s235, %s237
      %p241 = scmp.eq.s32.totalorder %s19, 0
      %p242 = por %p240, %p241
      %p243 = scmp.ne.s32.totalorder %s235, %s237
      %p244 = scmp.eq.s32.totalorder %s24, 7
      %p245 = por %p243, %p244
      %p246 = scmp.ne.s32.totalorder %s237, %s238
      %p247 = scmp.eq.s32.totalorder %s24, 0
      %p248 = por %p246, %p247
      %p249 = scmp.ne.s32.totalorder %s237, %s238
      %p250 = scmp.eq.s32.totalorder %s25, 7
      %p251 = por %p249, %p250
      %p253 = scmp.ne.s32.totalorder %s238, %s252
      %p254 = scmp.eq.s32.totalorder %s25, 0
      %p255 = por %p253, %p254
      %s257 = sadd.s32 %s256, 1
      %p260 = scmp.eq.s32.totalorder %s19, 7
      %p261 = scmp.ne.s32.totalorder %s256, %s258
      %p262 = scmp.eq.s32.totalorder %s19, 0
      %p263 = por %p261, %p262
      %p264 = scmp.ne.s32.totalorder %s256, %s258
      %p265 = scmp.eq.s32.totalorder %s24, 7
      %p266 = por %p264, %p265
      %p267 = scmp.ne.s32.totalorder %s258, %s259
      %p268 = scmp.eq.s32.totalorder %s24, 0
      %p269 = por %p267, %p268
      %p270 = scmp.ne.s32.totalorder %s258, %s259
      %p271 = scmp.eq.s32.totalorder %s25, 7
      %p272 = por %p270, %p271
      %p274 = scmp.ne.s32.totalorder %s259, %s273
      %p275 = scmp.eq.s32.totalorder %s25, 0
      %p276 = por %p274, %p275
      %s277 = ssub.s32 %s26, %s38
      %p278 = scmp.eq.s32.totalorder %s277, 0
      %s280 = sadd.s32 %s279, 1
      %s281 = scalar_select %p278, %s279, %s280
      %p284 = pneg %p278
      %p285 = scmp.eq.s32.totalorder %s19, 7
      %p286 = por %p284, %p285
      %p287 = scmp.ne.s32.totalorder %s279, %s282
      %p288 = scmp.eq.s32.totalorder %s19, 0
      %p289 = por %p287, %p288
      %p290 = scmp.ne.s32.totalorder %s279, %s282
      %p291 = scmp.eq.s32.totalorder %s24, 7
      %p292 = por %p290, %p291
      %p293 = scmp.ne.s32.totalorder %s282, %s283
      %p294 = scmp.eq.s32.totalorder %s24, 0
      %p295 = por %p293, %p294
      %p296 = scmp.ne.s32.totalorder %s282, %s283
      %p297 = scmp.eq.s32.totalorder %s25, 7
      %p298 = por %p296, %p297
      %p300 = scmp.ne.s32.totalorder %s283, %s299
      %p301 = scmp.eq.s32.totalorder %s25, 0
      %p302 = por %p300, %p301
      %p303 = scmp.le.s32.totalorder 1, %s19
      %p304 = scmp.lt.s32.totalorder %s19, 9
      %p305 = pnand %p303, %p304
      %p306 = pneg %p305
      // Predicated region
      $region9: #{pointnet_feat.2} parent=5 // pred_check
        _
      $region10: #{pointnet_feat.2} parent=5 // pred_check_branch
        %308 = sbr.rel (%p305) target = $region12
      $region11: #{pointnet_feat.2} parent=5 // pred_region
        %s309 = ssub.s32 %s19, 1
        // Predicated region
        $region13: #{pointnet_feat.2} parent=11 // pred_check
          %p310 = pneg %p80
        $region14: #{pointnet_feat.2} parent=11 // pred_check_branch
          %312 = sbr.rel (%p310) target = $region16
        $region15: #{pointnet_feat.2} parent=11 // pred_region
          _
        $region16: #{pointnet_feat.2} parent=11 // pred_fallthru
          _
        // Predicated region
        $region17: #{pointnet_feat.2} parent=11 // pred_check
          %p313 = pneg %p101
        $region18: #{pointnet_feat.2} parent=11 // pred_check_branch
          %315 = sbr.rel (%p313) target = $region20
        $region19: #{pointnet_feat.2} parent=11 // pred_region
          _
        $region20: #{pointnet_feat.2} parent=11 // pred_fallthru
          _
        // Predicated region
        $region21: #{pointnet_feat.2} parent=11 // pred_check
          %p316 = pneg %p122
        $region22: #{pointnet_feat.2} parent=11 // pred_check_branch
          %318 = sbr.rel (%p316) target = $region24
        $region23: #{pointnet_feat.2} parent=11 // pred_region
          %s320 = ssub.s32 512, 512
          %321 = vsyncadd [#allocation3], %s320
          %s322 = sshll.u32 [#allocation2], 4
          %s323 = int_to_ptr.vmem [resolvable:$true] %s322
          %328 = dma.hbm_to_vmem [thread:$0]  %s3, 512, %s323, [#allocation3], 128, 128, 8
        $region24: #{pointnet_feat.2} parent=11 // pred_fallthru
          _
        // Predicated region
        $region25: #{pointnet_feat.2} parent=11 // pred_check
          %p329 = pneg %p143
        $region26: #{pointnet_feat.2} parent=11 // pred_check_branch
          %331 = sbr.rel (%p329) target = $region28
        $region27: #{pointnet_feat.2} parent=11 // pred_region
          _
        $region28: #{pointnet_feat.2} parent=11 // pred_fallthru
          _
        // Predicated region
        $region29: #{pointnet_feat.2} parent=11 // pred_check
          %p332 = pneg %p164
        $region30: #{pointnet_feat.2} parent=11 // pred_check_branch
          %334 = sbr.rel (%p332) target = $region32
        $region31: #{pointnet_feat.2} parent=11 // pred_region
          _
        $region32: #{pointnet_feat.2} parent=11 // pred_fallthru
          _
        // Predicated region
        $region33: #{pointnet_feat.2} parent=11 // pred_check
          %p335 = pneg %p185
        $region34: #{pointnet_feat.2} parent=11 // pred_check_branch
          %337 = sbr.rel (%p335) target = $region36
        $region35: #{pointnet_feat.2} parent=11 // pred_region
          _
        $region36: #{pointnet_feat.2} parent=11 // pred_fallthru
          _
        // Predicated region
        $region37: #{pointnet_feat.2} parent=11 // pred_check
          %p338 = pneg %p206
        $region38: #{pointnet_feat.2} parent=11 // pred_check_branch
          %340 = sbr.rel (%p338) target = $region40
        $region39: #{pointnet_feat.2} parent=11 // pred_region
          %s342 = ssub.s32 1024, 1024
          %343 = vsyncadd [#allocation5], %s342
          %s344 = sshll.u32 [#allocation4], 4
          %s345 = int_to_ptr.vmem [resolvable:$true] %s344
          %350 = dma.hbm_to_vmem [thread:$0]  %s7, 1024, %s345, [#allocation5], 128, 128, 8
        $region40: #{pointnet_feat.2} parent=11 // pred_fallthru
          _
        // Predicated region
        $region41: #{pointnet_feat.2} parent=11 // pred_check
          %p351 = pneg %p227
        $region42: #{pointnet_feat.2} parent=11 // pred_check_branch
          %353 = sbr.rel (%p351) target = $region44
        $region43: #{pointnet_feat.2} parent=11 // pred_region
          _
        $region44: #{pointnet_feat.2} parent=11 // pred_fallthru
          _
        // Predicated region
        $region45: #{pointnet_feat.2} parent=11 // pred_check
          %p354 = pneg %p248
        $region46: #{pointnet_feat.2} parent=11 // pred_check_branch
          %356 = sbr.rel (%p354) target = $region48
        $region47: #{pointnet_feat.2} parent=11 // pred_region
          _
        $region48: #{pointnet_feat.2} parent=11 // pred_fallthru
          _
        // Predicated region
        $region49: #{pointnet_feat.2} parent=11 // pred_check
          %p357 = pneg %p269
        $region50: #{pointnet_feat.2} parent=11 // pred_check_branch
          %359 = sbr.rel (%p357) target = $region52
        $region51: #{pointnet_feat.2} parent=11 // pred_region
          _
        $region52: #{pointnet_feat.2} parent=11 // pred_fallthru
          _
      $region12: #{pointnet_feat.2} parent=5 // pred_fallthru
        _
      %p360 = scmp.lt.s32.totalorder %s19, 8
      // Predicated region
      $region53: #{pointnet_feat.2} parent=5 // pred_check
        %p361 = pneg %p360
      $region54: #{pointnet_feat.2} parent=5 // pred_check_branch
        %363 = sbr.rel (%p361) target = $region56
      $region55: #{pointnet_feat.2} parent=5 // pred_region
        // Predicated region
        $region57: #{pointnet_feat.2} parent=55 // pred_check
          %p364 = pneg %p53
        $region58: #{pointnet_feat.2} parent=55 // pred_check_branch
          %366 = sbr.rel (%p364) target = $region60
        $region59: #{pointnet_feat.2} parent=55 // pred_region
          %s367 = smul.u32 2, %s27
          %p368 = scmp.lt.s32.totalorder %s26, 1
          %s369 = scalar_select %p368, %s26, 1
          %p370 = scmp.lt.s32.totalorder %s367, 7
          %s371 = scalar_select %p370, %s367, 7
          %s372 = smul.addr %s369, 8
          %s373 = sadd.s32 %s371, %s372
          %s374 = smul.addr %s373, 4
          %s375 = scalar_lea.vmem %s0, %s374
          %s376 = smul.u32 2, %s27
        $region60: #{pointnet_feat.2} parent=55 // pred_fallthru
          _
      $region56: #{pointnet_feat.2} parent=5 // pred_fallthru
        _
      %p377 = scmp.le.s32.totalorder 1, %s19
      %p378 = scmp.lt.s32.totalorder %s19, 9
      %p379 = pnand %p377, %p378
      %p380 = pneg %p379
      // Predicated region
      $region61: #{pointnet_feat.2} parent=5 // pred_check
        _
      $region62: #{pointnet_feat.2} parent=5 // pred_check_branch
        %382 = sbr.rel (%p379) target = $region64
      $region63: #{pointnet_feat.2} parent=5 // pred_region
        %s383 = ssub.s32 %s19, 1
        // Predicated region
        $region65: #{pointnet_feat.2} parent=63 // pred_check
          %p384 = pneg %p122
        $region66: #{pointnet_feat.2} parent=63 // pred_check_branch
          %386 = sbr.rel (%p384) target = $region68
        $region67: #{pointnet_feat.2} parent=63 // pred_region
          %387 = dma.done [#allocation3], 512
        $region68: #{pointnet_feat.2} parent=63 // pred_fallthru
          _
        // Predicated region
        $region69: #{pointnet_feat.2} parent=63 // pred_check
          %p388 = pneg %p206
        $region70: #{pointnet_feat.2} parent=63 // pred_check_branch
          %390 = sbr.rel (%p388) target = $region72
        $region71: #{pointnet_feat.2} parent=63 // pred_region
          %391 = dma.done [#allocation5], 1024
        $region72: #{pointnet_feat.2} parent=63 // pred_fallthru
          _
        %s392 = smul.u32 2, %s29
        %p393 = scmp.lt.s32.totalorder %s28, 1
        %s394 = scalar_select %p393, %s28, 1
        %p395 = scmp.lt.s32.totalorder %s392, 7
        %s396 = scalar_select %p395, %s392, 7
        %s397 = smul.addr %s394, 8
        %s398 = sadd.s32 %s396, %s397
        %s399 = smul.addr %s398, 4
        %s400 = scalar_lea.vmem %s0, %s399
        %p401 = pneg %p59
        %p402 = pneg %p56
        %p403 = pneg %p80
        %p404 = pneg %p77
        %p405 = pneg %p101
        %p406 = pneg %p98
        %p407 = pneg %p122
        %p408 = pneg %p119
        %p409 = pneg %p143
        %p410 = pneg %p140
        %p411 = pneg %p164
        %p412 = pneg %p161
        %p413 = pneg %p185
        %p414 = pneg %p182
        %p415 = pneg %p206
        %p416 = pneg %p203
        %p417 = pneg %p227
        %p418 = pneg %p224
        %p419 = pneg %p248
        %p420 = pneg %p245
        %p421 = pneg %p269
        %p422 = pneg %p266
        %p423 = pneg %p295
        %p424 = pneg %p292
        %p425 = scmp.lt.s32.totalorder %s28, 1
        %s426 = scalar_select %p425, %s28, 1
        %s427 = smul.addr %s426, 16
        %s428 = smul.addr %s427, 8
        %s429 = scalar_lea.vmem %s11, %s428
        %s430 = smul.u32 2, %s29
        %p431 = scmp.lt.s32.totalorder %s28, 1
        %s432 = scalar_select %p431, %s28, 1
        %p433 = scmp.lt.s32.totalorder %s430, 7
        %s434 = scalar_select %p433, %s430, 7
        %s435 = smul.addr %s432, 8
        %s436 = sadd.s32 %s434, %s435
        %s437 = smul.addr %s436, 4
        %s438 = scalar_lea.vmem %s0, %s437
        %s439 = smul.u32 2, %s29
        %p440 = scmp.lt.s32.totalorder %s28, 1
        %s441 = scalar_select %p440, %s28, 1
        %s442 = smul.addr %s441, 16
        %s443 = smul.addr %s442, 8
        %s444 = scalar_lea.vmem %s11, %s443
        %p445 = scmp.eq.s32.totalorder %s29, 0
        // Predicated region
        $region73: #{pointnet_feat.2} parent=63 // pred_check
          %p446 = pneg %p445
        $region74: #{pointnet_feat.2} parent=63 // pred_check_branch
          %448 = sbr.rel (%p446) target = $region76
        $region75: #{pointnet_feat.2} parent=63 // pred_region
          %vm449 = vcmask 7168
          %450 = vst.msk [vmem:[%s444] sm:$0xff] %vm449, -inf
          %451 = vst.msk [vmem:[%s444 + $0x8] sm:$0xff] %vm449, -inf
          %452 = vst.msk [vmem:[%s444 + $0x10] sm:$0xff] %vm449, -inf
          %453 = vst.msk [vmem:[%s444 + $0x18] sm:$0xff] %vm449, -inf
          %454 = vst.msk [vmem:[%s444 + $0x20] sm:$0xff] %vm449, -inf
          %455 = vst.msk [vmem:[%s444 + $0x28] sm:$0xff] %vm449, -inf
          %456 = vst.msk [vmem:[%s444 + $0x30] sm:$0xff] %vm449, -inf
          %457 = vst.msk [vmem:[%s444 + $0x38] sm:$0xff] %vm449, -inf
          %458 = vst.msk [vmem:[%s444 + $0x40] sm:$0xff] %vm449, -inf
          %459 = vst.msk [vmem:[%s444 + $0x48] sm:$0xff] %vm449, -inf
          %460 = vst.msk [vmem:[%s444 + $0x50] sm:$0xff] %vm449, -inf
          %461 = vst.msk [vmem:[%s444 + $0x58] sm:$0xff] %vm449, -inf
          %462 = vst.msk [vmem:[%s444 + $0x60] sm:$0xff] %vm449, -inf
          %463 = vst.msk [vmem:[%s444 + $0x68] sm:$0xff] %vm449, -inf
          %464 = vst.msk [vmem:[%s444 + $0x70] sm:$0xff] %vm449, -inf
          %465 = vst.msk [vmem:[%s444 + $0x78] sm:$0xff] %vm449, -inf
        $region76: #{pointnet_feat.2} parent=63 // pred_fallthru
          _
        %v466 = vld [vmem:[%s438] sm:$0x77]
        %v467 = vld [vmem:[%s1] sm:$0xff]
        %v468 = vld [vmem:[%s1 + $0x8] sm:$0xff]
        %v469 = vld [vmem:[%s1 + $0x10] sm:$0xff]
        %v470 = vld [vmem:[%s1 + $0x18] sm:$0xff]
        %v471 = vld [vmem:[%s2] sm:$0xff]
        %v472 = vld [vmem:[%s2 + $0x8] sm:$0xff]
        %v473 = vld [vmem:[%s2 + $0x10] sm:$0xff]
        %v474 = vld [vmem:[%s2 + $0x18] sm:$0xff]
        %476 = vset.pattern.permute.xlu0 0
        %477 = vperm.xlu0 %476, %v471
        %v478 = vpop.permute.xlu0 %477
        %481 = vset.pattern.permute.xlu0 0
        %482 = vperm.xlu0 %481, %v472
        %v483 = vpop.permute.xlu0 %482
        %486 = vset.pattern.permute.xlu0 0
        %487 = vperm.xlu0 %486, %v473
        %v488 = vpop.permute.xlu0 %487
        %491 = vset.pattern.permute.xlu0 0
        %492 = vperm.xlu0 %491, %v474
        %v493 = vpop.permute.xlu0 %492
        %v496 = vcombine.high %v466, %v466
        %vm497 = vcmask 23552
        %v499 = vsel %vm497, %v467, 0
        %v502 = vsel %vm497, %v468, 0
        %v505 = vsel %vm497, %v469, 0
        %v508 = vsel %vm497, %v470, 0
        %vm510 = vcmask 1042432
        %v511 = vsel %vm510, %v466, 0
        %v513 = vsel %vm510, %v496, 0
        %515 = vmatprep.subr.mxu0 %v513
        %516 = vmatpush1.msra.mxu0 %v511
        %517 = vmatprep.subr.mxu0 0.0
        %518 = vmatpush1.msra.mxu0 0.0
        %519 = vmatprep.subr.mxu0 0.0
        %520 = vmatpush1.msra.mxu0 0.0
        %521 = vmatprep.subr.mxu0 0.0
        %522 = vmatpush1.msra.mxu0 0.0
        %523 = vmatprep.subr.mxu0 0.0
        %524 = vmatpush1.msra.mxu0 0.0
        %525 = vmatprep.subr.mxu0 0.0
        %526 = vmatpush1.msra.mxu0 0.0
        %527 = vmatprep.subr.mxu0 0.0
        %528 = vmatpush1.msra.mxu0 0.0
        %529 = vmatprep.subr.mxu0 0.0
        %530 = vmatpush1.msra.mxu0 0.0
        %531 = vmatprep.subr.mxu0 0.0
        %532 = vmatpush1.msra.mxu0 0.0
        %533 = vmatprep.subr.mxu0 0.0
        %534 = vmatpush1.msra.mxu0 0.0
        %535 = vmatprep.subr.mxu0 0.0
        %536 = vmatpush1.msra.mxu0 0.0
        %537 = vmatprep.subr.mxu0 0.0
        %538 = vmatpush1.msra.mxu0 0.0
        %539 = vmatprep.subr.mxu0 0.0
        %540 = vmatpush1.msra.mxu0 0.0
        %541 = vmatprep.subr.mxu0 0.0
        %542 = vmatpush1.msra.mxu0 0.0
        %543 = vmatprep.subr.mxu0 0.0
        %544 = vmatpush1.msra.mxu0 0.0
        %545 = vmatprep.subr.mxu0 0.0
        %546 = vmatpush1.msra.mxu0 0.0
        %547 = vmatprep.subr.mxu0 0.0
        %548 = vmatpush1.msra.mxu0 0.0
        %549 = vmatprep.subr.mxu0 0.0
        %550 = vmatpush1.msra.mxu0 0.0
        %551 = vmatprep.subr.mxu0 0.0
        %552 = vmatpush1.msra.mxu0 0.0
        %553 = vmatprep.subr.mxu0 0.0
        %554 = vmatpush1.msra.mxu0 0.0
        %555 = vmatprep.subr.mxu0 0.0
        %556 = vmatpush1.msra.mxu0 0.0
        %557 = vmatprep.subr.mxu0 0.0
        %558 = vmatpush1.msra.mxu0 0.0
        %559 = vmatprep.subr.mxu0 0.0
        %560 = vmatpush1.msra.mxu0 0.0
        %561 = vmatprep.subr.mxu0 0.0
        %562 = vmatpush1.msra.mxu0 0.0
        %563 = vmatprep.subr.mxu0 0.0
        %564 = vmatpush1.msra.mxu0 0.0
        %565 = vmatprep.subr.mxu0 0.0
        %566 = vmatpush1.msra.mxu0 0.0
        %567 = vmatprep.subr.mxu0 0.0
        %568 = vmatpush1.msra.mxu0 0.0
        %569 = vmatprep.subr.mxu0 0.0
        %570 = vmatpush1.msra.mxu0 0.0
        %571 = vmatprep.subr.mxu0 0.0
        %572 = vmatpush1.msra.mxu0 0.0
        %573 = vmatprep.subr.mxu0 0.0
        %574 = vmatpush1.msra.mxu0 0.0
        %575 = vmatprep.subr.mxu0 0.0
        %576 = vmatpush1.msra.mxu0 0.0
        %577 = vmatprep.subr.mxu0 0.0
        %578 = vmatpush1.msra.mxu0 0.0
        %579 = vmatprep.mubr.f32.mxu0 0.0
        %580 = vmatmul.mubr.f32.gmra.mrb[0].mxu0 %v499
        %v581 = vpop.f32.mrb[0].mxu0
        %v582 = vadd.f32 %v478, %v581
        %v583 = vpop.f32.mrb[0].mxu0
        %v584 = vadd.f32 %v478, %v583
        %585 = vmatprep.mubr.f32.mxu0 0.0
        %586 = vmatmul.mubr.f32.gmra.mrb[0].mxu0 %v502
        %v587 = vpop.f32.mrb[0].mxu0
        %v588 = vadd.f32 %v483, %v587
        %v589 = vpop.f32.mrb[0].mxu0
        %v590 = vadd.f32 %v483, %v589
        %591 = vmatprep.mubr.f32.mxu0 0.0
        %592 = vmatmul.mubr.f32.gmra.mrb[0].mxu0 %v505
        %v593 = vpop.f32.mrb[0].mxu0
        %v594 = vadd.f32 %v488, %v593
        %v595 = vpop.f32.mrb[0].mxu0
        %v596 = vadd.f32 %v488, %v595
        %597 = vmatprep.mubr.f32.mxu0 0.0
        %598 = vmatmul.mubr.f32.gmra.mrb[0].mxu0 %v508
        %v599 = vpop.f32.mrb[0].mxu0
        %v600 = vadd.f32 %v493, %v599
        %v601 = vpop.f32.mrb[0].mxu0
        %v602 = vadd.f32 %v493, %v601
        %603 = vdwg.mxu0
        %v604 = vmax.f32 %v582, 0.0
        %v605 = vmax.f32 %v584, 0.0
        %v606 = vmax.f32 %v588, 0.0
        %v607 = vmax.f32 %v590, 0.0
        %v608 = vmax.f32 %v594, 0.0
        %v609 = vmax.f32 %v596, 0.0
        %v610 = vmax.f32 %v600, 0.0
        %v611 = vmax.f32 %v602, 0.0
        %v612 = vld [vmem:[#allocation2] sm:$0xff]
        %v613 = vld [vmem:[#allocation2 + $0x8] sm:$0xff]
        %v614 = vld [vmem:[#allocation2 + $0x10] sm:$0xff]
        %v615 = vld [vmem:[#allocation2 + $0x18] sm:$0xff]
        %v616 = vld [vmem:[%s4] sm:$0xff]
        %v617 = vld [vmem:[%s4 + $0x8] sm:$0xff]
        %v618 = vld [vmem:[%s4 + $0x10] sm:$0xff]
        %v619 = vld [vmem:[%s4 + $0x18] sm:$0xff]
        %621 = vset.pattern.permute.xlu0 0
        %622 = vperm.xlu0 %621, %v616
        %v623 = vpop.permute.xlu0 %622
        %626 = vset.pattern.permute.xlu0 0
        %627 = vperm.xlu0 %626, %v617
        %v628 = vpop.permute.xlu0 %627
        %631 = vset.pattern.permute.xlu0 0
        %632 = vperm.xlu0 %631, %v618
        %v633 = vpop.permute.xlu0 %632
        %636 = vset.pattern.permute.xlu0 0
        %637 = vperm.xlu0 %636, %v619
        %v638 = vpop.permute.xlu0 %637
        %vm640 = vcmask 261120
        %v642 = vsel %vm640, %v612, 0
        %v645 = vsel %vm640, %v613, 0
        %v648 = vsel %vm640, %v614, 0
        %v651 = vsel %vm640, %v615, 0
        %653 = vmatprep.subr.mxu0 %v605
        %654 = vmatpush1.msra.mxu0 %v604
        %655 = vmatprep.subr.mxu0 %v607
        %656 = vmatpush1.msra.mxu0 %v606
        %657 = vmatprep.subr.mxu0 %v609
        %658 = vmatpush1.msra.mxu0 %v608
        %659 = vmatprep.subr.mxu0 %v611
        %660 = vmatpush1.msra.mxu0 %v610
        %661 = vmatprep.subr.mxu0 0.0
        %662 = vmatpush1.msra.mxu0 0.0
        %663 = vmatprep.subr.mxu0 0.0
        %664 = vmatpush1.msra.mxu0 0.0
        %665 = vmatprep.subr.mxu0 0.0
        %666 = vmatpush1.msra.mxu0 0.0
        %667 = vmatprep.subr.mxu0 0.0
        %668 = vmatpush1.msra.mxu0 0.0
        %669 = vmatprep.subr.mxu0 0.0
        %670 = vmatpush1.msra.mxu0 0.0
        %671 = vmatprep.subr.mxu0 0.0
        %672 = vmatpush1.msra.mxu0 0.0
        %673 = vmatprep.subr.mxu0 0.0
        %674 = vmatpush1.msra.mxu0 0.0
        %675 = vmatprep.subr.mxu0 0.0
        %676 = vmatpush1.msra.mxu0 0.0
        %677 = vmatprep.subr.mxu0 0.0
        %678 = vmatpush1.msra.mxu0 0.0
        %679 = vmatprep.subr.mxu0 0.0
        %680 = vmatpush1.msra.mxu0 0.0
        %681 = vmatprep.subr.mxu0 0.0
        %682 = vmatpush1.msra.mxu0 0.0
        %683 = vmatprep.subr.mxu0 0.0
        %684 = vmatpush1.msra.mxu0 0.0
        %685 = vmatprep.subr.mxu0 0.0
        %686 = vmatpush1.msra.mxu0 0.0
        %687 = vmatprep.subr.mxu0 0.0
        %688 = vmatpush1.msra.mxu0 0.0
        %689 = vmatprep.subr.mxu0 0.0
        %690 = vmatpush1.msra.mxu0 0.0
        %691 = vmatprep.subr.mxu0 0.0
        %692 = vmatpush1.msra.mxu0 0.0
        %693 = vmatprep.subr.mxu0 0.0
        %694 = vmatpush1.msra.mxu0 0.0
        %695 = vmatprep.subr.mxu0 0.0
        %696 = vmatpush1.msra.mxu0 0.0
        %697 = vmatprep.subr.mxu0 0.0
        %698 = vmatpush1.msra.mxu0 0.0
        %699 = vmatprep.subr.mxu0 0.0
        %700 = vmatpush1.msra.mxu0 0.0
        %701 = vmatprep.subr.mxu0 0.0
        %702 = vmatpush1.msra.mxu0 0.0
        %703 = vmatprep.subr.mxu0 0.0
        %704 = vmatpush1.msra.mxu0 0.0
        %705 = vmatprep.subr.mxu0 0.0
        %706 = vmatpush1.msra.mxu0 0.0
        %707 = vmatprep.subr.mxu0 0.0
        %708 = vmatpush1.msra.mxu0 0.0
        %709 = vmatprep.subr.mxu0 0.0
        %710 = vmatpush1.msra.mxu0 0.0
        %711 = vmatprep.subr.mxu0 0.0
        %712 = vmatpush1.msra.mxu0 0.0
        %713 = vmatprep.subr.mxu0 0.0
        %714 = vmatpush1.msra.mxu0 0.0
        %715 = vmatprep.subr.mxu0 0.0
        %716 = vmatpush1.msra.mxu0 0.0
        %717 = vmatprep.mubr.f32.mxu0 0.0
        %718 = vmatmul.mubr.f32.gmra.mrb[0].mxu0 %v642
        %v719 = vpop.f32.mrb[0].mxu0
        %v720 = vadd.f32 %v623, %v719
        %v721 = vpop.f32.mrb[0].mxu0
        %v722 = vadd.f32 %v623, %v721
        %723 = vmatprep.mubr.f32.mxu0 0.0
        %724 = vmatmul.mubr.f32.gmra.mrb[0].mxu0 %v645
        %v725 = vpop.f32.mrb[0].mxu0
        %v726 = vadd.f32 %v628, %v725
        %v727 = vpop.f32.mrb[0].mxu0
        %v728 = vadd.f32 %v628, %v727
        %729 = vmatprep.mubr.f32.mxu0 0.0
        %730 = vmatmul.mubr.f32.gmra.mrb[0].mxu0 %v648
        %v731 = vpop.f32.mrb[0].mxu0
        %v732 = vadd.f32 %v633, %v731
        %v733 = vpop.f32.mrb[0].mxu0
        %v734 = vadd.f32 %v633, %v733
        %735 = vmatprep.mubr.f32.mxu0 0.0
        %736 = vmatmul.mubr.f32.gmra.mrb[0].mxu0 %v651
        %v737 = vpop.f32.mrb[0].mxu0
        %v738 = vadd.f32 %v638, %v737
        %v739 = vpop.f32.mrb[0].mxu0
        %v740 = vadd.f32 %v638, %v739
        %741 = vdwg.mxu0
        %v742 = vmax.f32 %v720, 0.0
        %v743 = vmax.f32 %v722, 0.0
        %v744 = vmax.f32 %v726, 0.0
        %v745 = vmax.f32 %v728, 0.0
        %v746 = vmax.f32 %v732, 0.0
        %v747 = vmax.f32 %v734, 0.0
        %v748 = vmax.f32 %v738, 0.0
        %v749 = vmax.f32 %v740, 0.0
        %v750 = vld [vmem:[%s5] sm:$0xff]
        %v751 = vld [vmem:[%s5 + $0x8] sm:$0xff]
        %v752 = vld [vmem:[%s5 + $0x10] sm:$0xff]
        %v753 = vld [vmem:[%s5 + $0x18] sm:$0xff]
        %v754 = vld [vmem:[%s5 + $0x20] sm:$0xff]
        %v755 = vld [vmem:[%s5 + $0x28] sm:$0xff]
        %v756 = vld [vmem:[%s5 + $0x30] sm:$0xff]
        %v757 = vld [vmem:[%s5 + $0x38] sm:$0xff]
        %v758 = vld [vmem:[%s6] sm:$0xff]
        %v759 = vld [vmem:[%s6 + $0x8] sm:$0xff]
        %v760 = vld [vmem:[%s6 + $0x10] sm:$0xff]
        %v761 = vld [vmem:[%s6 + $0x18] sm:$0xff]
        %v762 = vld [vmem:[%s6 + $0x20] sm:$0xff]
        %v763 = vld [vmem:[%s6 + $0x28] sm:$0xff]
        %v764 = vld [vmem:[%s6 + $0x30] sm:$0xff]
        %v765 = vld [vmem:[%s6 + $0x38] sm:$0xff]
        %767 = vset.pattern.permute.xlu0 0
        %768 = vperm.xlu0 %767, %v758
        %v769 = vpop.permute.xlu0 %768
        %772 = vset.pattern.permute.xlu0 0
        %773 = vperm.xlu0 %772, %v759
        %v774 = vpop.permute.xlu0 %773
        %777 = vset.pattern.permute.xlu0 0
        %778 = vperm.xlu0 %777, %v760
        %v779 = vpop.permute.xlu0 %778
        %782 = vset.pattern.permute.xlu0 0
        %783 = vperm.xlu0 %782, %v761
        %v784 = vpop.permute.xlu0 %783
        %787 = vset.pattern.permute.xlu0 0
        %788 = vperm.xlu0 %787, %v762
        %v789 = vpop.permute.xlu0 %788
        %792 = vset.pattern.permute.xlu0 0
        %793 = vperm.xlu0 %792, %v763
        %v794 = vpop.permute.xlu0 %793
        %797 = vset.pattern.permute.xlu0 0
        %798 = vperm.xlu0 %797, %v764
        %v799 = vpop.permute.xlu0 %798
        %802 = vset.pattern.permute.xlu0 0
        %803 = vperm.xlu0 %802, %v765
        %v804 = vpop.permute.xlu0 %803
        %v807 = vsel %vm640, %v750, 0
        %v810 = vsel %vm640, %v751, 0
        %v813 = vsel %vm640, %v752, 0
        %v816 = vsel %vm640, %v753, 0
        %v819 = vsel %vm640, %v754, 0
        %v822 = vsel %vm640, %v755, 0
        %v825 = vsel %vm640, %v756, 0
        %v828 = vsel %vm640, %v757, 0
        %830 = vmatprep.subr.mxu0 %v743
        %831 = vmatpush1.msra.mxu0 %v742
        %832 = vmatprep.subr.mxu0 %v745
        %833 = vmatpush1.msra.mxu0 %v744
        %834 = vmatprep.subr.mxu0 %v747
        %835 = vmatpush1.msra.mxu0 %v746
        %836 = vmatprep.subr.mxu0 %v749
        %837 = vmatpush1.msra.mxu0 %v748
        %838 = vmatprep.subr.mxu0 0.0
        %839 = vmatpush1.msra.mxu0 0.0
        %840 = vmatprep.subr.mxu0 0.0
        %841 = vmatpush1.msra.mxu0 0.0
        %842 = vmatprep.subr.mxu0 0.0
        %843 = vmatpush1.msra.mxu0 0.0
        %844 = vmatprep.subr.mxu0 0.0
        %845 = vmatpush1.msra.mxu0 0.0
        %846 = vmatprep.subr.mxu0 0.0
        %847 = vmatpush1.msra.mxu0 0.0
        %848 = vmatprep.subr.mxu0 0.0
        %849 = vmatpush1.msra.mxu0 0.0
        %850 = vmatprep.subr.mxu0 0.0
        %851 = vmatpush1.msra.mxu0 0.0
        %852 = vmatprep.subr.mxu0 0.0
        %853 = vmatpush1.msra.mxu0 0.0
        %854 = vmatprep.subr.mxu0 0.0
        %855 = vmatpush1.msra.mxu0 0.0
        %856 = vmatprep.subr.mxu0 0.0
        %857 = vmatpush1.msra.mxu0 0.0
        %858 = vmatprep.subr.mxu0 0.0
        %859 = vmatpush1.msra.mxu0 0.0
        %860 = vmatprep.subr.mxu0 0.0
        %861 = vmatpush1.msra.mxu0 0.0
        %862 = vmatprep.subr.mxu0 0.0
        %863 = vmatpush1.msra.mxu0 0.0
        %864 = vmatprep.subr.mxu0 0.0
        %865 = vmatpush1.msra.mxu0 0.0
        %866 = vmatprep.subr.mxu0 0.0
        %867 = vmatpush1.msra.mxu0 0.0
        %868 = vmatprep.subr.mxu0 0.0
        %869 = vmatpush1.msra.mxu0 0.0
        %870 = vmatprep.subr.mxu0 0.0
        %871 = vmatpush1.msra.mxu0 0.0
        %872 = vmatprep.subr.mxu0 0.0
        %873 = vmatpush1.msra.mxu0 0.0
        %874 = vmatprep.subr.mxu0 0.0
        %875 = vmatpush1.msra.mxu0 0.0
        %876 = vmatprep.subr.mxu0 0.0
        %877 = vmatpush1.msra.mxu0 0.0
        %878 = vmatprep.subr.mxu0 0.0
        %879 = vmatpush1.msra.mxu0 0.0
        %880 = vmatprep.subr.mxu0 0.0
        %881 = vmatpush1.msra.mxu0 0.0
        %882 = vmatprep.subr.mxu0 0.0
        %883 = vmatpush1.msra.mxu0 0.0
        %884 = vmatprep.subr.mxu0 0.0
        %885 = vmatpush1.msra.mxu0 0.0
        %886 = vmatprep.subr.mxu0 0.0
        %887 = vmatpush1.msra.mxu0 0.0
        %888 = vmatprep.subr.mxu0 0.0
        %889 = vmatpush1.msra.mxu0 0.0
        %890 = vmatprep.subr.mxu0 0.0
        %891 = vmatpush1.msra.mxu0 0.0
        %892 = vmatprep.subr.mxu0 0.0
        %893 = vmatpush1.msra.mxu0 0.0
        %894 = vmatprep.mubr.f32.mxu0 0.0
        %895 = vmatmul.mubr.f32.gmra.mrb[0].mxu0 %v807
        %v896 = vpop.f32.mrb[0].mxu0
        %v897 = vadd.f32 %v769, %v896
        %v898 = vpop.f32.mrb[0].mxu0
        %v899 = vadd.f32 %v769, %v898
        %900 = vmatprep.mubr.f32.mxu0 0.0
        %901 = vmatmul.mubr.f32.gmra.mrb[0].mxu0 %v810
        %v902 = vpop.f32.mrb[0].mxu0
        %v903 = vadd.f32 %v774, %v902
        %v904 = vpop.f32.mrb[0].mxu0
        %v905 = vadd.f32 %v774, %v904
        %906 = vmatprep.mubr.f32.mxu0 0.0
        %907 = vmatmul.mubr.f32.gmra.mrb[0].mxu0 %v813
        %v908 = vpop.f32.mrb[0].mxu0
        %v909 = vadd.f32 %v779, %v908
        %v910 = vpop.f32.mrb[0].mxu0
        %v911 = vadd.f32 %v779, %v910
        %912 = vmatprep.mubr.f32.mxu0 0.0
        %913 = vmatmul.mubr.f32.gmra.mrb[0].mxu0 %v816
        %v914 = vpop.f32.mrb[0].mxu0
        %v915 = vadd.f32 %v784, %v914
        %v916 = vpop.f32.mrb[0].mxu0
        %v917 = vadd.f32 %v784, %v916
        %918 = vmatprep.mubr.f32.mxu0 0.0
        %919 = vmatmul.mubr.f32.gmra.mrb[0].mxu0 %v819
        %v920 = vpop.f32.mrb[0].mxu0
        %v921 = vadd.f32 %v789, %v920
        %v922 = vpop.f32.mrb[0].mxu0
        %v923 = vadd.f32 %v789, %v922
        %924 = vmatprep.mubr.f32.mxu0 0.0
        %925 = vmatmul.mubr.f32.gmra.mrb[0].mxu0 %v822
        %v926 = vpop.f32.mrb[0].mxu0
        %v927 = vadd.f32 %v794, %v926
        %v928 = vpop.f32.mrb[0].mxu0
        %v929 = vadd.f32 %v794, %v928
        %930 = vmatprep.mubr.f32.mxu0 0.0
        %931 = vmatmul.mubr.f32.gmra.mrb[0].mxu0 %v825
        %v932 = vpop.f32.mrb[0].mxu0
        %v933 = vadd.f32 %v799, %v932
        %v934 = vpop.f32.mrb[0].mxu0
        %v935 = vadd.f32 %v799, %v934
        %936 = vmatprep.mubr.f32.mxu0 0.0
        %937 = vmatmul.mubr.f32.gmra.mrb[0].mxu0 %v828
        %v938 = vpop.f32.mrb[0].mxu0
        %v939 = vadd.f32 %v804, %v938
        %v940 = vpop.f32.mrb[0].mxu0
        %v941 = vadd.f32 %v804, %v940
        %942 = vdwg.mxu0
        %v943 = vmax.f32 %v897, 0.0
        %v944 = vmax.f32 %v899, 0.0
        %v945 = vmax.f32 %v903, 0.0
        %v946 = vmax.f32 %v905, 0.0
        %v947 = vmax.f32 %v909, 0.0
        %v948 = vmax.f32 %v911, 0.0
        %v949 = vmax.f32 %v915, 0.0
        %v950 = vmax.f32 %v917, 0.0
        %v951 = vmax.f32 %v921, 0.0
        %v952 = vmax.f32 %v923, 0.0
        %v953 = vmax.f32 %v927, 0.0
        %v954 = vmax.f32 %v929, 0.0
        %v955 = vmax.f32 %v933, 0.0
        %v956 = vmax.f32 %v935, 0.0
        %v957 = vmax.f32 %v939, 0.0
        %v958 = vmax.f32 %v941, 0.0
        %v959 = vld [vmem:[#allocation4] sm:$0xff]
        %v960 = vld [vmem:[#allocation4 + $0x8] sm:$0xff]
        %v961 = vld [vmem:[#allocation4 + $0x10] sm:$0xff]
        %v962 = vld [vmem:[#allocation4 + $0x18] sm:$0xff]
        %v963 = vld [vmem:[#allocation4 + $0x20] sm:$0xff]
        %v964 = vld [vmem:[#allocation4 + $0x28] sm:$0xff]
        %v965 = vld [vmem:[#allocation4 + $0x30] sm:$0xff]
        %v966 = vld [vmem:[#allocation4 + $0x38] sm:$0xff]
        %v967 = vld [vmem:[%s8] sm:$0xff]
        %v968 = vld [vmem:[%s8 + $0x8] sm:$0xff]
        %v969 = vld [vmem:[%s8 + $0x10] sm:$0xff]
        %v970 = vld [vmem:[%s8 + $0x18] sm:$0xff]
        %v971 = vld [vmem:[%s8 + $0x20] sm:$0xff]
        %v972 = vld [vmem:[%s8 + $0x28] sm:$0xff]
        %v973 = vld [vmem:[%s8 + $0x30] sm:$0xff]
        %v974 = vld [vmem:[%s8 + $0x38] sm:$0xff]
        %976 = vset.pattern.permute.xlu0 0
        %977 = vperm.xlu0 %976, %v967
        %v978 = vpop.permute.xlu0 %977
        %981 = vset.pattern.permute.xlu0 0
        %982 = vperm.xlu0 %981, %v968
        %v983 = vpop.permute.xlu0 %982
        %986 = vset.pattern.permute.xlu0 0
        %987 = vperm.xlu0 %986, %v969
        %v988 = vpop.permute.xlu0 %987
        %991 = vset.pattern.permute.xlu0 0
        %992 = vperm.xlu0 %991, %v970
        %v993 = vpop.permute.xlu0 %992
        %996 = vset.pattern.permute.xlu0 0
        %997 = vperm.xlu0 %996, %v971
        %v998 = vpop.permute.xlu0 %997
        %1001 = vset.pattern.permute.xlu0 0
        %1002 = vperm.xlu0 %1001, %v972
        %v1003 = vpop.permute.xlu0 %1002
        %1006 = vset.pattern.permute.xlu0 0
        %1007 = vperm.xlu0 %1006, %v973
        %v1008 = vpop.permute.xlu0 %1007
        %1011 = vset.pattern.permute.xlu0 0
        %1012 = vperm.xlu0 %1011, %v974
        %v1013 = vpop.permute.xlu0 %1012
        %vm1015 = vcmask 523264
        %v1017 = vsel %vm1015, %v959, 0
        %v1020 = vsel %vm1015, %v960, 0
        %v1023 = vsel %vm1015, %v961, 0
        %v1026 = vsel %vm1015, %v962, 0
        %v1029 = vsel %vm1015, %v963, 0
        %v1032 = vsel %vm1015, %v964, 0
        %v1035 = vsel %vm1015, %v965, 0
        %v1038 = vsel %vm1015, %v966, 0
        %1040 = vmatprep.subr.mxu0 %v944
        %1041 = vmatpush1.msra.mxu0 %v943
        %1042 = vmatprep.subr.mxu0 %v946
        %1043 = vmatpush1.msra.mxu0 %v945
        %1044 = vmatprep.subr.mxu0 %v948
        %1045 = vmatpush1.msra.mxu0 %v947
        %1046 = vmatprep.subr.mxu0 %v950
        %1047 = vmatpush1.msra.mxu0 %v949
        %1048 = vmatprep.subr.mxu0 %v952
        %1049 = vmatpush1.msra.mxu0 %v951
        %1050 = vmatprep.subr.mxu0 %v954
        %1051 = vmatpush1.msra.mxu0 %v953
        %1052 = vmatprep.subr.mxu0 %v956
        %1053 = vmatpush1.msra.mxu0 %v955
        %1054 = vmatprep.subr.mxu0 %v958
        %1055 = vmatpush1.msra.mxu0 %v957
        %1056 = vmatprep.subr.mxu0 0.0
        %1057 = vmatpush1.msra.mxu0 0.0
        %1058 = vmatprep.subr.mxu0 0.0
        %1059 = vmatpush1.msra.mxu0 0.0
        %1060 = vmatprep.subr.mxu0 0.0
        %1061 = vmatpush1.msra.mxu0 0.0
        %1062 = vmatprep.subr.mxu0 0.0
        %1063 = vmatpush1.msra.mxu0 0.0
        %1064 = vmatprep.subr.mxu0 0.0
        %1065 = vmatpush1.msra.mxu0 0.0
        %1066 = vmatprep.subr.mxu0 0.0
        %1067 = vmatpush1.msra.mxu0 0.0
        %1068 = vmatprep.subr.mxu0 0.0
        %1069 = vmatpush1.msra.mxu0 0.0
        %1070 = vmatprep.subr.mxu0 0.0
        %1071 = vmatpush1.msra.mxu0 0.0
        %1072 = vmatprep.subr.mxu0 0.0
        %1073 = vmatpush1.msra.mxu0 0.0
        %1074 = vmatprep.subr.mxu0 0.0
        %1075 = vmatpush1.msra.mxu0 0.0
        %1076 = vmatprep.subr.mxu0 0.0
        %1077 = vmatpush1.msra.mxu0 0.0
        %1078 = vmatprep.subr.mxu0 0.0
        %1079 = vmatpush1.msra.mxu0 0.0
        %1080 = vmatprep.subr.mxu0 0.0
        %1081 = vmatpush1.msra.mxu0 0.0
        %1082 = vmatprep.subr.mxu0 0.0
        %1083 = vmatpush1.msra.mxu0 0.0
        %1084 = vmatprep.subr.mxu0 0.0
        %1085 = vmatpush1.msra.mxu0 0.0
        %1086 = vmatprep.subr.mxu0 0.0
        %1087 = vmatpush1.msra.mxu0 0.0
        %1088 = vmatprep.subr.mxu0 0.0
        %1089 = vmatpush1.msra.mxu0 0.0
        %1090 = vmatprep.subr.mxu0 0.0
        %1091 = vmatpush1.msra.mxu0 0.0
        %1092 = vmatprep.subr.mxu0 0.0
        %1093 = vmatpush1.msra.mxu0 0.0
        %1094 = vmatprep.subr.mxu0 0.0
        %1095 = vmatpush1.msra.mxu0 0.0
        %1096 = vmatprep.subr.mxu0 0.0
        %1097 = vmatpush1.msra.mxu0 0.0
        %1098 = vmatprep.subr.mxu0 0.0
        %1099 = vmatpush1.msra.mxu0 0.0
        %1100 = vmatprep.subr.mxu0 0.0
        %1101 = vmatpush1.msra.mxu0 0.0
        %1102 = vmatprep.subr.mxu0 0.0
        %1103 = vmatpush1.msra.mxu0 0.0
        %1104 = vmatprep.mubr.f32.mxu0 0.0
        %1105 = vmatmul.mubr.f32.gmra.mrb[0].mxu0 %v1017
        %v1106 = vpop.f32.mrb[0].mxu0
        %v1107 = vadd.f32 %v978, %v1106
        %v1108 = vpop.f32.mrb[0].mxu0
        %v1109 = vadd.f32 %v978, %v1108
        %1110 = vmatprep.mubr.f32.mxu0 0.0
        %1111 = vmatmul.mubr.f32.gmra.mrb[0].mxu0 %v1020
        %v1112 = vpop.f32.mrb[0].mxu0
        %v1113 = vadd.f32 %v983, %v1112
        %v1114 = vpop.f32.mrb[0].mxu0
        %v1115 = vadd.f32 %v983, %v1114
        %1116 = vmatprep.mubr.f32.mxu0 0.0
        %1117 = vmatmul.mubr.f32.gmra.mrb[0].mxu0 %v1023
        %v1118 = vpop.f32.mrb[0].mxu0
        %v1119 = vadd.f32 %v988, %v1118
        %v1120 = vpop.f32.mrb[0].mxu0
        %v1121 = vadd.f32 %v988, %v1120
        %1122 = vmatprep.mubr.f32.mxu0 0.0
        %1123 = vmatmul.mubr.f32.gmra.mrb[0].mxu0 %v1026
        %v1124 = vpop.f32.mrb[0].mxu0
        %v1125 = vadd.f32 %v993, %v1124
        %v1126 = vpop.f32.mrb[0].mxu0
        %v1127 = vadd.f32 %v993, %v1126
        %1128 = vmatprep.mubr.f32.mxu0 0.0
        %1129 = vmatmul.mubr.f32.gmra.mrb[0].mxu0 %v1029
        %v1130 = vpop.f32.mrb[0].mxu0
        %v1131 = vadd.f32 %v998, %v1130
        %v1132 = vpop.f32.mrb[0].mxu0
        %v1133 = vadd.f32 %v998, %v1132
        %1134 = vmatprep.mubr.f32.mxu0 0.0
        %1135 = vmatmul.mubr.f32.gmra.mrb[0].mxu0 %v1032
        %v1136 = vpop.f32.mrb[0].mxu0
        %v1137 = vadd.f32 %v1003, %v1136
        %v1138 = vpop.f32.mrb[0].mxu0
        %v1139 = vadd.f32 %v1003, %v1138
        %1140 = vmatprep.mubr.f32.mxu0 0.0
        %1141 = vmatmul.mubr.f32.gmra.mrb[0].mxu0 %v1035
        %v1142 = vpop.f32.mrb[0].mxu0
        %v1143 = vadd.f32 %v1008, %v1142
        %v1144 = vpop.f32.mrb[0].mxu0
        %v1145 = vadd.f32 %v1008, %v1144
        %1146 = vmatprep.mubr.f32.mxu0 0.0
        %1147 = vmatmul.mubr.f32.gmra.mrb[0].mxu0 %v1038
        %v1148 = vpop.f32.mrb[0].mxu0
        %v1149 = vadd.f32 %v1013, %v1148
        %v1150 = vpop.f32.mrb[0].mxu0
        %v1151 = vadd.f32 %v1013, %v1150
        %1152 = vdwg.mxu0
        %v1153 = vmax.f32 %v1107, 0.0
        %v1154 = vmax.f32 %v1109, 0.0
        %v1155 = vmax.f32 %v1113, 0.0
        %v1156 = vmax.f32 %v1115, 0.0
        %v1157 = vmax.f32 %v1119, 0.0
        %v1158 = vmax.f32 %v1121, 0.0
        %v1159 = vmax.f32 %v1125, 0.0
        %v1160 = vmax.f32 %v1127, 0.0
        %v1161 = vmax.f32 %v1131, 0.0
        %v1162 = vmax.f32 %v1133, 0.0
        %v1163 = vmax.f32 %v1137, 0.0
        %v1164 = vmax.f32 %v1139, 0.0
        %v1165 = vmax.f32 %v1143, 0.0
        %v1166 = vmax.f32 %v1145, 0.0
        %v1167 = vmax.f32 %v1149, 0.0
        %v1168 = vmax.f32 %v1151, 0.0
        %v1169 = vld [vmem:[%s9] sm:$0xff]
        %v1170 = vld [vmem:[%s9 + $0x8] sm:$0xff]
        %v1171 = vld [vmem:[%s9 + $0x10] sm:$0xff]
        %v1172 = vld [vmem:[%s9 + $0x18] sm:$0xff]
        %v1173 = vld [vmem:[%s9 + $0x20] sm:$0xff]
        %v1174 = vld [vmem:[%s9 + $0x28] sm:$0xff]
        %v1175 = vld [vmem:[%s9 + $0x30] sm:$0xff]
        %v1176 = vld [vmem:[%s9 + $0x38] sm:$0xff]
        %v1177 = vld [vmem:[%s9 + $0x40] sm:$0xff]
        %v1178 = vld [vmem:[%s9 + $0x48] sm:$0xff]
        %v1179 = vld [vmem:[%s9 + $0x50] sm:$0xff]
        %v1180 = vld [vmem:[%s9 + $0x58] sm:$0xff]
        %v1181 = vld [vmem:[%s9 + $0x60] sm:$0xff]
        %v1182 = vld [vmem:[%s9 + $0x68] sm:$0xff]
        %v1183 = vld [vmem:[%s9 + $0x70] sm:$0xff]
        %v1184 = vld [vmem:[%s9 + $0x78] sm:$0xff]
        %v1185 = vld [vmem:[%s10] sm:$0xff]
        %v1186 = vld [vmem:[%s10 + $0x8] sm:$0xff]
        %v1187 = vld [vmem:[%s10 + $0x10] sm:$0xff]
        %v1188 = vld [vmem:[%s10 + $0x18] sm:$0xff]
        %v1189 = vld [vmem:[%s10 + $0x20] sm:$0xff]
        %v1190 = vld [vmem:[%s10 + $0x28] sm:$0xff]
        %v1191 = vld [vmem:[%s10 + $0x30] sm:$0xff]
        %v1192 = vld [vmem:[%s10 + $0x38] sm:$0xff]
        %v1193 = vld [vmem:[%s10 + $0x40] sm:$0xff]
        %v1194 = vld [vmem:[%s10 + $0x48] sm:$0xff]
        %v1195 = vld [vmem:[%s10 + $0x50] sm:$0xff]
        %v1196 = vld [vmem:[%s10 + $0x58] sm:$0xff]
        %v1197 = vld [vmem:[%s10 + $0x60] sm:$0xff]
        %v1198 = vld [vmem:[%s10 + $0x68] sm:$0xff]
        %v1199 = vld [vmem:[%s10 + $0x70] sm:$0xff]
        %v1200 = vld [vmem:[%s10 + $0x78] sm:$0xff]
        %1202 = vset.pattern.permute.xlu0 0
        %1203 = vperm.xlu0 %1202, %v1185
        %v1204 = vpop.permute.xlu0 %1203
        %1207 = vset.pattern.permute.xlu0 0
        %1208 = vperm.xlu0 %1207, %v1186
        %v1209 = vpop.permute.xlu0 %1208
        %1212 = vset.pattern.permute.xlu0 0
        %1213 = vperm.xlu0 %1212, %v1187
        %v1214 = vpop.permute.xlu0 %1213
        %1217 = vset.pattern.permute.xlu0 0
        %1218 = vperm.xlu0 %1217, %v1188
        %v1219 = vpop.permute.xlu0 %1218
        %1222 = vset.pattern.permute.xlu0 0
        %1223 = vperm.xlu0 %1222, %v1189
        %v1224 = vpop.permute.xlu0 %1223
        %1227 = vset.pattern.permute.xlu0 0
        %1228 = vperm.xlu0 %1227, %v1190
        %v1229 = vpop.permute.xlu0 %1228
        %1232 = vset.pattern.permute.xlu0 0
        %1233 = vperm.xlu0 %1232, %v1191
        %v1234 = vpop.permute.xlu0 %1233
        %1237 = vset.pattern.permute.xlu0 0
        %1238 = vperm.xlu0 %1237, %v1192
        %v1239 = vpop.permute.xlu0 %1238
        %1242 = vset.pattern.permute.xlu0 0
        %1243 = vperm.xlu0 %1242, %v1193
        %v1244 = vpop.permute.xlu0 %1243
        %1247 = vset.pattern.permute.xlu0 0
        %1248 = vperm.xlu0 %1247, %v1194
        %v1249 = vpop.permute.xlu0 %1248
        %1252 = vset.pattern.permute.xlu0 0
        %1253 = vperm.xlu0 %1252, %v1195
        %v1254 = vpop.permute.xlu0 %1253
        %1257 = vset.pattern.permute.xlu0 0
        %1258 = vperm.xlu0 %1257, %v1196
        %v1259 = vpop.permute.xlu0 %1258
        %1262 = vset.pattern.permute.xlu0 0
        %1263 = vperm.xlu0 %1262, %v1197
        %v1264 = vpop.permute.xlu0 %1263
        %1267 = vset.pattern.permute.xlu0 0
        %1268 = vperm.xlu0 %1267, %v1198
        %v1269 = vpop.permute.xlu0 %1268
        %1272 = vset.pattern.permute.xlu0 0
        %1273 = vperm.xlu0 %1272, %v1199
        %v1274 = vpop.permute.xlu0 %1273
        %1277 = vset.pattern.permute.xlu0 0
        %1278 = vperm.xlu0 %1277, %v1200
        %v1279 = vpop.permute.xlu0 %1278
        %v1282 = vsel %vm1015, %v1169, 0
        %v1285 = vsel %vm1015, %v1170, 0
        %v1288 = vsel %vm1015, %v1171, 0
        %v1291 = vsel %vm1015, %v1172, 0
        %v1294 = vsel %vm1015, %v1173, 0
        %v1297 = vsel %vm1015, %v1174, 0
        %v1300 = vsel %vm1015, %v1175, 0
        %v1303 = vsel %vm1015, %v1176, 0
        %v1306 = vsel %vm1015, %v1177, 0
        %v1309 = vsel %vm1015, %v1178, 0
        %v1312 = vsel %vm1015, %v1179, 0
        %v1315 = vsel %vm1015, %v1180, 0
        %v1318 = vsel %vm1015, %v1181, 0
        %v1321 = vsel %vm1015, %v1182, 0
        %v1324 = vsel %vm1015, %v1183, 0
        %v1327 = vsel %vm1015, %v1184, 0
        %1329 = vmatprep.subr.mxu0 %v1154
        %1330 = vmatpush1.msra.mxu0 %v1153
        %1331 = vmatprep.subr.mxu0 %v1156
        %1332 = vmatpush1.msra.mxu0 %v1155
        %1333 = vmatprep.subr.mxu0 %v1158
        %1334 = vmatpush1.msra.mxu0 %v1157
        %1335 = vmatprep.subr.mxu0 %v1160
        %1336 = vmatpush1.msra.mxu0 %v1159
        %1337 = vmatprep.subr.mxu0 %v1162
        %1338 = vmatpush1.msra.mxu0 %v1161
        %1339 = vmatprep.subr.mxu0 %v1164
        %1340 = vmatpush1.msra.mxu0 %v1163
        %1341 = vmatprep.subr.mxu0 %v1166
        %1342 = vmatpush1.msra.mxu0 %v1165
        %1343 = vmatprep.subr.mxu0 %v1168
        %1344 = vmatpush1.msra.mxu0 %v1167
        %1345 = vmatprep.subr.mxu0 0.0
        %1346 = vmatpush1.msra.mxu0 0.0
        %1347 = vmatprep.subr.mxu0 0.0
        %1348 = vmatpush1.msra.mxu0 0.0
        %1349 = vmatprep.subr.mxu0 0.0
        %1350 = vmatpush1.msra.mxu0 0.0
        %1351 = vmatprep.subr.mxu0 0.0
        %1352 = vmatpush1.msra.mxu0 0.0
        %1353 = vmatprep.subr.mxu0 0.0
        %1354 = vmatpush1.msra.mxu0 0.0
        %1355 = vmatprep.subr.mxu0 0.0
        %1356 = vmatpush1.msra.mxu0 0.0
        %1357 = vmatprep.subr.mxu0 0.0
        %1358 = vmatpush1.msra.mxu0 0.0
        %1359 = vmatprep.subr.mxu0 0.0
        %1360 = vmatpush1.msra.mxu0 0.0
        %1361 = vmatprep.subr.mxu0 0.0
        %1362 = vmatpush1.msra.mxu0 0.0
        %1363 = vmatprep.subr.mxu0 0.0
        %1364 = vmatpush1.msra.mxu0 0.0
        %1365 = vmatprep.subr.mxu0 0.0
        %1366 = vmatpush1.msra.mxu0 0.0
        %1367 = vmatprep.subr.mxu0 0.0
        %1368 = vmatpush1.msra.mxu0 0.0
        %1369 = vmatprep.subr.mxu0 0.0
        %1370 = vmatpush1.msra.mxu0 0.0
        %1371 = vmatprep.subr.mxu0 0.0
        %1372 = vmatpush1.msra.mxu0 0.0
        %1373 = vmatprep.subr.mxu0 0.0
        %1374 = vmatpush1.msra.mxu0 0.0
        %1375 = vmatprep.subr.mxu0 0.0
        %1376 = vmatpush1.msra.mxu0 0.0
        %1377 = vmatprep.subr.mxu0 0.0
        %1378 = vmatpush1.msra.mxu0 0.0
        %1379 = vmatprep.subr.mxu0 0.0
        %1380 = vmatpush1.msra.mxu0 0.0
        %1381 = vmatprep.subr.mxu0 0.0
        %1382 = vmatpush1.msra.mxu0 0.0
        %1383 = vmatprep.subr.mxu0 0.0
        %1384 = vmatpush1.msra.mxu0 0.0
        %1385 = vmatprep.subr.mxu0 0.0
        %1386 = vmatpush1.msra.mxu0 0.0
        %1387 = vmatprep.subr.mxu0 0.0
        %1388 = vmatpush1.msra.mxu0 0.0
        %1389 = vmatprep.subr.mxu0 0.0
        %1390 = vmatpush1.msra.mxu0 0.0
        %1391 = vmatprep.subr.mxu0 0.0
        %1392 = vmatpush1.msra.mxu0 0.0
        %1393 = vmatprep.mubr.f32.mxu0 0.0
        %1394 = vmatmul.mubr.f32.gmra.mrb[0].mxu0 %v1282
        %v1395 = vpop.f32.mrb[0].mxu0
        %v1396 = vadd.f32 %v1204, %v1395
        %v1397 = vpop.f32.mrb[0].mxu0
        %v1398 = vadd.f32 %v1204, %v1397
        %1399 = vmatprep.mubr.f32.mxu0 0.0
        %1400 = vmatmul.mubr.f32.gmra.mrb[0].mxu0 %v1285
        %v1401 = vpop.f32.mrb[0].mxu0
        %v1402 = vadd.f32 %v1209, %v1401
        %v1403 = vpop.f32.mrb[0].mxu0
        %v1404 = vadd.f32 %v1209, %v1403
        %1405 = vmatprep.mubr.f32.mxu0 0.0
        %1406 = vmatmul.mubr.f32.gmra.mrb[0].mxu0 %v1288
        %v1407 = vpop.f32.mrb[0].mxu0
        %v1408 = vadd.f32 %v1214, %v1407
        %v1409 = vpop.f32.mrb[0].mxu0
        %v1410 = vadd.f32 %v1214, %v1409
        %1411 = vmatprep.mubr.f32.mxu0 0.0
        %1412 = vmatmul.mubr.f32.gmra.mrb[0].mxu0 %v1291
        %v1413 = vpop.f32.mrb[0].mxu0
        %v1414 = vadd.f32 %v1219, %v1413
        %v1415 = vpop.f32.mrb[0].mxu0
        %v1416 = vadd.f32 %v1219, %v1415
        %1417 = vmatprep.mubr.f32.mxu0 0.0
        %1418 = vmatmul.mubr.f32.gmra.mrb[0].mxu0 %v1294
        %v1419 = vpop.f32.mrb[0].mxu0
        %v1420 = vadd.f32 %v1224, %v1419
        %v1421 = vpop.f32.mrb[0].mxu0
        %v1422 = vadd.f32 %v1224, %v1421
        %1423 = vmatprep.mubr.f32.mxu0 0.0
        %1424 = vmatmul.mubr.f32.gmra.mrb[0].mxu0 %v1297
        %v1425 = vpop.f32.mrb[0].mxu0
        %v1426 = vadd.f32 %v1229, %v1425
        %v1427 = vpop.f32.mrb[0].mxu0
        %v1428 = vadd.f32 %v1229, %v1427
        %1429 = vmatprep.mubr.f32.mxu0 0.0
        %1430 = vmatmul.mubr.f32.gmra.mrb[0].mxu0 %v1300
        %v1431 = vpop.f32.mrb[0].mxu0
        %v1432 = vadd.f32 %v1234, %v1431
        %v1433 = vpop.f32.mrb[0].mxu0
        %v1434 = vadd.f32 %v1234, %v1433
        %1435 = vmatprep.mubr.f32.mxu0 0.0
        %1436 = vmatmul.mubr.f32.gmra.mrb[0].mxu0 %v1303
        %v1437 = vpop.f32.mrb[0].mxu0
        %v1438 = vadd.f32 %v1239, %v1437
        %v1439 = vpop.f32.mrb[0].mxu0
        %v1440 = vadd.f32 %v1239, %v1439
        %1441 = vmatprep.mubr.f32.mxu0 0.0
        %1442 = vmatmul.mubr.f32.gmra.mrb[0].mxu0 %v1306
        %v1443 = vpop.f32.mrb[0].mxu0
        %v1444 = vadd.f32 %v1244, %v1443
        %v1445 = vpop.f32.mrb[0].mxu0
        %v1446 = vadd.f32 %v1244, %v1445
        %1447 = vmatprep.mubr.f32.mxu0 0.0
        %1448 = vmatmul.mubr.f32.gmra.mrb[0].mxu0 %v1309
        %v1449 = vpop.f32.mrb[0].mxu0
        %v1450 = vadd.f32 %v1249, %v1449
        %v1451 = vpop.f32.mrb[0].mxu0
        %v1452 = vadd.f32 %v1249, %v1451
        %1453 = vmatprep.mubr.f32.mxu0 0.0
        %1454 = vmatmul.mubr.f32.gmra.mrb[0].mxu0 %v1312
        %v1455 = vpop.f32.mrb[0].mxu0
        %v1456 = vadd.f32 %v1254, %v1455
        %v1457 = vpop.f32.mrb[0].mxu0
        %v1458 = vadd.f32 %v1254, %v1457
        %1459 = vmatprep.mubr.f32.mxu0 0.0
        %1460 = vmatmul.mubr.f32.gmra.mrb[0].mxu0 %v1315
        %v1461 = vpop.f32.mrb[0].mxu0
        %v1462 = vadd.f32 %v1259, %v1461
        %v1463 = vpop.f32.mrb[0].mxu0
        %v1464 = vadd.f32 %v1259, %v1463
        %1465 = vmatprep.mubr.f32.mxu0 0.0
        %1466 = vmatmul.mubr.f32.gmra.mrb[0].mxu0 %v1318
        %v1467 = vpop.f32.mrb[0].mxu0
        %v1468 = vadd.f32 %v1264, %v1467
        %v1469 = vpop.f32.mrb[0].mxu0
        %v1470 = vadd.f32 %v1264, %v1469
        %1471 = vmatprep.mubr.f32.mxu0 0.0
        %1472 = vmatmul.mubr.f32.gmra.mrb[0].mxu0 %v1321
        %v1473 = vpop.f32.mrb[0].mxu0
        %v1474 = vadd.f32 %v1269, %v1473
        %v1475 = vpop.f32.mrb[0].mxu0
        %v1476 = vadd.f32 %v1269, %v1475
        %1477 = vmatprep.mubr.f32.mxu0 0.0
        %1478 = vmatmul.mubr.f32.gmra.mrb[0].mxu0 %v1324
        %v1479 = vpop.f32.mrb[0].mxu0
        %v1480 = vadd.f32 %v1274, %v1479
        %v1481 = vpop.f32.mrb[0].mxu0
        %v1482 = vadd.f32 %v1274, %v1481
        %1483 = vmatprep.mubr.f32.mxu0 0.0
        %1484 = vmatmul.mubr.f32.gmra.mrb[0].mxu0 %v1327
        %v1485 = vpop.f32.mrb[0].mxu0
        %v1486 = vadd.f32 %v1279, %v1485
        %v1487 = vpop.f32.mrb[0].mxu0
        %v1488 = vadd.f32 %v1279, %v1487
        %1489 = vdwg.mxu0
        %v1490 = vmax.f32 %v1396, 0.0
        %v1491 = vmax.f32 %v1398, 0.0
        %v1492 = vmax.f32 %v1402, 0.0
        %v1493 = vmax.f32 %v1404, 0.0
        %v1494 = vmax.f32 %v1408, 0.0
        %v1495 = vmax.f32 %v1410, 0.0
        %v1496 = vmax.f32 %v1414, 0.0
        %v1497 = vmax.f32 %v1416, 0.0
        %v1498 = vmax.f32 %v1420, 0.0
        %v1499 = vmax.f32 %v1422, 0.0
        %v1500 = vmax.f32 %v1426, 0.0
        %v1501 = vmax.f32 %v1428, 0.0
        %v1502 = vmax.f32 %v1432, 0.0
        %v1503 = vmax.f32 %v1434, 0.0
        %v1504 = vmax.f32 %v1438, 0.0
        %v1505 = vmax.f32 %v1440, 0.0
        %v1506 = vmax.f32 %v1444, 0.0
        %v1507 = vmax.f32 %v1446, 0.0
        %v1508 = vmax.f32 %v1450, 0.0
        %v1509 = vmax.f32 %v1452, 0.0
        %v1510 = vmax.f32 %v1456, 0.0
        %v1511 = vmax.f32 %v1458, 0.0
        %v1512 = vmax.f32 %v1462, 0.0
        %v1513 = vmax.f32 %v1464, 0.0
        %v1514 = vmax.f32 %v1468, 0.0
        %v1515 = vmax.f32 %v1470, 0.0
        %v1516 = vmax.f32 %v1474, 0.0
        %v1517 = vmax.f32 %v1476, 0.0
        %v1518 = vmax.f32 %v1480, 0.0
        %v1519 = vmax.f32 %v1482, 0.0
        %v1520 = vmax.f32 %v1486, 0.0
        %v1521 = vmax.f32 %v1488, 0.0
        %v1522 = vld [vmem:[%s444] sm:$0xff]
        %v1523 = vld [vmem:[%s444 + $0x8] sm:$0xff]
        %v1524 = vld [vmem:[%s444 + $0x10] sm:$0xff]
        %v1525 = vld [vmem:[%s444 + $0x18] sm:$0xff]
        %v1526 = vld [vmem:[%s444 + $0x20] sm:$0xff]
        %v1527 = vld [vmem:[%s444 + $0x28] sm:$0xff]
        %v1528 = vld [vmem:[%s444 + $0x30] sm:$0xff]
        %v1529 = vld [vmem:[%s444 + $0x38] sm:$0xff]
        %v1530 = vld [vmem:[%s444 + $0x40] sm:$0xff]
        %v1531 = vld [vmem:[%s444 + $0x48] sm:$0xff]
        %v1532 = vld [vmem:[%s444 + $0x50] sm:$0xff]
        %v1533 = vld [vmem:[%s444 + $0x58] sm:$0xff]
        %v1534 = vld [vmem:[%s444 + $0x60] sm:$0xff]
        %v1535 = vld [vmem:[%s444 + $0x68] sm:$0xff]
        %v1536 = vld [vmem:[%s444 + $0x70] sm:$0xff]
        %v1537 = vld [vmem:[%s444 + $0x78] sm:$0xff]
        %v1538 = vmax.f32 %v1490, %v1491
        %1539 = vmax.xlane.f32.xlu0 %v1538
        %v1540 = vpop.xlane.xlu0 %1539
        %v1541 = vmax.f32 %v1492, %v1493
        %1542 = vmax.xlane.f32.xlu0 %v1541
        %v1543 = vpop.xlane.xlu0 %1542
        %v1544 = vmax.f32 %v1494, %v1495
        %1545 = vmax.xlane.f32.xlu0 %v1544
        %v1546 = vpop.xlane.xlu0 %1545
        %v1547 = vmax.f32 %v1496, %v1497
        %1548 = vmax.xlane.f32.xlu0 %v1547
        %v1549 = vpop.xlane.xlu0 %1548
        %v1550 = vmax.f32 %v1498, %v1499
        %1551 = vmax.xlane.f32.xlu0 %v1550
        %v1552 = vpop.xlane.xlu0 %1551
        %v1553 = vmax.f32 %v1500, %v1501
        %1554 = vmax.xlane.f32.xlu0 %v1553
        %v1555 = vpop.xlane.xlu0 %1554
        %v1556 = vmax.f32 %v1502, %v1503
        %1557 = vmax.xlane.f32.xlu0 %v1556
        %v1558 = vpop.xlane.xlu0 %1557
        %v1559 = vmax.f32 %v1504, %v1505
        %1560 = vmax.xlane.f32.xlu0 %v1559
        %v1561 = vpop.xlane.xlu0 %1560
        %v1562 = vmax.f32 %v1506, %v1507
        %1563 = vmax.xlane.f32.xlu0 %v1562
        %v1564 = vpop.xlane.xlu0 %1563
        %v1565 = vmax.f32 %v1508, %v1509
        %1566 = vmax.xlane.f32.xlu0 %v1565
        %v1567 = vpop.xlane.xlu0 %1566
        %v1568 = vmax.f32 %v1510, %v1511
        %1569 = vmax.xlane.f32.xlu0 %v1568
        %v1570 = vpop.xlane.xlu0 %1569
        %v1571 = vmax.f32 %v1512, %v1513
        %1572 = vmax.xlane.f32.xlu0 %v1571
        %v1573 = vpop.xlane.xlu0 %1572
        %v1574 = vmax.f32 %v1514, %v1515
        %1575 = vmax.xlane.f32.xlu0 %v1574
        %v1576 = vpop.xlane.xlu0 %1575
        %v1577 = vmax.f32 %v1516, %v1517
        %1578 = vmax.xlane.f32.xlu0 %v1577
        %v1579 = vpop.xlane.xlu0 %1578
        %v1580 = vmax.f32 %v1518, %v1519
        %1581 = vmax.xlane.f32.xlu0 %v1580
        %v1582 = vpop.xlane.xlu0 %1581
        %v1583 = vmax.f32 %v1520, %v1521
        %1584 = vmax.xlane.f32.xlu0 %v1583
        %v1585 = vpop.xlane.xlu0 %1584
        %v1586 = vmax.f32 %v1522, %v1540
        %v1587 = vmax.f32 %v1523, %v1543
        %v1588 = vmax.f32 %v1524, %v1546
        %v1589 = vmax.f32 %v1525, %v1549
        %v1590 = vmax.f32 %v1526, %v1552
        %v1591 = vmax.f32 %v1527, %v1555
        %v1592 = vmax.f32 %v1528, %v1558
        %v1593 = vmax.f32 %v1529, %v1561
        %v1594 = vmax.f32 %v1530, %v1564
        %v1595 = vmax.f32 %v1531, %v1567
        %v1596 = vmax.f32 %v1532, %v1570
        %v1597 = vmax.f32 %v1533, %v1573
        %v1598 = vmax.f32 %v1534, %v1576
        %v1599 = vmax.f32 %v1535, %v1579
        %v1600 = vmax.f32 %v1536, %v1582
        %v1601 = vmax.f32 %v1537, %v1585
        %vm1602 = vcmask 7168
        %1603 = vst.msk [vmem:[%s444] sm:$0xff] %vm1602, %v1586
        %1604 = vst.msk [vmem:[%s444 + $0x8] sm:$0xff] %vm1602, %v1587
        %1605 = vst.msk [vmem:[%s444 + $0x10] sm:$0xff] %vm1602, %v1588
        %1606 = vst.msk [vmem:[%s444 + $0x18] sm:$0xff] %vm1602, %v1589
        %1607 = vst.msk [vmem:[%s444 + $0x20] sm:$0xff] %vm1602, %v1590
        %1608 = vst.msk [vmem:[%s444 + $0x28] sm:$0xff] %vm1602, %v1591
        %1609 = vst.msk [vmem:[%s444 + $0x30] sm:$0xff] %vm1602, %v1592
        %1610 = vst.msk [vmem:[%s444 + $0x38] sm:$0xff] %vm1602, %v1593
        %1611 = vst.msk [vmem:[%s444 + $0x40] sm:$0xff] %vm1602, %v1594
        %1612 = vst.msk [vmem:[%s444 + $0x48] sm:$0xff] %vm1602, %v1595
        %1613 = vst.msk [vmem:[%s444 + $0x50] sm:$0xff] %vm1602, %v1596
        %1614 = vst.msk [vmem:[%s444 + $0x58] sm:$0xff] %vm1602, %v1597
        %1615 = vst.msk [vmem:[%s444 + $0x60] sm:$0xff] %vm1602, %v1598
        %1616 = vst.msk [vmem:[%s444 + $0x68] sm:$0xff] %vm1602, %v1599
        %1617 = vst.msk [vmem:[%s444 + $0x70] sm:$0xff] %vm1602, %v1600
        %1618 = vst.msk [vmem:[%s444 + $0x78] sm:$0xff] %vm1602, %v1601
        %p1619 = scmp.lt.s32.totalorder %s28, 1
        %s1620 = scalar_select %p1619, %s28, 1
        %s1621 = smul.addr %s1620, 16
        %s1622 = smul.addr %s1621, 8
        %s1623 = scalar_lea.vmem %s11, %s1622
        // Predicated region
        $region77: #{pointnet_feat.2} parent=63 // pred_check
          %p1624 = pneg %p292
        $region78: #{pointnet_feat.2} parent=63 // pred_check_branch
          %1626 = sbr.rel (%p1624) target = $region80
        $region79: #{pointnet_feat.2} parent=63 // pred_region
          _
        $region80: #{pointnet_feat.2} parent=63 // pred_fallthru
          _
      $region64: #{pointnet_feat.2} parent=5 // pred_fallthru
        _
      %p1627 = scmp.le.s32.totalorder 2, %s19
      // Predicated region
      $region81: #{pointnet_feat.2} parent=5 // pred_check
        %p1628 = pneg %p1627
      $region82: #{pointnet_feat.2} parent=5 // pred_check_branch
        %1630 = sbr.rel (%p1628) target = $region84
      $region83: #{pointnet_feat.2} parent=5 // pred_region
        %s1631 = ssub.s32 %s19, 2
        // Predicated region
        $region85: #{pointnet_feat.2} parent=83 // pred_check
          %p1632 = pneg %p298
        $region86: #{pointnet_feat.2} parent=83 // pred_check_branch
          %1634 = sbr.rel (%p1632) target = $region88
        $region87: #{pointnet_feat.2} parent=83 // pred_region
          %p1635 = scmp.lt.s32.totalorder %s30, 1
          %s1636 = scalar_select %p1635, %s30, 1
          %s1637 = smul.addr %s1636, 16
          %s1638 = smul.addr %s1637, 8
          %s1639 = scalar_lea.vmem %s11, %s1638
        $region88: #{pointnet_feat.2} parent=83 // pred_fallthru
          _
      $region84: #{pointnet_feat.2} parent=5 // pred_fallthru
        _
    $region6: #{pointnet_feat.2} parent=1 // loop_footer
      %s23 = sadd.s32 1, %s19
    $region7: #{pointnet_feat.2} parent=1 // loop_footer_branch
      %18 = sbr.rel target = $region3
    $region8: #{pointnet_feat.2} parent=1 // loop_exit
      _
    %1640 = vsyncpa [#allocation3], 1
    %s1641 = scalar_lea.sflag [#allocation3], 1
    %1642 = vsyncpa %s1641, 1
    %1643 = vsyncpa [#allocation5], 1

// kernel: pointnet_feat.3
$region0: #{pointnet_feat.3}
  #allocation0 [shape = 'u32[]', space=smem, size = 0x4, offset = 0x4, fixed_abs, tag = 'smem constant byte address 0x4 - core index']
  #allocation1 [shape = 'u32[144,128]{1,0:T(1,128)}', space=vmem, size = 0x12000, scoped, tag = 'internal scratch']
  %s0 = inlined_call_operand.vmem [shape: f32[2,3,1024], index: 0, kind: input, shape index: {}]
  %s1 = inlined_call_operand.vmem [shape: f32[2,64,1], index: 1, kind: input, shape index: {}]
  %s2 = inlined_call_operand.vmem [shape: f32[32,3], index: 2, kind: input, shape index: {}]
  %s3 = inlined_call_operand.vmem [shape: f32[32,1], index: 3, kind: input, shape index: {}]
  %s4 = inlined_call_operand.hbm [shape: f32[32,32], index: 4, kind: input, shape index: {}]
  %s5 = inlined_call_operand.vmem [shape: f32[32,1], index: 5, kind: input, shape index: {}]
  %s6 = inlined_call_operand.vmem [shape: f32[64,32], index: 6, kind: input, shape index: {}]
  %s7 = inlined_call_operand.vmem [shape: f32[64,1], index: 7, kind: input, shape index: {}]
  %s8 = inlined_call_operand.hbm [shape: f32[64,64], index: 8, kind: input, shape index: {}]
  %s9 = inlined_call_operand.vmem [shape: f32[64,1], index: 9, kind: input, shape index: {}]
  %s10 = inlined_call_operand.vmem [shape: f32[128,64], index: 10, kind: input, shape index: {}]
  %s11 = inlined_call_operand.vmem [shape: f32[128,1], index: 11, kind: input, shape index: {}]
  %s12 = inlined_call_operand.hbm [shape: f32[2,192,1024], index: 12, kind: output, shape index: {}]
  %s13 = sld [smem:[#allocation0]]
  $region89: #{pointnet_feat.3} parent=0
    _
  %s15 = ssub.s32 1, %s13
  %s16 = scalar_select 0, %s15, %s13
  $region1: #{pointnet_feat.3} parent=0
    #allocation2 [shape = 'u8[16384]{0}', space=vmem, size = 0x4000, scoped, tag = 'input window, operand 4, single buffered']
    #allocation3 [shape = 's32[2]{0}', space=sflag, size = 0x8, scoped, tag = 'scoped memory for pointnet_feat.3']
    #allocation4 [shape = 's32[2]{0}', space=sflag, size = 0x8, scoped, tag = 'scoped memory for pointnet_feat.3']
    #allocation5 [shape = 'u8[32768]{0}', space=vmem, size = 0x8000, scoped, tag = 'input window, operand 8, single buffered']
    #allocation6 [shape = 's32[1]{0}', space=sflag, size = 0x4, scoped, tag = 'scoped memory for pointnet_feat.3']
    #allocation7 [shape = 'u8[393216]{0}', space=vmem, size = 0x60000, scoped, tag = 'output window, operand 0']
    %17 = vsyncpa [#allocation3], 0
    %18 = vsyncpa [#allocation6], 0
    %19 = vsyncpa [#allocation4], 0
    %s20 = scalar_lea.sflag [#allocation4], 1
    %21 = vsyncpa %s20, 0
    loop: start=0, step=1, limit=10
    $region2: #{pointnet_feat.3} parent=1 // loop_pre_header
      _
    $region3: #{pointnet_feat.3} parent=1 // loop_header
      %s23 = sphi 0, %s27
      %p24 = scmp.ge.s32.totalorder %s23, 10
      %s30 = sphi 0, %s42
      %s31 = sphi 0, %s38
      %s32 = sphi 0, %s30
      %s33 = sphi 0, %s31
      %s34 = sphi 0, %s32
      %s35 = sphi 0, %s33
      %s47 = sphi 0, %s49
      %s50 = sphi 0, %s47
      %s51 = sphi 0, %s50
      %s67 = sphi 0, %s51
      %s73 = sphi 0, %s75
      %s76 = sphi 0, %s73
      %s77 = sphi 0, %s76
      %s93 = sphi 0, %s77
      %s97 = sphi 0, %s97
      %s99 = sphi 0, %s97
      %s100 = sphi 0, %s99
      %s114 = sphi 0, %s100
      %s118 = sphi 0, %s118
      %s120 = sphi 0, %s118
      %s121 = sphi 0, %s120
      %s135 = sphi 0, %s121
      %s139 = sphi 0, %s139
      %s141 = sphi 0, %s139
      %s142 = sphi 0, %s141
      %s156 = sphi 0, %s142
      %s160 = sphi 0, %s160
      %s162 = sphi 0, %s160
      %s163 = sphi 0, %s162
      %s177 = sphi 0, %s163
      %s181 = sphi 0, %s181
      %s183 = sphi 0, %s181
      %s184 = sphi 0, %s183
      %s198 = sphi 0, %s184
      %s202 = sphi 0, %s202
      %s204 = sphi 0, %s202
      %s205 = sphi 0, %s204
      %s219 = sphi 0, %s205
      %s223 = sphi 0, %s223
      %s225 = sphi 0, %s223
      %s226 = sphi 0, %s225
      %s240 = sphi 0, %s226
      %s244 = sphi 0, %s244
      %s246 = sphi 0, %s244
      %s247 = sphi 0, %s246
      %s261 = sphi 0, %s247
      %s265 = sphi 0, %s265
      %s267 = sphi 0, %s265
      %s268 = sphi 0, %s267
      %s282 = sphi 0, %s268
      %s286 = sphi 0, %s286
      %s288 = sphi 0, %s286
      %s289 = sphi 0, %s288
      %s303 = sphi 0, %s289
      %s311 = sphi 0, %s313
      %s314 = sphi 0, %s311
      %s315 = sphi 0, %s314
      %s331 = sphi 0, %s315
    $region4: #{pointnet_feat.3} parent=1 // loop_header_branch
      %26 = sbr.rel (%p24) target = $region8
    $region5: #{pointnet_feat.3} parent=1 // loop_body
      %s28 = ssub.s32 %s23, 1
      %s29 = ssub.s32 %s23, 2
      %s36 = sadd.s32 1, %s31
      %p37 = scmp.ge.s32.totalorder %s36, 4
      %s38 = scalar_select %p37, 0, %s36
      %s39 = sadd.s32 1, %s30
      %s40 = scalar_select %p37, %s39, %s30
      %p41 = scmp.ge.s32.totalorder %s40, 2
      %s42 = scalar_select %p41, 0, %s40
      %s43 = ssub.s32 %s30, %s42
      %s44 = ssub.s32 %s31, %s38
      %s45 = sor.u32 %s43, %s44
      %p46 = scmp.eq.s32.totalorder %s45, 0
      %s48 = sadd.s32 %s47, 1
      %s49 = scalar_select %p46, %s47, %s48
      %p52 = pneg %p46
      %p53 = scmp.eq.s32.totalorder %s23, 7
      %p54 = por %p52, %p53
      %p55 = scmp.ne.s32.totalorder %s47, %s50
      %p56 = scmp.eq.s32.totalorder %s23, 0
      %p57 = por %p55, %p56
      %p58 = scmp.ne.s32.totalorder %s47, %s50
      %p59 = scmp.eq.s32.totalorder %s28, 7
      %p60 = por %p58, %p59
      %p61 = scmp.ne.s32.totalorder %s50, %s51
      %p62 = scmp.eq.s32.totalorder %s28, 0
      %p63 = por %p61, %p62
      %p64 = scmp.ne.s32.totalorder %s50, %s51
      %p65 = scmp.eq.s32.totalorder %s29, 7
      %p66 = por %p64, %p65
      %p68 = scmp.ne.s32.totalorder %s51, %s67
      %p69 = scmp.eq.s32.totalorder %s29, 0
      %p70 = por %p68, %p69
      %s71 = ssub.s32 %s30, %s42
      %p72 = scmp.eq.s32.totalorder %s71, 0
      %s74 = sadd.s32 %s73, 1
      %s75 = scalar_select %p72, %s73, %s74
      %p78 = pneg %p72
      %p79 = scmp.eq.s32.totalorder %s23, 7
      %p80 = por %p78, %p79
      %p81 = scmp.ne.s32.totalorder %s73, %s76
      %p82 = scmp.eq.s32.totalorder %s23, 0
      %p83 = por %p81, %p82
      %p84 = scmp.ne.s32.totalorder %s73, %s76
      %p85 = scmp.eq.s32.totalorder %s28, 7
      %p86 = por %p84, %p85
      %p87 = scmp.ne.s32.totalorder %s76, %s77
      %p88 = scmp.eq.s32.totalorder %s28, 0
      %p89 = por %p87, %p88
      %p90 = scmp.ne.s32.totalorder %s76, %s77
      %p91 = scmp.eq.s32.totalorder %s29, 7
      %p92 = por %p90, %p91
      %p94 = scmp.ne.s32.totalorder %s77, %s93
      %p95 = scmp.eq.s32.totalorder %s29, 0
      %p96 = por %p94, %p95
      %s98 = sadd.s32 %s97, 1
      %p101 = scmp.eq.s32.totalorder %s23, 7
      %p102 = scmp.ne.s32.totalorder %s97, %s99
      %p103 = scmp.eq.s32.totalorder %s23, 0
      %p104 = por %p102, %p103
      %p105 = scmp.ne.s32.totalorder %s97, %s99
      %p106 = scmp.eq.s32.totalorder %s28, 7
      %p107 = por %p105, %p106
      %p108 = scmp.ne.s32.totalorder %s99, %s100
      %p109 = scmp.eq.s32.totalorder %s28, 0
      %p110 = por %p108, %p109
      %p111 = scmp.ne.s32.totalorder %s99, %s100
      %p112 = scmp.eq.s32.totalorder %s29, 7
      %p113 = por %p111, %p112
      %p115 = scmp.ne.s32.totalorder %s100, %s114
      %p116 = scmp.eq.s32.totalorder %s29, 0
      %p117 = por %p115, %p116
      %s119 = sadd.s32 %s118, 1
      %p122 = scmp.eq.s32.totalorder %s23, 7
      %p123 = scmp.ne.s32.totalorder %s118, %s120
      %p124 = scmp.eq.s32.totalorder %s23, 0
      %p125 = por %p123, %p124
      %p126 = scmp.ne.s32.totalorder %s118, %s120
      %p127 = scmp.eq.s32.totalorder %s28, 7
      %p128 = por %p126, %p127
      %p129 = scmp.ne.s32.totalorder %s120, %s121
      %p130 = scmp.eq.s32.totalorder %s28, 0
      %p131 = por %p129, %p130
      %p132 = scmp.ne.s32.totalorder %s120, %s121
      %p133 = scmp.eq.s32.totalorder %s29, 7
      %p134 = por %p132, %p133
      %p136 = scmp.ne.s32.totalorder %s121, %s135
      %p137 = scmp.eq.s32.totalorder %s29, 0
      %p138 = por %p136, %p137
      %s140 = sadd.s32 %s139, 1
      %p143 = scmp.eq.s32.totalorder %s23, 7
      %p144 = scmp.ne.s32.totalorder %s139, %s141
      %p145 = scmp.eq.s32.totalorder %s23, 0
      %p146 = por %p144, %p145
      %p147 = scmp.ne.s32.totalorder %s139, %s141
      %p148 = scmp.eq.s32.totalorder %s28, 7
      %p149 = por %p147, %p148
      %p150 = scmp.ne.s32.totalorder %s141, %s142
      %p151 = scmp.eq.s32.totalorder %s28, 0
      %p152 = por %p150, %p151
      %p153 = scmp.ne.s32.totalorder %s141, %s142
      %p154 = scmp.eq.s32.totalorder %s29, 7
      %p155 = por %p153, %p154
      %p157 = scmp.ne.s32.totalorder %s142, %s156
      %p158 = scmp.eq.s32.totalorder %s29, 0
      %p159 = por %p157, %p158
      %s161 = sadd.s32 %s160, 1
      %p164 = scmp.eq.s32.totalorder %s23, 7
      %p165 = scmp.ne.s32.totalorder %s160, %s162
      %p166 = scmp.eq.s32.totalorder %s23, 0
      %p167 = por %p165, %p166
      %p168 = scmp.ne.s32.totalorder %s160, %s162
      %p169 = scmp.eq.s32.totalorder %s28, 7
      %p170 = por %p168, %p169
      %p171 = scmp.ne.s32.totalorder %s162, %s163
      %p172 = scmp.eq.s32.totalorder %s28, 0
      %p173 = por %p171, %p172
      %p174 = scmp.ne.s32.totalorder %s162, %s163
      %p175 = scmp.eq.s32.totalorder %s29, 7
      %p176 = por %p174, %p175
      %p178 = scmp.ne.s32.totalorder %s163, %s177
      %p179 = scmp.eq.s32.totalorder %s29, 0
      %p180 = por %p178, %p179
      %s182 = sadd.s32 %s181, 1
      %p185 = scmp.eq.s32.totalorder %s23, 7
      %p186 = scmp.ne.s32.totalorder %s181, %s183
      %p187 = scmp.eq.s32.totalorder %s23, 0
      %p188 = por %p186, %p187
      %p189 = scmp.ne.s32.totalorder %s181, %s183
      %p190 = scmp.eq.s32.totalorder %s28, 7
      %p191 = por %p189, %p190
      %p192 = scmp.ne.s32.totalorder %s183, %s184
      %p193 = scmp.eq.s32.totalorder %s28, 0
      %p194 = por %p192, %p193
      %p195 = scmp.ne.s32.totalorder %s183, %s184
      %p196 = scmp.eq.s32.totalorder %s29, 7
      %p197 = por %p195, %p196
      %p199 = scmp.ne.s32.totalorder %s184, %s198
      %p200 = scmp.eq.s32.totalorder %s29, 0
      %p201 = por %p199, %p200
      %s203 = sadd.s32 %s202, 1
      %p206 = scmp.eq.s32.totalorder %s23, 7
      %p207 = scmp.ne.s32.totalorder %s202, %s204
      %p208 = scmp.eq.s32.totalorder %s23, 0
      %p209 = por %p207, %p208
      %p210 = scmp.ne.s32.totalorder %s202, %s204
      %p211 = scmp.eq.s32.totalorder %s28, 7
      %p212 = por %p210, %p211
      %p213 = scmp.ne.s32.totalorder %s204, %s205
      %p214 = scmp.eq.s32.totalorder %s28, 0
      %p215 = por %p213, %p214
      %p216 = scmp.ne.s32.totalorder %s204, %s205
      %p217 = scmp.eq.s32.totalorder %s29, 7
      %p218 = por %p216, %p217
      %p220 = scmp.ne.s32.totalorder %s205, %s219
      %p221 = scmp.eq.s32.totalorder %s29, 0
      %p222 = por %p220, %p221
      %s224 = sadd.s32 %s223, 1
      %p227 = scmp.eq.s32.totalorder %s23, 7
      %p228 = scmp.ne.s32.totalorder %s223, %s225
      %p229 = scmp.eq.s32.totalorder %s23, 0
      %p230 = por %p228, %p229
      %p231 = scmp.ne.s32.totalorder %s223, %s225
      %p232 = scmp.eq.s32.totalorder %s28, 7
      %p233 = por %p231, %p232
      %p234 = scmp.ne.s32.totalorder %s225, %s226
      %p235 = scmp.eq.s32.totalorder %s28, 0
      %p236 = por %p234, %p235
      %p237 = scmp.ne.s32.totalorder %s225, %s226
      %p238 = scmp.eq.s32.totalorder %s29, 7
      %p239 = por %p237, %p238
      %p241 = scmp.ne.s32.totalorder %s226, %s240
      %p242 = scmp.eq.s32.totalorder %s29, 0
      %p243 = por %p241, %p242
      %s245 = sadd.s32 %s244, 1
      %p248 = scmp.eq.s32.totalorder %s23, 7
      %p249 = scmp.ne.s32.totalorder %s244, %s246
      %p250 = scmp.eq.s32.totalorder %s23, 0
      %p251 = por %p249, %p250
      %p252 = scmp.ne.s32.totalorder %s244, %s246
      %p253 = scmp.eq.s32.totalorder %s28, 7
      %p254 = por %p252, %p253
      %p255 = scmp.ne.s32.totalorder %s246, %s247
      %p256 = scmp.eq.s32.totalorder %s28, 0
      %p257 = por %p255, %p256
      %p258 = scmp.ne.s32.totalorder %s246, %s247
      %p259 = scmp.eq.s32.totalorder %s29, 7
      %p260 = por %p258, %p259
      %p262 = scmp.ne.s32.totalorder %s247, %s261
      %p263 = scmp.eq.s32.totalorder %s29, 0
      %p264 = por %p262, %p263
      %s266 = sadd.s32 %s265, 1
      %p269 = scmp.eq.s32.totalorder %s23, 7
      %p270 = scmp.ne.s32.totalorder %s265, %s267
      %p271 = scmp.eq.s32.totalorder %s23, 0
      %p272 = por %p270, %p271
      %p273 = scmp.ne.s32.totalorder %s265, %s267
      %p274 = scmp.eq.s32.totalorder %s28, 7
      %p275 = por %p273, %p274
      %p276 = scmp.ne.s32.totalorder %s267, %s268
      %p277 = scmp.eq.s32.totalorder %s28, 0
      %p278 = por %p276, %p277
      %p279 = scmp.ne.s32.totalorder %s267, %s268
      %p280 = scmp.eq.s32.totalorder %s29, 7
      %p281 = por %p279, %p280
      %p283 = scmp.ne.s32.totalorder %s268, %s282
      %p284 = scmp.eq.s32.totalorder %s29, 0
      %p285 = por %p283, %p284
      %s287 = sadd.s32 %s286, 1
      %p290 = scmp.eq.s32.totalorder %s23, 7
      %p291 = scmp.ne.s32.totalorder %s286, %s288
      %p292 = scmp.eq.s32.totalorder %s23, 0
      %p293 = por %p291, %p292
      %p294 = scmp.ne.s32.totalorder %s286, %s288
      %p295 = scmp.eq.s32.totalorder %s28, 7
      %p296 = por %p294, %p295
      %p297 = scmp.ne.s32.totalorder %s288, %s289
      %p298 = scmp.eq.s32.totalorder %s28, 0
      %p299 = por %p297, %p298
      %p300 = scmp.ne.s32.totalorder %s288, %s289
      %p301 = scmp.eq.s32.totalorder %s29, 7
      %p302 = por %p300, %p301
      %p304 = scmp.ne.s32.totalorder %s289, %s303
      %p305 = scmp.eq.s32.totalorder %s29, 0
      %p306 = por %p304, %p305
      %s307 = ssub.s32 %s30, %s42
      %s308 = ssub.s32 %s31, %s38
      %s309 = sor.u32 %s307, %s308
      %p310 = scmp.eq.s32.totalorder %s309, 0
      %s312 = sadd.s32 %s311, 1
      %s313 = scalar_select %p310, %s311, %s312
      %p316 = pneg %p310
      %p317 = scmp.eq.s32.totalorder %s23, 7
      %p318 = por %p316, %p317
      %p319 = scmp.ne.s32.totalorder %s311, %s314
      %p320 = scmp.eq.s32.totalorder %s23, 0
      %p321 = por %p319, %p320
      %p322 = scmp.ne.s32.totalorder %s311, %s314
      %p323 = scmp.eq.s32.totalorder %s28, 7
      %p324 = por %p322, %p323
      %p325 = scmp.ne.s32.totalorder %s314, %s315
      %p326 = scmp.eq.s32.totalorder %s28, 0
      %p327 = por %p325, %p326
      %p328 = scmp.ne.s32.totalorder %s314, %s315
      %p329 = scmp.eq.s32.totalorder %s29, 7
      %p330 = por %p328, %p329
      %p332 = scmp.ne.s32.totalorder %s315, %s331
      %p333 = scmp.eq.s32.totalorder %s29, 0
      %p334 = por %p332, %p333
      %p335 = scmp.le.s32.totalorder 1, %s23
      %p336 = scmp.lt.s32.totalorder %s23, 9
      %p337 = pnand %p335, %p336
      %p338 = pneg %p337
      // Predicated region
      $region9: #{pointnet_feat.3} parent=5 // pred_check
        _
      $region10: #{pointnet_feat.3} parent=5 // pred_check_branch
        %340 = sbr.rel (%p337) target = $region12
      $region11: #{pointnet_feat.3} parent=5 // pred_region
        %s341 = ssub.s32 %s23, 1
        // Predicated region
        $region13: #{pointnet_feat.3} parent=11 // pred_check
          %p342 = pneg %p110
        $region14: #{pointnet_feat.3} parent=11 // pred_check_branch
          %344 = sbr.rel (%p342) target = $region16
        $region15: #{pointnet_feat.3} parent=11 // pred_region
          _
        $region16: #{pointnet_feat.3} parent=11 // pred_fallthru
          _
        // Predicated region
        $region17: #{pointnet_feat.3} parent=11 // pred_check
          %p345 = pneg %p131
        $region18: #{pointnet_feat.3} parent=11 // pred_check_branch
          %347 = sbr.rel (%p345) target = $region20
        $region19: #{pointnet_feat.3} parent=11 // pred_region
          _
        $region20: #{pointnet_feat.3} parent=11 // pred_fallthru
          _
        // Predicated region
        $region21: #{pointnet_feat.3} parent=11 // pred_check
          %p348 = pneg %p152
        $region22: #{pointnet_feat.3} parent=11 // pred_check_branch
          %350 = sbr.rel (%p348) target = $region24
        $region23: #{pointnet_feat.3} parent=11 // pred_region
          %s352 = ssub.s32 512, 512
          %353 = vsyncadd [#allocation3], %s352
          %s354 = sshll.u32 [#allocation2], 4
          %s355 = int_to_ptr.vmem [resolvable:$true] %s354
          %360 = dma.hbm_to_vmem [thread:$0]  %s4, 512, %s355, [#allocation3], 128, 128, 8
        $region24: #{pointnet_feat.3} parent=11 // pred_fallthru
          _
        // Predicated region
        $region25: #{pointnet_feat.3} parent=11 // pred_check
          %p361 = pneg %p173
        $region26: #{pointnet_feat.3} parent=11 // pred_check_branch
          %363 = sbr.rel (%p361) target = $region28
        $region27: #{pointnet_feat.3} parent=11 // pred_region
          _
        $region28: #{pointnet_feat.3} parent=11 // pred_fallthru
          _
        // Predicated region
        $region29: #{pointnet_feat.3} parent=11 // pred_check
          %p364 = pneg %p194
        $region30: #{pointnet_feat.3} parent=11 // pred_check_branch
          %366 = sbr.rel (%p364) target = $region32
        $region31: #{pointnet_feat.3} parent=11 // pred_region
          _
        $region32: #{pointnet_feat.3} parent=11 // pred_fallthru
          _
        // Predicated region
        $region33: #{pointnet_feat.3} parent=11 // pred_check
          %p367 = pneg %p215
        $region34: #{pointnet_feat.3} parent=11 // pred_check_branch
          %369 = sbr.rel (%p367) target = $region36
        $region35: #{pointnet_feat.3} parent=11 // pred_region
          _
        $region36: #{pointnet_feat.3} parent=11 // pred_fallthru
          _
        // Predicated region
        $region37: #{pointnet_feat.3} parent=11 // pred_check
          %p370 = pneg %p236
        $region38: #{pointnet_feat.3} parent=11 // pred_check_branch
          %372 = sbr.rel (%p370) target = $region40
        $region39: #{pointnet_feat.3} parent=11 // pred_region
          %s374 = ssub.s32 1024, 1024
          %375 = vsyncadd [#allocation6], %s374
          %s376 = sshll.u32 [#allocation5], 4
          %s377 = int_to_ptr.vmem [resolvable:$true] %s376
          %382 = dma.hbm_to_vmem [thread:$0]  %s8, 1024, %s377, [#allocation6], 128, 128, 8
        $region40: #{pointnet_feat.3} parent=11 // pred_fallthru
          _
        // Predicated region
        $region41: #{pointnet_feat.3} parent=11 // pred_check
          %p383 = pneg %p257
        $region42: #{pointnet_feat.3} parent=11 // pred_check_branch
          %385 = sbr.rel (%p383) target = $region44
        $region43: #{pointnet_feat.3} parent=11 // pred_region
          _
        $region44: #{pointnet_feat.3} parent=11 // pred_fallthru
          _
        // Predicated region
        $region45: #{pointnet_feat.3} parent=11 // pred_check
          %p386 = pneg %p278
        $region46: #{pointnet_feat.3} parent=11 // pred_check_branch
          %388 = sbr.rel (%p386) target = $region48
        $region47: #{pointnet_feat.3} parent=11 // pred_region
          _
        $region48: #{pointnet_feat.3} parent=11 // pred_fallthru
          _
        // Predicated region
        $region49: #{pointnet_feat.3} parent=11 // pred_check
          %p389 = pneg %p299
        $region50: #{pointnet_feat.3} parent=11 // pred_check_branch
          %391 = sbr.rel (%p389) target = $region52
        $region51: #{pointnet_feat.3} parent=11 // pred_region
          _
        $region52: #{pointnet_feat.3} parent=11 // pred_fallthru
          _
      $region12: #{pointnet_feat.3} parent=5 // pred_fallthru
        _
      %p392 = scmp.lt.s32.totalorder %s23, 8
      // Predicated region
      $region53: #{pointnet_feat.3} parent=5 // pred_check
        %p393 = pneg %p392
      $region54: #{pointnet_feat.3} parent=5 // pred_check_branch
        %395 = sbr.rel (%p393) target = $region56
      $region55: #{pointnet_feat.3} parent=5 // pred_region
        // Predicated region
        $region57: #{pointnet_feat.3} parent=55 // pred_check
          %p396 = pneg %p57
        $region58: #{pointnet_feat.3} parent=55 // pred_check_branch
          %398 = sbr.rel (%p396) target = $region60
        $region59: #{pointnet_feat.3} parent=55 // pred_region
          %s399 = smul.u32 2, %s31
          %p400 = scmp.lt.s32.totalorder %s30, 1
          %s401 = scalar_select %p400, %s30, 1
          %p402 = scmp.lt.s32.totalorder %s399, 7
          %s403 = scalar_select %p402, %s399, 7
          %s404 = smul.addr %s401, 8
          %s405 = sadd.s32 %s403, %s404
          %s406 = smul.addr %s405, 4
          %s407 = scalar_lea.vmem %s0, %s406
          %s408 = smul.u32 2, %s31
        $region60: #{pointnet_feat.3} parent=55 // pred_fallthru
          _
        // Predicated region
        $region61: #{pointnet_feat.3} parent=55 // pred_check
          %p409 = pneg %p83
        $region62: #{pointnet_feat.3} parent=55 // pred_check_branch
          %411 = sbr.rel (%p409) target = $region64
        $region63: #{pointnet_feat.3} parent=55 // pred_region
          %p412 = scmp.lt.s32.totalorder %s30, 1
          %s413 = scalar_select %p412, %s30, 1
          %s414 = smul.addr %s413, 8
          %s415 = smul.addr %s414, 8
          %s416 = scalar_lea.vmem %s1, %s415
        $region64: #{pointnet_feat.3} parent=55 // pred_fallthru
          _
      $region56: #{pointnet_feat.3} parent=5 // pred_fallthru
        _
      %p417 = scmp.le.s32.totalorder 1, %s23
      %p418 = scmp.lt.s32.totalorder %s23, 9
      %p419 = pnand %p417, %p418
      %p420 = pneg %p419
      // Predicated region
      $region65: #{pointnet_feat.3} parent=5 // pred_check
        _
      $region66: #{pointnet_feat.3} parent=5 // pred_check_branch
        %422 = sbr.rel (%p419) target = $region68
      $region67: #{pointnet_feat.3} parent=5 // pred_region
        %s423 = ssub.s32 %s23, 1
        // Predicated region
        $region69: #{pointnet_feat.3} parent=67 // pred_check
          %p424 = pneg %p152
        $region70: #{pointnet_feat.3} parent=67 // pred_check_branch
          %426 = sbr.rel (%p424) target = $region72
        $region71: #{pointnet_feat.3} parent=67 // pred_region
          %427 = dma.done [#allocation3], 512
        $region72: #{pointnet_feat.3} parent=67 // pred_fallthru
          _
        // Predicated region
        $region73: #{pointnet_feat.3} parent=67 // pred_check
          %p428 = pneg %p236
        $region74: #{pointnet_feat.3} parent=67 // pred_check_branch
          %430 = sbr.rel (%p428) target = $region76
        $region75: #{pointnet_feat.3} parent=67 // pred_region
          %431 = dma.done [#allocation6], 1024
        $region76: #{pointnet_feat.3} parent=67 // pred_fallthru
          _
        %s432 = smul.u32 2, %s33
        %p433 = scmp.lt.s32.totalorder %s32, 1
        %s434 = scalar_select %p433, %s32, 1
        %p435 = scmp.lt.s32.totalorder %s432, 7
        %s436 = scalar_select %p435, %s432, 7
        %s437 = smul.addr %s434, 8
        %s438 = sadd.s32 %s436, %s437
        %s439 = smul.addr %s438, 4
        %s440 = scalar_lea.vmem %s0, %s439
        %p441 = pneg %p63
        %p442 = pneg %p60
        %p443 = scmp.lt.s32.totalorder %s32, 1
        %s444 = scalar_select %p443, %s32, 1
        %s445 = smul.addr %s444, 8
        %s446 = smul.addr %s445, 8
        %s447 = scalar_lea.vmem %s1, %s446
        %p448 = pneg %p89
        %p449 = pneg %p86
        %p450 = pneg %p110
        %p451 = pneg %p107
        %p452 = pneg %p131
        %p453 = pneg %p128
        %p454 = pneg %p152
        %p455 = pneg %p149
        %p456 = pneg %p173
        %p457 = pneg %p170
        %p458 = pneg %p194
        %p459 = pneg %p191
        %p460 = pneg %p215
        %p461 = pneg %p212
        %p462 = pneg %p236
        %p463 = pneg %p233
        %p464 = pneg %p257
        %p465 = pneg %p254
        %p466 = pneg %p278
        %p467 = pneg %p275
        %p468 = pneg %p299
        %p469 = pneg %p296
        %p470 = pneg %p327
        %p471 = pneg %p324
        %s472 = sand.u32 %s314, 1
        %s473 = scalar_lea.sflag [#allocation4], %s472
        %s474 = sand.u32 %s314, 1
        %s475 = smul.addr %s474, 384
        %s476 = scalar_lea.vmem [#allocation7], %s475
        %s477 = smul.u32 2, %s33
        %p478 = scmp.lt.s32.totalorder %s32, 1
        %s479 = scalar_select %p478, %s32, 1
        %p480 = scmp.lt.s32.totalorder %s477, 7
        %s481 = scalar_select %p480, %s477, 7
        %s482 = smul.addr %s479, 8
        %s483 = sadd.s32 %s481, %s482
        %s484 = smul.addr %s483, 4
        %s485 = scalar_lea.vmem %s0, %s484
        %s486 = smul.u32 2, %s33
        %p487 = scmp.lt.s32.totalorder %s32, 1
        %s488 = scalar_select %p487, %s32, 1
        %s489 = smul.addr %s488, 8
        %s490 = smul.addr %s489, 8
        %s491 = scalar_lea.vmem %s1, %s490
        %s492 = smul.u32 2, %s33
        %v493 = vld [vmem:[%s485] sm:$0x77]
        %v494 = vld [vmem:[%s2] sm:$0xff]
        %v495 = vld [vmem:[%s2 + $0x8] sm:$0xff]
        %v496 = vld [vmem:[%s2 + $0x10] sm:$0xff]
        %v497 = vld [vmem:[%s2 + $0x18] sm:$0xff]
        %v498 = vld [vmem:[%s3] sm:$0xff]
        %v499 = vld [vmem:[%s3 + $0x8] sm:$0xff]
        %v500 = vld [vmem:[%s3 + $0x10] sm:$0xff]
        %v501 = vld [vmem:[%s3 + $0x18] sm:$0xff]
        %503 = vset.pattern.permute.xlu0 0
        %504 = vperm.xlu0 %503, %v498
        %v505 = vpop.permute.xlu0 %504
        %508 = vset.pattern.permute.xlu0 0
        %509 = vperm.xlu0 %508, %v499
        %v510 = vpop.permute.xlu0 %509
        %513 = vset.pattern.permute.xlu0 0
        %514 = vperm.xlu0 %513, %v500
        %v515 = vpop.permute.xlu0 %514
        %518 = vset.pattern.permute.xlu0 0
        %519 = vperm.xlu0 %518, %v501
        %v520 = vpop.permute.xlu0 %519
        %v523 = vcombine.high %v493, %v493
        %vm524 = vcmask 23552
        %v526 = vsel %vm524, %v494, 0
        %v529 = vsel %vm524, %v495, 0
        %v532 = vsel %vm524, %v496, 0
        %v535 = vsel %vm524, %v497, 0
        %vm537 = vcmask 1042432
        %v538 = vsel %vm537, %v493, 0
        %v540 = vsel %vm537, %v523, 0
        %542 = vmatprep.subr.mxu0 %v540
        %543 = vmatpush1.msra.mxu0 %v538
        %544 = vmatprep.subr.mxu0 0.0
        %545 = vmatpush1.msra.mxu0 0.0
        %546 = vmatprep.subr.mxu0 0.0
        %547 = vmatpush1.msra.mxu0 0.0
        %548 = vmatprep.subr.mxu0 0.0
        %549 = vmatpush1.msra.mxu0 0.0
        %550 = vmatprep.subr.mxu0 0.0
        %551 = vmatpush1.msra.mxu0 0.0
        %552 = vmatprep.subr.mxu0 0.0
        %553 = vmatpush1.msra.mxu0 0.0
        %554 = vmatprep.subr.mxu0 0.0
        %555 = vmatpush1.msra.mxu0 0.0
        %556 = vmatprep.subr.mxu0 0.0
        %557 = vmatpush1.msra.mxu0 0.0
        %558 = vmatprep.subr.mxu0 0.0
        %559 = vmatpush1.msra.mxu0 0.0
        %560 = vmatprep.subr.mxu0 0.0
        %561 = vmatpush1.msra.mxu0 0.0
        %562 = vmatprep.subr.mxu0 0.0
        %563 = vmatpush1.msra.mxu0 0.0
        %564 = vmatprep.subr.mxu0 0.0
        %565 = vmatpush1.msra.mxu0 0.0
        %566 = vmatprep.subr.mxu0 0.0
        %567 = vmatpush1.msra.mxu0 0.0
        %568 = vmatprep.subr.mxu0 0.0
        %569 = vmatpush1.msra.mxu0 0.0
        %570 = vmatprep.subr.mxu0 0.0
        %571 = vmatpush1.msra.mxu0 0.0
        %572 = vmatprep.subr.mxu0 0.0
        %573 = vmatpush1.msra.mxu0 0.0
        %574 = vmatprep.subr.mxu0 0.0
        %575 = vmatpush1.msra.mxu0 0.0
        %576 = vmatprep.subr.mxu0 0.0
        %577 = vmatpush1.msra.mxu0 0.0
        %578 = vmatprep.subr.mxu0 0.0
        %579 = vmatpush1.msra.mxu0 0.0
        %580 = vmatprep.subr.mxu0 0.0
        %581 = vmatpush1.msra.mxu0 0.0
        %582 = vmatprep.subr.mxu0 0.0
        %583 = vmatpush1.msra.mxu0 0.0
        %584 = vmatprep.subr.mxu0 0.0
        %585 = vmatpush1.msra.mxu0 0.0
        %586 = vmatprep.subr.mxu0 0.0
        %587 = vmatpush1.msra.mxu0 0.0
        %588 = vmatprep.subr.mxu0 0.0
        %589 = vmatpush1.msra.mxu0 0.0
        %590 = vmatprep.subr.mxu0 0.0
        %591 = vmatpush1.msra.mxu0 0.0
        %592 = vmatprep.subr.mxu0 0.0
        %593 = vmatpush1.msra.mxu0 0.0
        %594 = vmatprep.subr.mxu0 0.0
        %595 = vmatpush1.msra.mxu0 0.0
        %596 = vmatprep.subr.mxu0 0.0
        %597 = vmatpush1.msra.mxu0 0.0
        %598 = vmatprep.subr.mxu0 0.0
        %599 = vmatpush1.msra.mxu0 0.0
        %600 = vmatprep.subr.mxu0 0.0
        %601 = vmatpush1.msra.mxu0 0.0
        %602 = vmatprep.subr.mxu0 0.0
        %603 = vmatpush1.msra.mxu0 0.0
        %604 = vmatprep.subr.mxu0 0.0
        %605 = vmatpush1.msra.mxu0 0.0
        %606 = vmatprep.mubr.f32.mxu0 0.0
        %607 = vmatmul.mubr.f32.gmra.mrb[0].mxu0 %v526
        %v608 = vpop.f32.mrb[0].mxu0
        %v609 = vadd.f32 %v505, %v608
        %v610 = vpop.f32.mrb[0].mxu0
        %v611 = vadd.f32 %v505, %v610
        %612 = vmatprep.mubr.f32.mxu0 0.0
        %613 = vmatmul.mubr.f32.gmra.mrb[0].mxu0 %v529
        %v614 = vpop.f32.mrb[0].mxu0
        %v615 = vadd.f32 %v510, %v614
        %v616 = vpop.f32.mrb[0].mxu0
        %v617 = vadd.f32 %v510, %v616
        %618 = vmatprep.mubr.f32.mxu0 0.0
        %619 = vmatmul.mubr.f32.gmra.mrb[0].mxu0 %v532
        %v620 = vpop.f32.mrb[0].mxu0
        %v621 = vadd.f32 %v515, %v620
        %v622 = vpop.f32.mrb[0].mxu0
        %v623 = vadd.f32 %v515, %v622
        %624 = vmatprep.mubr.f32.mxu0 0.0
        %625 = vmatmul.mubr.f32.gmra.mrb[0].mxu0 %v535
        %v626 = vpop.f32.mrb[0].mxu0
        %v627 = vadd.f32 %v520, %v626
        %v628 = vpop.f32.mrb[0].mxu0
        %v629 = vadd.f32 %v520, %v628
        %630 = vdwg.mxu0
        %v631 = vmax.f32 %v609, 0.0
        %v632 = vmax.f32 %v611, 0.0
        %v633 = vmax.f32 %v615, 0.0
        %v634 = vmax.f32 %v617, 0.0
        %v635 = vmax.f32 %v621, 0.0
        %v636 = vmax.f32 %v623, 0.0
        %v637 = vmax.f32 %v627, 0.0
        %v638 = vmax.f32 %v629, 0.0
        %v639 = vld [vmem:[#allocation2] sm:$0xff]
        %v640 = vld [vmem:[#allocation2 + $0x8] sm:$0xff]
        %v641 = vld [vmem:[#allocation2 + $0x10] sm:$0xff]
        %v642 = vld [vmem:[#allocation2 + $0x18] sm:$0xff]
        %v643 = vld [vmem:[%s5] sm:$0xff]
        %v644 = vld [vmem:[%s5 + $0x8] sm:$0xff]
        %v645 = vld [vmem:[%s5 + $0x10] sm:$0xff]
        %v646 = vld [vmem:[%s5 + $0x18] sm:$0xff]
        %648 = vset.pattern.permute.xlu0 0
        %649 = vperm.xlu0 %648, %v643
        %v650 = vpop.permute.xlu0 %649
        %653 = vset.pattern.permute.xlu0 0
        %654 = vperm.xlu0 %653, %v644
        %v655 = vpop.permute.xlu0 %654
        %658 = vset.pattern.permute.xlu0 0
        %659 = vperm.xlu0 %658, %v645
        %v660 = vpop.permute.xlu0 %659
        %663 = vset.pattern.permute.xlu0 0
        %664 = vperm.xlu0 %663, %v646
        %v665 = vpop.permute.xlu0 %664
        %vm667 = vcmask 261120
        %v669 = vsel %vm667, %v639, 0
        %v672 = vsel %vm667, %v640, 0
        %v675 = vsel %vm667, %v641, 0
        %v678 = vsel %vm667, %v642, 0
        %680 = vmatprep.subr.mxu0 %v632
        %681 = vmatpush1.msra.mxu0 %v631
        %682 = vmatprep.subr.mxu0 %v634
        %683 = vmatpush1.msra.mxu0 %v633
        %684 = vmatprep.subr.mxu0 %v636
        %685 = vmatpush1.msra.mxu0 %v635
        %686 = vmatprep.subr.mxu0 %v638
        %687 = vmatpush1.msra.mxu0 %v637
        %688 = vmatprep.subr.mxu0 0.0
        %689 = vmatpush1.msra.mxu0 0.0
        %690 = vmatprep.subr.mxu0 0.0
        %691 = vmatpush1.msra.mxu0 0.0
        %692 = vmatprep.subr.mxu0 0.0
        %693 = vmatpush1.msra.mxu0 0.0
        %694 = vmatprep.subr.mxu0 0.0
        %695 = vmatpush1.msra.mxu0 0.0
        %696 = vmatprep.subr.mxu0 0.0
        %697 = vmatpush1.msra.mxu0 0.0
        %698 = vmatprep.subr.mxu0 0.0
        %699 = vmatpush1.msra.mxu0 0.0
        %700 = vmatprep.subr.mxu0 0.0
        %701 = vmatpush1.msra.mxu0 0.0
        %702 = vmatprep.subr.mxu0 0.0
        %703 = vmatpush1.msra.mxu0 0.0
        %704 = vmatprep.subr.mxu0 0.0
        %705 = vmatpush1.msra.mxu0 0.0
        %706 = vmatprep.subr.mxu0 0.0
        %707 = vmatpush1.msra.mxu0 0.0
        %708 = vmatprep.subr.mxu0 0.0
        %709 = vmatpush1.msra.mxu0 0.0
        %710 = vmatprep.subr.mxu0 0.0
        %711 = vmatpush1.msra.mxu0 0.0
        %712 = vmatprep.subr.mxu0 0.0
        %713 = vmatpush1.msra.mxu0 0.0
        %714 = vmatprep.subr.mxu0 0.0
        %715 = vmatpush1.msra.mxu0 0.0
        %716 = vmatprep.subr.mxu0 0.0
        %717 = vmatpush1.msra.mxu0 0.0
        %718 = vmatprep.subr.mxu0 0.0
        %719 = vmatpush1.msra.mxu0 0.0
        %720 = vmatprep.subr.mxu0 0.0
        %721 = vmatpush1.msra.mxu0 0.0
        %722 = vmatprep.subr.mxu0 0.0
        %723 = vmatpush1.msra.mxu0 0.0
        %724 = vmatprep.subr.mxu0 0.0
        %725 = vmatpush1.msra.mxu0 0.0
        %726 = vmatprep.subr.mxu0 0.0
        %727 = vmatpush1.msra.mxu0 0.0
        %728 = vmatprep.subr.mxu0 0.0
        %729 = vmatpush1.msra.mxu0 0.0
        %730 = vmatprep.subr.mxu0 0.0
        %731 = vmatpush1.msra.mxu0 0.0
        %732 = vmatprep.subr.mxu0 0.0
        %733 = vmatpush1.msra.mxu0 0.0
        %734 = vmatprep.subr.mxu0 0.0
        %735 = vmatpush1.msra.mxu0 0.0
        %736 = vmatprep.subr.mxu0 0.0
        %737 = vmatpush1.msra.mxu0 0.0
        %738 = vmatprep.subr.mxu0 0.0
        %739 = vmatpush1.msra.mxu0 0.0
        %740 = vmatprep.subr.mxu0 0.0
        %741 = vmatpush1.msra.mxu0 0.0
        %742 = vmatprep.subr.mxu0 0.0
        %743 = vmatpush1.msra.mxu0 0.0
        %744 = vmatprep.mubr.f32.mxu0 0.0
        %745 = vmatmul.mubr.f32.gmra.mrb[0].mxu0 %v669
        %v746 = vpop.f32.mrb[0].mxu0
        %v747 = vadd.f32 %v650, %v746
        %v748 = vpop.f32.mrb[0].mxu0
        %v749 = vadd.f32 %v650, %v748
        %750 = vmatprep.mubr.f32.mxu0 0.0
        %751 = vmatmul.mubr.f32.gmra.mrb[0].mxu0 %v672
        %v752 = vpop.f32.mrb[0].mxu0
        %v753 = vadd.f32 %v655, %v752
        %v754 = vpop.f32.mrb[0].mxu0
        %v755 = vadd.f32 %v655, %v754
        %756 = vmatprep.mubr.f32.mxu0 0.0
        %757 = vmatmul.mubr.f32.gmra.mrb[0].mxu0 %v675
        %v758 = vpop.f32.mrb[0].mxu0
        %v759 = vadd.f32 %v660, %v758
        %v760 = vpop.f32.mrb[0].mxu0
        %v761 = vadd.f32 %v660, %v760
        %762 = vmatprep.mubr.f32.mxu0 0.0
        %763 = vmatmul.mubr.f32.gmra.mrb[0].mxu0 %v678
        %v764 = vpop.f32.mrb[0].mxu0
        %v765 = vadd.f32 %v665, %v764
        %v766 = vpop.f32.mrb[0].mxu0
        %v767 = vadd.f32 %v665, %v766
        %768 = vdwg.mxu0
        %v769 = vmax.f32 %v747, 0.0
        %v770 = vmax.f32 %v749, 0.0
        %v771 = vmax.f32 %v753, 0.0
        %v772 = vmax.f32 %v755, 0.0
        %v773 = vmax.f32 %v759, 0.0
        %v774 = vmax.f32 %v761, 0.0
        %v775 = vmax.f32 %v765, 0.0
        %v776 = vmax.f32 %v767, 0.0
        %v777 = vld [vmem:[%s6] sm:$0xff]
        %v778 = vld [vmem:[%s6 + $0x8] sm:$0xff]
        %v779 = vld [vmem:[%s6 + $0x10] sm:$0xff]
        %v780 = vld [vmem:[%s6 + $0x18] sm:$0xff]
        %v781 = vld [vmem:[%s6 + $0x20] sm:$0xff]
        %v782 = vld [vmem:[%s6 + $0x28] sm:$0xff]
        %v783 = vld [vmem:[%s6 + $0x30] sm:$0xff]
        %v784 = vld [vmem:[%s6 + $0x38] sm:$0xff]
        %v785 = vld [vmem:[%s7] sm:$0xff]
        %v786 = vld [vmem:[%s7 + $0x8] sm:$0xff]
        %v787 = vld [vmem:[%s7 + $0x10] sm:$0xff]
        %v788 = vld [vmem:[%s7 + $0x18] sm:$0xff]
        %v789 = vld [vmem:[%s7 + $0x20] sm:$0xff]
        %v790 = vld [vmem:[%s7 + $0x28] sm:$0xff]
        %v791 = vld [vmem:[%s7 + $0x30] sm:$0xff]
        %v792 = vld [vmem:[%s7 + $0x38] sm:$0xff]
        %794 = vset.pattern.permute.xlu0 0
        %795 = vperm.xlu0 %794, %v785
        %v796 = vpop.permute.xlu0 %795
        %799 = vset.pattern.permute.xlu0 0
        %800 = vperm.xlu0 %799, %v786
        %v801 = vpop.permute.xlu0 %800
        %804 = vset.pattern.permute.xlu0 0
        %805 = vperm.xlu0 %804, %v787
        %v806 = vpop.permute.xlu0 %805
        %809 = vset.pattern.permute.xlu0 0
        %810 = vperm.xlu0 %809, %v788
        %v811 = vpop.permute.xlu0 %810
        %814 = vset.pattern.permute.xlu0 0
        %815 = vperm.xlu0 %814, %v789
        %v816 = vpop.permute.xlu0 %815
        %819 = vset.pattern.permute.xlu0 0
        %820 = vperm.xlu0 %819, %v790
        %v821 = vpop.permute.xlu0 %820
        %824 = vset.pattern.permute.xlu0 0
        %825 = vperm.xlu0 %824, %v791
        %v826 = vpop.permute.xlu0 %825
        %829 = vset.pattern.permute.xlu0 0
        %830 = vperm.xlu0 %829, %v792
        %v831 = vpop.permute.xlu0 %830
        %v834 = vsel %vm667, %v777, 0
        %v837 = vsel %vm667, %v778, 0
        %v840 = vsel %vm667, %v779, 0
        %v843 = vsel %vm667, %v780, 0
        %v846 = vsel %vm667, %v781, 0
        %v849 = vsel %vm667, %v782, 0
        %v852 = vsel %vm667, %v783, 0
        %v855 = vsel %vm667, %v784, 0
        %857 = vmatprep.subr.mxu0 %v770
        %858 = vmatpush1.msra.mxu0 %v769
        %859 = vmatprep.subr.mxu0 %v772
        %860 = vmatpush1.msra.mxu0 %v771
        %861 = vmatprep.subr.mxu0 %v774
        %862 = vmatpush1.msra.mxu0 %v773
        %863 = vmatprep.subr.mxu0 %v776
        %864 = vmatpush1.msra.mxu0 %v775
        %865 = vmatprep.subr.mxu0 0.0
        %866 = vmatpush1.msra.mxu0 0.0
        %867 = vmatprep.subr.mxu0 0.0
        %868 = vmatpush1.msra.mxu0 0.0
        %869 = vmatprep.subr.mxu0 0.0
        %870 = vmatpush1.msra.mxu0 0.0
        %871 = vmatprep.subr.mxu0 0.0
        %872 = vmatpush1.msra.mxu0 0.0
        %873 = vmatprep.subr.mxu0 0.0
        %874 = vmatpush1.msra.mxu0 0.0
        %875 = vmatprep.subr.mxu0 0.0
        %876 = vmatpush1.msra.mxu0 0.0
        %877 = vmatprep.subr.mxu0 0.0
        %878 = vmatpush1.msra.mxu0 0.0
        %879 = vmatprep.subr.mxu0 0.0
        %880 = vmatpush1.msra.mxu0 0.0
        %881 = vmatprep.subr.mxu0 0.0
        %882 = vmatpush1.msra.mxu0 0.0
        %883 = vmatprep.subr.mxu0 0.0
        %884 = vmatpush1.msra.mxu0 0.0
        %885 = vmatprep.subr.mxu0 0.0
        %886 = vmatpush1.msra.mxu0 0.0
        %887 = vmatprep.subr.mxu0 0.0
        %888 = vmatpush1.msra.mxu0 0.0
        %889 = vmatprep.subr.mxu0 0.0
        %890 = vmatpush1.msra.mxu0 0.0
        %891 = vmatprep.subr.mxu0 0.0
        %892 = vmatpush1.msra.mxu0 0.0
        %893 = vmatprep.subr.mxu0 0.0
        %894 = vmatpush1.msra.mxu0 0.0
        %895 = vmatprep.subr.mxu0 0.0
        %896 = vmatpush1.msra.mxu0 0.0
        %897 = vmatprep.subr.mxu0 0.0
        %898 = vmatpush1.msra.mxu0 0.0
        %899 = vmatprep.subr.mxu0 0.0
        %900 = vmatpush1.msra.mxu0 0.0
        %901 = vmatprep.subr.mxu0 0.0
        %902 = vmatpush1.msra.mxu0 0.0
        %903 = vmatprep.subr.mxu0 0.0
        %904 = vmatpush1.msra.mxu0 0.0
        %905 = vmatprep.subr.mxu0 0.0
        %906 = vmatpush1.msra.mxu0 0.0
        %907 = vmatprep.subr.mxu0 0.0
        %908 = vmatpush1.msra.mxu0 0.0
        %909 = vmatprep.subr.mxu0 0.0
        %910 = vmatpush1.msra.mxu0 0.0
        %911 = vmatprep.subr.mxu0 0.0
        %912 = vmatpush1.msra.mxu0 0.0
        %913 = vmatprep.subr.mxu0 0.0
        %914 = vmatpush1.msra.mxu0 0.0
        %915 = vmatprep.subr.mxu0 0.0
        %916 = vmatpush1.msra.mxu0 0.0
        %917 = vmatprep.subr.mxu0 0.0
        %918 = vmatpush1.msra.mxu0 0.0
        %919 = vmatprep.subr.mxu0 0.0
        %920 = vmatpush1.msra.mxu0 0.0
        %921 = vmatprep.mubr.f32.mxu0 0.0
        %922 = vmatmul.mubr.f32.gmra.mrb[0].mxu0 %v834
        %v923 = vpop.f32.mrb[0].mxu0
        %v924 = vadd.f32 %v796, %v923
        %v925 = vpop.f32.mrb[0].mxu0
        %v926 = vadd.f32 %v796, %v925
        %927 = vmatprep.mubr.f32.mxu0 0.0
        %928 = vmatmul.mubr.f32.gmra.mrb[0].mxu0 %v837
        %v929 = vpop.f32.mrb[0].mxu0
        %v930 = vadd.f32 %v801, %v929
        %v931 = vpop.f32.mrb[0].mxu0
        %v932 = vadd.f32 %v801, %v931
        %933 = vmatprep.mubr.f32.mxu0 0.0
        %934 = vmatmul.mubr.f32.gmra.mrb[0].mxu0 %v840
        %v935 = vpop.f32.mrb[0].mxu0
        %v936 = vadd.f32 %v806, %v935
        %v937 = vpop.f32.mrb[0].mxu0
        %v938 = vadd.f32 %v806, %v937
        %939 = vmatprep.mubr.f32.mxu0 0.0
        %940 = vmatmul.mubr.f32.gmra.mrb[0].mxu0 %v843
        %v941 = vpop.f32.mrb[0].mxu0
        %v942 = vadd.f32 %v811, %v941
        %v943 = vpop.f32.mrb[0].mxu0
        %v944 = vadd.f32 %v811, %v943
        %945 = vmatprep.mubr.f32.mxu0 0.0
        %946 = vmatmul.mubr.f32.gmra.mrb[0].mxu0 %v846
        %v947 = vpop.f32.mrb[0].mxu0
        %v948 = vadd.f32 %v816, %v947
        %v949 = vpop.f32.mrb[0].mxu0
        %v950 = vadd.f32 %v816, %v949
        %951 = vmatprep.mubr.f32.mxu0 0.0
        %952 = vmatmul.mubr.f32.gmra.mrb[0].mxu0 %v849
        %v953 = vpop.f32.mrb[0].mxu0
        %v954 = vadd.f32 %v821, %v953
        %v955 = vpop.f32.mrb[0].mxu0
        %v956 = vadd.f32 %v821, %v955
        %957 = vmatprep.mubr.f32.mxu0 0.0
        %958 = vmatmul.mubr.f32.gmra.mrb[0].mxu0 %v852
        %v959 = vpop.f32.mrb[0].mxu0
        %v960 = vadd.f32 %v826, %v959
        %v961 = vpop.f32.mrb[0].mxu0
        %v962 = vadd.f32 %v826, %v961
        %963 = vmatprep.mubr.f32.mxu0 0.0
        %964 = vmatmul.mubr.f32.gmra.mrb[0].mxu0 %v855
        %v965 = vpop.f32.mrb[0].mxu0
        %v966 = vadd.f32 %v831, %v965
        %v967 = vpop.f32.mrb[0].mxu0
        %v968 = vadd.f32 %v831, %v967
        %969 = vdwg.mxu0
        %v970 = vmax.f32 %v924, 0.0
        %v971 = vmax.f32 %v926, 0.0
        %v972 = vmax.f32 %v930, 0.0
        %v973 = vmax.f32 %v932, 0.0
        %v974 = vmax.f32 %v936, 0.0
        %v975 = vmax.f32 %v938, 0.0
        %v976 = vmax.f32 %v942, 0.0
        %v977 = vmax.f32 %v944, 0.0
        %v978 = vmax.f32 %v948, 0.0
        %v979 = vmax.f32 %v950, 0.0
        %v980 = vmax.f32 %v954, 0.0
        %v981 = vmax.f32 %v956, 0.0
        %v982 = vmax.f32 %v960, 0.0
        %v983 = vmax.f32 %v962, 0.0
        %v984 = vmax.f32 %v966, 0.0
        %v985 = vmax.f32 %v968, 0.0
        %v986 = vld [vmem:[#allocation5] sm:$0xff]
        %v987 = vld [vmem:[#allocation5 + $0x8] sm:$0xff]
        %v988 = vld [vmem:[#allocation5 + $0x10] sm:$0xff]
        %v989 = vld [vmem:[#allocation5 + $0x18] sm:$0xff]
        %v990 = vld [vmem:[#allocation5 + $0x20] sm:$0xff]
        %v991 = vld [vmem:[#allocation5 + $0x28] sm:$0xff]
        %v992 = vld [vmem:[#allocation5 + $0x30] sm:$0xff]
        %v993 = vld [vmem:[#allocation5 + $0x38] sm:$0xff]
        %v994 = vld [vmem:[%s9] sm:$0xff]
        %v995 = vld [vmem:[%s9 + $0x8] sm:$0xff]
        %v996 = vld [vmem:[%s9 + $0x10] sm:$0xff]
        %v997 = vld [vmem:[%s9 + $0x18] sm:$0xff]
        %v998 = vld [vmem:[%s9 + $0x20] sm:$0xff]
        %v999 = vld [vmem:[%s9 + $0x28] sm:$0xff]
        %v1000 = vld [vmem:[%s9 + $0x30] sm:$0xff]
        %v1001 = vld [vmem:[%s9 + $0x38] sm:$0xff]
        %1003 = vset.pattern.permute.xlu0 0
        %1004 = vperm.xlu0 %1003, %v994
        %v1005 = vpop.permute.xlu0 %1004
        %1008 = vset.pattern.permute.xlu0 0
        %1009 = vperm.xlu0 %1008, %v995
        %v1010 = vpop.permute.xlu0 %1009
        %1013 = vset.pattern.permute.xlu0 0
        %1014 = vperm.xlu0 %1013, %v996
        %v1015 = vpop.permute.xlu0 %1014
        %1018 = vset.pattern.permute.xlu0 0
        %1019 = vperm.xlu0 %1018, %v997
        %v1020 = vpop.permute.xlu0 %1019
        %1023 = vset.pattern.permute.xlu0 0
        %1024 = vperm.xlu0 %1023, %v998
        %v1025 = vpop.permute.xlu0 %1024
        %1028 = vset.pattern.permute.xlu0 0
        %1029 = vperm.xlu0 %1028, %v999
        %v1030 = vpop.permute.xlu0 %1029
        %1033 = vset.pattern.permute.xlu0 0
        %1034 = vperm.xlu0 %1033, %v1000
        %v1035 = vpop.permute.xlu0 %1034
        %1038 = vset.pattern.permute.xlu0 0
        %1039 = vperm.xlu0 %1038, %v1001
        %v1040 = vpop.permute.xlu0 %1039
        %vm1042 = vcmask 523264
        %v1044 = vsel %vm1042, %v986, 0
        %v1047 = vsel %vm1042, %v987, 0
        %v1050 = vsel %vm1042, %v988, 0
        %v1053 = vsel %vm1042, %v989, 0
        %v1056 = vsel %vm1042, %v990, 0
        %v1059 = vsel %vm1042, %v991, 0
        %v1062 = vsel %vm1042, %v992, 0
        %v1065 = vsel %vm1042, %v993, 0
        %1067 = vmatprep.subr.mxu0 %v971
        %1068 = vmatpush1.msra.mxu0 %v970
        %1069 = vmatprep.subr.mxu0 %v973
        %1070 = vmatpush1.msra.mxu0 %v972
        %1071 = vmatprep.subr.mxu0 %v975
        %1072 = vmatpush1.msra.mxu0 %v974
        %1073 = vmatprep.subr.mxu0 %v977
        %1074 = vmatpush1.msra.mxu0 %v976
        %1075 = vmatprep.subr.mxu0 %v979
        %1076 = vmatpush1.msra.mxu0 %v978
        %1077 = vmatprep.subr.mxu0 %v981
        %1078 = vmatpush1.msra.mxu0 %v980
        %1079 = vmatprep.subr.mxu0 %v983
        %1080 = vmatpush1.msra.mxu0 %v982
        %1081 = vmatprep.subr.mxu0 %v985
        %1082 = vmatpush1.msra.mxu0 %v984
        %1083 = vmatprep.subr.mxu0 0.0
        %1084 = vmatpush1.msra.mxu0 0.0
        %1085 = vmatprep.subr.mxu0 0.0
        %1086 = vmatpush1.msra.mxu0 0.0
        %1087 = vmatprep.subr.mxu0 0.0
        %1088 = vmatpush1.msra.mxu0 0.0
        %1089 = vmatprep.subr.mxu0 0.0
        %1090 = vmatpush1.msra.mxu0 0.0
        %1091 = vmatprep.subr.mxu0 0.0
        %1092 = vmatpush1.msra.mxu0 0.0
        %1093 = vmatprep.subr.mxu0 0.0
        %1094 = vmatpush1.msra.mxu0 0.0
        %1095 = vmatprep.subr.mxu0 0.0
        %1096 = vmatpush1.msra.mxu0 0.0
        %1097 = vmatprep.subr.mxu0 0.0
        %1098 = vmatpush1.msra.mxu0 0.0
        %1099 = vmatprep.subr.mxu0 0.0
        %1100 = vmatpush1.msra.mxu0 0.0
        %1101 = vmatprep.subr.mxu0 0.0
        %1102 = vmatpush1.msra.mxu0 0.0
        %1103 = vmatprep.subr.mxu0 0.0
        %1104 = vmatpush1.msra.mxu0 0.0
        %1105 = vmatprep.subr.mxu0 0.0
        %1106 = vmatpush1.msra.mxu0 0.0
        %1107 = vmatprep.subr.mxu0 0.0
        %1108 = vmatpush1.msra.mxu0 0.0
        %1109 = vmatprep.subr.mxu0 0.0
        %1110 = vmatpush1.msra.mxu0 0.0
        %1111 = vmatprep.subr.mxu0 0.0
        %1112 = vmatpush1.msra.mxu0 0.0
        %1113 = vmatprep.subr.mxu0 0.0
        %1114 = vmatpush1.msra.mxu0 0.0
        %1115 = vmatprep.subr.mxu0 0.0
        %1116 = vmatpush1.msra.mxu0 0.0
        %1117 = vmatprep.subr.mxu0 0.0
        %1118 = vmatpush1.msra.mxu0 0.0
        %1119 = vmatprep.subr.mxu0 0.0
        %1120 = vmatpush1.msra.mxu0 0.0
        %1121 = vmatprep.subr.mxu0 0.0
        %1122 = vmatpush1.msra.mxu0 0.0
        %1123 = vmatprep.subr.mxu0 0.0
        %1124 = vmatpush1.msra.mxu0 0.0
        %1125 = vmatprep.subr.mxu0 0.0
        %1126 = vmatpush1.msra.mxu0 0.0
        %1127 = vmatprep.subr.mxu0 0.0
        %1128 = vmatpush1.msra.mxu0 0.0
        %1129 = vmatprep.subr.mxu0 0.0
        %1130 = vmatpush1.msra.mxu0 0.0
        %1131 = vmatprep.mubr.f32.mxu0 0.0
        %1132 = vmatmul.mubr.f32.gmra.mrb[0].mxu0 %v1044
        %v1133 = vpop.f32.mrb[0].mxu0
        %v1134 = vadd.f32 %v1005, %v1133
        %v1135 = vpop.f32.mrb[0].mxu0
        %v1136 = vadd.f32 %v1005, %v1135
        %1137 = vmatprep.mubr.f32.mxu0 0.0
        %1138 = vmatmul.mubr.f32.gmra.mrb[0].mxu0 %v1047
        %v1139 = vpop.f32.mrb[0].mxu0
        %v1140 = vadd.f32 %v1010, %v1139
        %v1141 = vpop.f32.mrb[0].mxu0
        %v1142 = vadd.f32 %v1010, %v1141
        %1143 = vmatprep.mubr.f32.mxu0 0.0
        %1144 = vmatmul.mubr.f32.gmra.mrb[0].mxu0 %v1050
        %v1145 = vpop.f32.mrb[0].mxu0
        %v1146 = vadd.f32 %v1015, %v1145
        %v1147 = vpop.f32.mrb[0].mxu0
        %v1148 = vadd.f32 %v1015, %v1147
        %1149 = vmatprep.mubr.f32.mxu0 0.0
        %1150 = vmatmul.mubr.f32.gmra.mrb[0].mxu0 %v1053
        %v1151 = vpop.f32.mrb[0].mxu0
        %v1152 = vadd.f32 %v1020, %v1151
        %v1153 = vpop.f32.mrb[0].mxu0
        %v1154 = vadd.f32 %v1020, %v1153
        %1155 = vmatprep.mubr.f32.mxu0 0.0
        %1156 = vmatmul.mubr.f32.gmra.mrb[0].mxu0 %v1056
        %v1157 = vpop.f32.mrb[0].mxu0
        %v1158 = vadd.f32 %v1025, %v1157
        %v1159 = vpop.f32.mrb[0].mxu0
        %v1160 = vadd.f32 %v1025, %v1159
        %1161 = vmatprep.mubr.f32.mxu0 0.0
        %1162 = vmatmul.mubr.f32.gmra.mrb[0].mxu0 %v1059
        %v1163 = vpop.f32.mrb[0].mxu0
        %v1164 = vadd.f32 %v1030, %v1163
        %v1165 = vpop.f32.mrb[0].mxu0
        %v1166 = vadd.f32 %v1030, %v1165
        %1167 = vmatprep.mubr.f32.mxu0 0.0
        %1168 = vmatmul.mubr.f32.gmra.mrb[0].mxu0 %v1062
        %v1169 = vpop.f32.mrb[0].mxu0
        %v1170 = vadd.f32 %v1035, %v1169
        %v1171 = vpop.f32.mrb[0].mxu0
        %v1172 = vadd.f32 %v1035, %v1171
        %1173 = vmatprep.mubr.f32.mxu0 0.0
        %1174 = vmatmul.mubr.f32.gmra.mrb[0].mxu0 %v1065
        %v1175 = vpop.f32.mrb[0].mxu0
        %v1176 = vadd.f32 %v1040, %v1175
        %v1177 = vpop.f32.mrb[0].mxu0
        %v1178 = vadd.f32 %v1040, %v1177
        %1179 = vdwg.mxu0
        %v1180 = vmax.f32 %v1134, 0.0
        %v1181 = vmax.f32 %v1136, 0.0
        %v1182 = vmax.f32 %v1140, 0.0
        %v1183 = vmax.f32 %v1142, 0.0
        %v1184 = vmax.f32 %v1146, 0.0
        %v1185 = vmax.f32 %v1148, 0.0
        %v1186 = vmax.f32 %v1152, 0.0
        %v1187 = vmax.f32 %v1154, 0.0
        %v1188 = vmax.f32 %v1158, 0.0
        %v1189 = vmax.f32 %v1160, 0.0
        %v1190 = vmax.f32 %v1164, 0.0
        %v1191 = vmax.f32 %v1166, 0.0
        %v1192 = vmax.f32 %v1170, 0.0
        %v1193 = vmax.f32 %v1172, 0.0
        %v1194 = vmax.f32 %v1176, 0.0
        %v1195 = vmax.f32 %v1178, 0.0
        %v1196 = vld [vmem:[%s10] sm:$0xff]
        %v1197 = vld [vmem:[%s10 + $0x8] sm:$0xff]
        %v1198 = vld [vmem:[%s10 + $0x10] sm:$0xff]
        %v1199 = vld [vmem:[%s10 + $0x18] sm:$0xff]
        %v1200 = vld [vmem:[%s10 + $0x20] sm:$0xff]
        %v1201 = vld [vmem:[%s10 + $0x28] sm:$0xff]
        %v1202 = vld [vmem:[%s10 + $0x30] sm:$0xff]
        %v1203 = vld [vmem:[%s10 + $0x38] sm:$0xff]
        %v1204 = vld [vmem:[%s10 + $0x40] sm:$0xff]
        %v1205 = vld [vmem:[%s10 + $0x48] sm:$0xff]
        %v1206 = vld [vmem:[%s10 + $0x50] sm:$0xff]
        %v1207 = vld [vmem:[%s10 + $0x58] sm:$0xff]
        %v1208 = vld [vmem:[%s10 + $0x60] sm:$0xff]
        %v1209 = vld [vmem:[%s10 + $0x68] sm:$0xff]
        %v1210 = vld [vmem:[%s10 + $0x70] sm:$0xff]
        %v1211 = vld [vmem:[%s10 + $0x78] sm:$0xff]
        %v1212 = vld [vmem:[%s11] sm:$0xff]
        %v1213 = vld [vmem:[%s11 + $0x8] sm:$0xff]
        %v1214 = vld [vmem:[%s11 + $0x10] sm:$0xff]
        %v1215 = vld [vmem:[%s11 + $0x18] sm:$0xff]
        %v1216 = vld [vmem:[%s11 + $0x20] sm:$0xff]
        %v1217 = vld [vmem:[%s11 + $0x28] sm:$0xff]
        %v1218 = vld [vmem:[%s11 + $0x30] sm:$0xff]
        %v1219 = vld [vmem:[%s11 + $0x38] sm:$0xff]
        %v1220 = vld [vmem:[%s11 + $0x40] sm:$0xff]
        %v1221 = vld [vmem:[%s11 + $0x48] sm:$0xff]
        %v1222 = vld [vmem:[%s11 + $0x50] sm:$0xff]
        %v1223 = vld [vmem:[%s11 + $0x58] sm:$0xff]
        %v1224 = vld [vmem:[%s11 + $0x60] sm:$0xff]
        %v1225 = vld [vmem:[%s11 + $0x68] sm:$0xff]
        %v1226 = vld [vmem:[%s11 + $0x70] sm:$0xff]
        %v1227 = vld [vmem:[%s11 + $0x78] sm:$0xff]
        %1229 = vset.pattern.permute.xlu0 0
        %1230 = vperm.xlu0 %1229, %v1212
        %v1231 = vpop.permute.xlu0 %1230
        %1234 = vset.pattern.permute.xlu0 0
        %1235 = vperm.xlu0 %1234, %v1213
        %v1236 = vpop.permute.xlu0 %1235
        %1239 = vset.pattern.permute.xlu0 0
        %1240 = vperm.xlu0 %1239, %v1214
        %v1241 = vpop.permute.xlu0 %1240
        %1244 = vset.pattern.permute.xlu0 0
        %1245 = vperm.xlu0 %1244, %v1215
        %v1246 = vpop.permute.xlu0 %1245
        %1249 = vset.pattern.permute.xlu0 0
        %1250 = vperm.xlu0 %1249, %v1216
        %v1251 = vpop.permute.xlu0 %1250
        %1254 = vset.pattern.permute.xlu0 0
        %1255 = vperm.xlu0 %1254, %v1217
        %v1256 = vpop.permute.xlu0 %1255
        %1259 = vset.pattern.permute.xlu0 0
        %1260 = vperm.xlu0 %1259, %v1218
        %v1261 = vpop.permute.xlu0 %1260
        %1264 = vset.pattern.permute.xlu0 0
        %1265 = vperm.xlu0 %1264, %v1219
        %v1266 = vpop.permute.xlu0 %1265
        %1269 = vset.pattern.permute.xlu0 0
        %1270 = vperm.xlu0 %1269, %v1220
        %v1271 = vpop.permute.xlu0 %1270
        %1274 = vset.pattern.permute.xlu0 0
        %1275 = vperm.xlu0 %1274, %v1221
        %v1276 = vpop.permute.xlu0 %1275
        %1279 = vset.pattern.permute.xlu0 0
        %1280 = vperm.xlu0 %1279, %v1222
        %v1281 = vpop.permute.xlu0 %1280
        %1284 = vset.pattern.permute.xlu0 0
        %1285 = vperm.xlu0 %1284, %v1223
        %v1286 = vpop.permute.xlu0 %1285
        %1289 = vset.pattern.permute.xlu0 0
        %1290 = vperm.xlu0 %1289, %v1224
        %v1291 = vpop.permute.xlu0 %1290
        %1294 = vset.pattern.permute.xlu0 0
        %1295 = vperm.xlu0 %1294, %v1225
        %v1296 = vpop.permute.xlu0 %1295
        %1299 = vset.pattern.permute.xlu0 0
        %1300 = vperm.xlu0 %1299, %v1226
        %v1301 = vpop.permute.xlu0 %1300
        %1304 = vset.pattern.permute.xlu0 0
        %1305 = vperm.xlu0 %1304, %v1227
        %v1306 = vpop.permute.xlu0 %1305
        %v1309 = vsel %vm1042, %v1196, 0
        %v1312 = vsel %vm1042, %v1197, 0
        %v1315 = vsel %vm1042, %v1198, 0
        %v1318 = vsel %vm1042, %v1199, 0
        %v1321 = vsel %vm1042, %v1200, 0
        %v1324 = vsel %vm1042, %v1201, 0
        %v1327 = vsel %vm1042, %v1202, 0
        %v1330 = vsel %vm1042, %v1203, 0
        %v1333 = vsel %vm1042, %v1204, 0
        %v1336 = vsel %vm1042, %v1205, 0
        %v1339 = vsel %vm1042, %v1206, 0
        %v1342 = vsel %vm1042, %v1207, 0
        %v1345 = vsel %vm1042, %v1208, 0
        %v1348 = vsel %vm1042, %v1209, 0
        %v1351 = vsel %vm1042, %v1210, 0
        %v1354 = vsel %vm1042, %v1211, 0
        %1356 = vmatprep.subr.mxu0 %v1181
        %1357 = vmatpush1.msra.mxu0 %v1180
        %1358 = vmatprep.subr.mxu0 %v1183
        %1359 = vmatpush1.msra.mxu0 %v1182
        %1360 = vmatprep.subr.mxu0 %v1185
        %1361 = vmatpush1.msra.mxu0 %v1184
        %1362 = vmatprep.subr.mxu0 %v1187
        %1363 = vmatpush1.msra.mxu0 %v1186
        %1364 = vmatprep.subr.mxu0 %v1189
        %1365 = vmatpush1.msra.mxu0 %v1188
        %1366 = vmatprep.subr.mxu0 %v1191
        %1367 = vmatpush1.msra.mxu0 %v1190
        %1368 = vmatprep.subr.mxu0 %v1193
        %1369 = vmatpush1.msra.mxu0 %v1192
        %1370 = vmatprep.subr.mxu0 %v1195
        %1371 = vmatpush1.msra.mxu0 %v1194
        %1372 = vmatprep.subr.mxu0 0.0
        %1373 = vmatpush1.msra.mxu0 0.0
        %1374 = vmatprep.subr.mxu0 0.0
        %1375 = vmatpush1.msra.mxu0 0.0
        %1376 = vmatprep.subr.mxu0 0.0
        %1377 = vmatpush1.msra.mxu0 0.0
        %1378 = vmatprep.subr.mxu0 0.0
        %1379 = vmatpush1.msra.mxu0 0.0
        %1380 = vmatprep.subr.mxu0 0.0
        %1381 = vmatpush1.msra.mxu0 0.0
        %1382 = vmatprep.subr.mxu0 0.0
        %1383 = vmatpush1.msra.mxu0 0.0
        %1384 = vmatprep.subr.mxu0 0.0
        %1385 = vmatpush1.msra.mxu0 0.0
        %1386 = vmatprep.subr.mxu0 0.0
        %1387 = vmatpush1.msra.mxu0 0.0
        %1388 = vmatprep.subr.mxu0 0.0
        %1389 = vmatpush1.msra.mxu0 0.0
        %1390 = vmatprep.subr.mxu0 0.0
        %1391 = vmatpush1.msra.mxu0 0.0
        %1392 = vmatprep.subr.mxu0 0.0
        %1393 = vmatpush1.msra.mxu0 0.0
        %1394 = vmatprep.subr.mxu0 0.0
        %1395 = vmatpush1.msra.mxu0 0.0
        %1396 = vmatprep.subr.mxu0 0.0
        %1397 = vmatpush1.msra.mxu0 0.0
        %1398 = vmatprep.subr.mxu0 0.0
        %1399 = vmatpush1.msra.mxu0 0.0
        %1400 = vmatprep.subr.mxu0 0.0
        %1401 = vmatpush1.msra.mxu0 0.0
        %1402 = vmatprep.subr.mxu0 0.0
        %1403 = vmatpush1.msra.mxu0 0.0
        %1404 = vmatprep.subr.mxu0 0.0
        %1405 = vmatpush1.msra.mxu0 0.0
        %1406 = vmatprep.subr.mxu0 0.0
        %1407 = vmatpush1.msra.mxu0 0.0
        %1408 = vmatprep.subr.mxu0 0.0
        %1409 = vmatpush1.msra.mxu0 0.0
        %1410 = vmatprep.subr.mxu0 0.0
        %1411 = vmatpush1.msra.mxu0 0.0
        %1412 = vmatprep.subr.mxu0 0.0
        %1413 = vmatpush1.msra.mxu0 0.0
        %1414 = vmatprep.subr.mxu0 0.0
        %1415 = vmatpush1.msra.mxu0 0.0
        %1416 = vmatprep.subr.mxu0 0.0
        %1417 = vmatpush1.msra.mxu0 0.0
        %1418 = vmatprep.subr.mxu0 0.0
        %1419 = vmatpush1.msra.mxu0 0.0
        %1420 = vmatprep.mubr.f32.mxu0 0.0
        %1421 = vmatmul.mubr.f32.gmra.mrb[0].mxu0 %v1309
        %v1422 = vpop.f32.mrb[0].mxu0
        %v1423 = vadd.f32 %v1231, %v1422
        %v1424 = vpop.f32.mrb[0].mxu0
        %v1425 = vadd.f32 %v1231, %v1424
        %1426 = vmatprep.mubr.f32.mxu0 0.0
        %1427 = vmatmul.mubr.f32.gmra.mrb[0].mxu0 %v1312
        %v1428 = vpop.f32.mrb[0].mxu0
        %v1429 = vadd.f32 %v1236, %v1428
        %v1430 = vpop.f32.mrb[0].mxu0
        %v1431 = vadd.f32 %v1236, %v1430
        %1432 = vmatprep.mubr.f32.mxu0 0.0
        %1433 = vmatmul.mubr.f32.gmra.mrb[0].mxu0 %v1315
        %v1434 = vpop.f32.mrb[0].mxu0
        %v1435 = vadd.f32 %v1241, %v1434
        %v1436 = vpop.f32.mrb[0].mxu0
        %v1437 = vadd.f32 %v1241, %v1436
        %1438 = vmatprep.mubr.f32.mxu0 0.0
        %1439 = vmatmul.mubr.f32.gmra.mrb[0].mxu0 %v1318
        %v1440 = vpop.f32.mrb[0].mxu0
        %v1441 = vadd.f32 %v1246, %v1440
        %v1442 = vpop.f32.mrb[0].mxu0
        %v1443 = vadd.f32 %v1246, %v1442
        %1444 = vmatprep.mubr.f32.mxu0 0.0
        %1445 = vmatmul.mubr.f32.gmra.mrb[0].mxu0 %v1321
        %v1446 = vpop.f32.mrb[0].mxu0
        %v1447 = vadd.f32 %v1251, %v1446
        %v1448 = vpop.f32.mrb[0].mxu0
        %v1449 = vadd.f32 %v1251, %v1448
        %1450 = vmatprep.mubr.f32.mxu0 0.0
        %1451 = vmatmul.mubr.f32.gmra.mrb[0].mxu0 %v1324
        %v1452 = vpop.f32.mrb[0].mxu0
        %v1453 = vadd.f32 %v1256, %v1452
        %v1454 = vpop.f32.mrb[0].mxu0
        %v1455 = vadd.f32 %v1256, %v1454
        %1456 = vmatprep.mubr.f32.mxu0 0.0
        %1457 = vmatmul.mubr.f32.gmra.mrb[0].mxu0 %v1327
        %v1458 = vpop.f32.mrb[0].mxu0
        %v1459 = vadd.f32 %v1261, %v1458
        %v1460 = vpop.f32.mrb[0].mxu0
        %v1461 = vadd.f32 %v1261, %v1460
        %1462 = vmatprep.mubr.f32.mxu0 0.0
        %1463 = vmatmul.mubr.f32.gmra.mrb[0].mxu0 %v1330
        %v1464 = vpop.f32.mrb[0].mxu0
        %v1465 = vadd.f32 %v1266, %v1464
        %v1466 = vpop.f32.mrb[0].mxu0
        %v1467 = vadd.f32 %v1266, %v1466
        %1468 = vmatprep.mubr.f32.mxu0 0.0
        %1469 = vmatmul.mubr.f32.gmra.mrb[0].mxu0 %v1333
        %v1470 = vpop.f32.mrb[0].mxu0
        %v1471 = vadd.f32 %v1271, %v1470
        %v1472 = vpop.f32.mrb[0].mxu0
        %v1473 = vadd.f32 %v1271, %v1472
        %1474 = vmatprep.mubr.f32.mxu0 0.0
        %1475 = vmatmul.mubr.f32.gmra.mrb[0].mxu0 %v1336
        %v1476 = vpop.f32.mrb[0].mxu0
        %v1477 = vadd.f32 %v1276, %v1476
        %v1478 = vpop.f32.mrb[0].mxu0
        %v1479 = vadd.f32 %v1276, %v1478
        %1480 = vmatprep.mubr.f32.mxu0 0.0
        %1481 = vmatmul.mubr.f32.gmra.mrb[0].mxu0 %v1339
        %v1482 = vpop.f32.mrb[0].mxu0
        %v1483 = vadd.f32 %v1281, %v1482
        %v1484 = vpop.f32.mrb[0].mxu0
        %v1485 = vadd.f32 %v1281, %v1484
        %1486 = vmatprep.mubr.f32.mxu0 0.0
        %1487 = vmatmul.mubr.f32.gmra.mrb[0].mxu0 %v1342
        %v1488 = vpop.f32.mrb[0].mxu0
        %v1489 = vadd.f32 %v1286, %v1488
        %v1490 = vpop.f32.mrb[0].mxu0
        %v1491 = vadd.f32 %v1286, %v1490
        %1492 = vmatprep.mubr.f32.mxu0 0.0
        %1493 = vmatmul.mubr.f32.gmra.mrb[0].mxu0 %v1345
        %v1494 = vpop.f32.mrb[0].mxu0
        %v1495 = vadd.f32 %v1291, %v1494
        %v1496 = vpop.f32.mrb[0].mxu0
        %v1497 = vadd.f32 %v1291, %v1496
        %1498 = vmatprep.mubr.f32.mxu0 0.0
        %1499 = vmatmul.mubr.f32.gmra.mrb[0].mxu0 %v1348
        %v1500 = vpop.f32.mrb[0].mxu0
        %v1501 = vadd.f32 %v1296, %v1500
        %v1502 = vpop.f32.mrb[0].mxu0
        %v1503 = vadd.f32 %v1296, %v1502
        %1504 = vmatprep.mubr.f32.mxu0 0.0
        %1505 = vmatmul.mubr.f32.gmra.mrb[0].mxu0 %v1351
        %v1506 = vpop.f32.mrb[0].mxu0
        %v1507 = vadd.f32 %v1301, %v1506
        %v1508 = vpop.f32.mrb[0].mxu0
        %v1509 = vadd.f32 %v1301, %v1508
        %1510 = vmatprep.mubr.f32.mxu0 0.0
        %1511 = vmatmul.mubr.f32.gmra.mrb[0].mxu0 %v1354
        %v1512 = vpop.f32.mrb[0].mxu0
        %v1513 = vadd.f32 %v1306, %v1512
        %v1514 = vpop.f32.mrb[0].mxu0
        %v1515 = vadd.f32 %v1306, %v1514
        %1516 = vdwg.mxu0
        %v1517 = vmax.f32 %v1423, 0.0
        %v1518 = vmax.f32 %v1425, 0.0
        %v1519 = vmax.f32 %v1429, 0.0
        %v1520 = vmax.f32 %v1431, 0.0
        %v1521 = vmax.f32 %v1435, 0.0
        %v1522 = vmax.f32 %v1437, 0.0
        %v1523 = vmax.f32 %v1441, 0.0
        %v1524 = vmax.f32 %v1443, 0.0
        %v1525 = vmax.f32 %v1447, 0.0
        %v1526 = vmax.f32 %v1449, 0.0
        %v1527 = vmax.f32 %v1453, 0.0
        %v1528 = vmax.f32 %v1455, 0.0
        %v1529 = vmax.f32 %v1459, 0.0
        %v1530 = vmax.f32 %v1461, 0.0
        %v1531 = vmax.f32 %v1465, 0.0
        %v1532 = vmax.f32 %v1467, 0.0
        %v1533 = vmax.f32 %v1471, 0.0
        %v1534 = vmax.f32 %v1473, 0.0
        %v1535 = vmax.f32 %v1477, 0.0
        %v1536 = vmax.f32 %v1479, 0.0
        %v1537 = vmax.f32 %v1483, 0.0
        %v1538 = vmax.f32 %v1485, 0.0
        %v1539 = vmax.f32 %v1489, 0.0
        %v1540 = vmax.f32 %v1491, 0.0
        %v1541 = vmax.f32 %v1495, 0.0
        %v1542 = vmax.f32 %v1497, 0.0
        %v1543 = vmax.f32 %v1501, 0.0
        %v1544 = vmax.f32 %v1503, 0.0
        %v1545 = vmax.f32 %v1507, 0.0
        %v1546 = vmax.f32 %v1509, 0.0
        %v1547 = vmax.f32 %v1513, 0.0
        %v1548 = vmax.f32 %v1515, 0.0
        %v1549 = vld [vmem:[%s491] sm:$0xff]
        %v1550 = vld [vmem:[%s491 + $0x8] sm:$0xff]
        %v1551 = vld [vmem:[%s491 + $0x10] sm:$0xff]
        %v1552 = vld [vmem:[%s491 + $0x18] sm:$0xff]
        %v1553 = vld [vmem:[%s491 + $0x20] sm:$0xff]
        %v1554 = vld [vmem:[%s491 + $0x28] sm:$0xff]
        %v1555 = vld [vmem:[%s491 + $0x30] sm:$0xff]
        %v1556 = vld [vmem:[%s491 + $0x38] sm:$0xff]
        %1558 = vset.pattern.permute.xlu0 0
        %1559 = vperm.xlu0 %1558, %v1549
        %v1560 = vpop.permute.xlu0 %1559
        %1563 = vset.pattern.permute.xlu0 0
        %1564 = vperm.xlu0 %1563, %v1550
        %v1565 = vpop.permute.xlu0 %1564
        %1568 = vset.pattern.permute.xlu0 0
        %1569 = vperm.xlu0 %1568, %v1551
        %v1570 = vpop.permute.xlu0 %1569
        %1573 = vset.pattern.permute.xlu0 0
        %1574 = vperm.xlu0 %1573, %v1552
        %v1575 = vpop.permute.xlu0 %1574
        %1578 = vset.pattern.permute.xlu0 0
        %1579 = vperm.xlu0 %1578, %v1553
        %v1580 = vpop.permute.xlu0 %1579
        %1583 = vset.pattern.permute.xlu0 0
        %1584 = vperm.xlu0 %1583, %v1554
        %v1585 = vpop.permute.xlu0 %1584
        %1588 = vset.pattern.permute.xlu0 0
        %1589 = vperm.xlu0 %1588, %v1555
        %v1590 = vpop.permute.xlu0 %1589
        %1593 = vset.pattern.permute.xlu0 0
        %1594 = vperm.xlu0 %1593, %v1556
        %v1595 = vpop.permute.xlu0 %1594
        %1597 = vst [vmem:[%s476] sm:$0xff] %v1560
        %1598 = vst [vmem:[%s476 + $0x8] sm:$0xff] %v1560
        %1599 = vst [vmem:[%s476 + $0x10] sm:$0xff] %v1565
        %1600 = vst [vmem:[%s476 + $0x18] sm:$0xff] %v1565
        %1601 = vst [vmem:[%s476 + $0x20] sm:$0xff] %v1570
        %1602 = vst [vmem:[%s476 + $0x28] sm:$0xff] %v1570
        %1603 = vst [vmem:[%s476 + $0x30] sm:$0xff] %v1575
        %1604 = vst [vmem:[%s476 + $0x38] sm:$0xff] %v1575
        %1605 = vst [vmem:[%s476 + $0x40] sm:$0xff] %v1580
        %1606 = vst [vmem:[%s476 + $0x48] sm:$0xff] %v1580
        %1607 = vst [vmem:[%s476 + $0x50] sm:$0xff] %v1585
        %1608 = vst [vmem:[%s476 + $0x58] sm:$0xff] %v1585
        %1609 = vst [vmem:[%s476 + $0x60] sm:$0xff] %v1590
        %1610 = vst [vmem:[%s476 + $0x68] sm:$0xff] %v1590
        %1611 = vst [vmem:[%s476 + $0x70] sm:$0xff] %v1595
        %1612 = vst [vmem:[%s476 + $0x78] sm:$0xff] %v1595
        %1613 = vst [vmem:[%s476 + $0x80] sm:$0xff] %v1517
        %1614 = vst [vmem:[%s476 + $0x88] sm:$0xff] %v1518
        %1615 = vst [vmem:[%s476 + $0x90] sm:$0xff] %v1519
        %1616 = vst [vmem:[%s476 + $0x98] sm:$0xff] %v1520
        %1617 = vst [vmem:[%s476 + $0xa0] sm:$0xff] %v1521
        %1618 = vst [vmem:[%s476 + $0xa8] sm:$0xff] %v1522
        %1619 = vst [vmem:[%s476 + $0xb0] sm:$0xff] %v1523
        %1620 = vst [vmem:[%s476 + $0xb8] sm:$0xff] %v1524
        %1621 = vst [vmem:[%s476 + $0xc0] sm:$0xff] %v1525
        %1622 = vst [vmem:[%s476 + $0xc8] sm:$0xff] %v1526
        %1623 = vst [vmem:[%s476 + $0xd0] sm:$0xff] %v1527
        %1624 = vst [vmem:[%s476 + $0xd8] sm:$0xff] %v1528
        %1625 = vst [vmem:[%s476 + $0xe0] sm:$0xff] %v1529
        %1626 = vst [vmem:[%s476 + $0xe8] sm:$0xff] %v1530
        %1627 = vst [vmem:[%s476 + $0xf0] sm:$0xff] %v1531
        %1628 = vst [vmem:[%s476 + $0xf8] sm:$0xff] %v1532
        %1629 = vst [vmem:[%s476 + $0x100] sm:$0xff] %v1533
        %1630 = vst [vmem:[%s476 + $0x108] sm:$0xff] %v1534
        %1631 = vst [vmem:[%s476 + $0x110] sm:$0xff] %v1535
        %1632 = vst [vmem:[%s476 + $0x118] sm:$0xff] %v1536
        %1633 = vst [vmem:[%s476 + $0x120] sm:$0xff] %v1537
        %1634 = vst [vmem:[%s476 + $0x128] sm:$0xff] %v1538
        %1635 = vst [vmem:[%s476 + $0x130] sm:$0xff] %v1539
        %1636 = vst [vmem:[%s476 + $0x138] sm:$0xff] %v1540
        %1637 = vst [vmem:[%s476 + $0x140] sm:$0xff] %v1541
        %1638 = vst [vmem:[%s476 + $0x148] sm:$0xff] %v1542
        %1639 = vst [vmem:[%s476 + $0x150] sm:$0xff] %v1543
        %1640 = vst [vmem:[%s476 + $0x158] sm:$0xff] %v1544
        %1641 = vst [vmem:[%s476 + $0x160] sm:$0xff] %v1545
        %1642 = vst [vmem:[%s476 + $0x168] sm:$0xff] %v1546
        %1643 = vst [vmem:[%s476 + $0x170] sm:$0xff] %v1547
        %1644 = vst [vmem:[%s476 + $0x178] sm:$0xff] %v1548
        %s1645 = sand.u32 %s314, 1
        %s1646 = scalar_lea.sflag [#allocation4], %s1645
        %s1647 = sand.u32 %s314, 1
        %s1648 = smul.addr %s1647, 384
        %s1649 = scalar_lea.vmem [#allocation7], %s1648
        // Predicated region
        $region77: #{pointnet_feat.3} parent=67 // pred_check
          %p1650 = pneg %p324
        $region78: #{pointnet_feat.3} parent=67 // pred_check_branch
          %1652 = sbr.rel (%p1650) target = $region80
        $region79: #{pointnet_feat.3} parent=67 // pred_region
          %s1653 = smul.u32 2, %s33
          %s1655 = ssub.s32 6144, 6144
          %1656 = vsyncadd %s1646, %s1655
          %s1657 = smul.addr %s32, 192
          %s1658 = sadd.s32 %s1653, %s1657
          %s1659 = smul.addr %s1658, 128
          %s1660 = scalar_lea.hbm %s12, %s1659
          %s1661 = sshll.u32 %s1649, 4
          %s1662 = int_to_ptr.vmem [resolvable:$true] %s1661
          %1667 = dma.vmem_to_hbm [thread:$0]  %s1662, 6144, %s1660, %s1646, 256, 1024, 16
        $region80: #{pointnet_feat.3} parent=67 // pred_fallthru
          _
      $region68: #{pointnet_feat.3} parent=5 // pred_fallthru
        _
      %p1668 = scmp.le.s32.totalorder 2, %s23
      // Predicated region
      $region81: #{pointnet_feat.3} parent=5 // pred_check
        %p1669 = pneg %p1668
      $region82: #{pointnet_feat.3} parent=5 // pred_check_branch
        %1671 = sbr.rel (%p1669) target = $region84
      $region83: #{pointnet_feat.3} parent=5 // pred_region
        %s1672 = ssub.s32 %s23, 2
        // Predicated region
        $region85: #{pointnet_feat.3} parent=83 // pred_check
          %p1673 = pneg %p330
        $region86: #{pointnet_feat.3} parent=83 // pred_check_branch
          %1675 = sbr.rel (%p1673) target = $region88
        $region87: #{pointnet_feat.3} parent=83 // pred_region
          %s1676 = sand.u32 %s315, 1
          %s1677 = scalar_lea.sflag [#allocation4], %s1676
          %s1678 = sand.u32 %s315, 1
          %s1679 = smul.addr %s1678, 384
          %s1680 = scalar_lea.vmem [#allocation7], %s1679
          %1681 = dma.done %s1677, 6144
        $region88: #{pointnet_feat.3} parent=83 // pred_fallthru
          _
      $region84: #{pointnet_feat.3} parent=5 // pred_fallthru
        _
    $region6: #{pointnet_feat.3} parent=1 // loop_footer
      %s27 = sadd.s32 1, %s23
    $region7: #{pointnet_feat.3} parent=1 // loop_footer_branch
      %22 = sbr.rel target = $region3
    $region8: #{pointnet_feat.3} parent=1 // loop_exit
      _
    %1682 = vsyncpa [#allocation3], 1
    %s1683 = scalar_lea.sflag [#allocation3], 1
    %1684 = vsyncpa %s1683, 1
    %1685 = vsyncpa [#allocation6], 1
    %1686 = vsyncpa [#allocation4], 1
    %s1687 = scalar_lea.sflag [#allocation4], 1
    %1688 = vsyncpa %s1687, 1

</llo_original>
